<compile_context>
chip_gen: v7x
topology: tpu7x:2x2x1
jax: 0.10.0
libtpu: 0.0.40
codegen_flags: <defaults>
</compile_context>

<pallas_src>
import functools

import jax
import jax.numpy as jnp
from jax.experimental import pallas as pl
from jax.experimental.pallas import tpu as pltpu

KW = 4              # conv kernel size
PADW = 2            # int(ceil((4 - 1) / 2)) = 2 (pix2pixHD-style padding)
BN_EPS = 1e-5
LRELU_SLOPE = 0.2
LANE = 128


def _round_up(x, m):
    return ((x + m - 1) // m) * m


def _cdiv(a, b):
    return -(-a // b)


def _gen_params():
    """Generation-aware (vmem_limit_bytes, M-tile cap)."""
    try:
        cap = int(pltpu.get_tpu_info().vmem_capacity_bytes)
        if cap >= 100 * 1024 * 1024:          # v5e / v6e: 128 MiB physical VMEM
            return 64 * 1024 * 1024, 1024
        return 40 * 1024 * 1024, 512          # v7x: 64 MiB physical VMEM
    except Exception:
        return 48 * 1024 * 1024, 512          # unknown backend: safe defaults


VMEM_LIMIT, TM_CAP = _gen_params()
_CPARAMS = pltpu.CompilerParams(dimension_semantics=("parallel",),
                                vmem_limit_bytes=VMEM_LIMIT)


# ----------------------------------------------------------------------------
# Pallas kernels
# ----------------------------------------------------------------------------
def _conv_bias_act_kernel(p_ref, w_ref, b_ref, o_ref, *, use_act):
    # p: (TM, Kp) bf16, w: (Kp, Cp) bf16, b: (1, Cp) f32 -> o: (TM, Cp)
    y = jnp.dot(p_ref[...], w_ref[...], preferred_element_type=jnp.float32)
    y = y + b_ref[...]
    if use_act:
        y = jnp.where(y >= 0.0, y, LRELU_SLOPE * y)
    o_ref[...] = y.astype(o_ref.dtype)


def _conv_stats_kernel(p_ref, w_ref, y_ref, stats_ref):
    # Conv without bias (bias is absorbed by the following BatchNorm), emits
    # bf16 activations plus per-tile partial BN statistics:
    #   row 0 = sum(y), row 1 = sum(y*y); rows 2..7 are sublane padding and
    #   are ignored by the wrapper (no zeros block materialized here).
    acc = jnp.dot(p_ref[...], w_ref[...], preferred_element_type=jnp.float32)
    y16 = acc.astype(jnp.bfloat16)
    y_ref[...] = y16
    y = y16.astype(jnp.float32)                  # stats of the rounded values
    stats_ref[0:1, :] = jnp.sum(y, axis=0, keepdims=True)
    stats_ref[1:2, :] = jnp.sum(y * y, axis=0, keepdims=True)


def _bn_act_kernel(y_ref, scale_ref, shift_ref, o_ref):
    # Elementwise: y*scale + shift (f32 math), LeakyReLU(0.2), bf16 out.
    y = y_ref[...].astype(jnp.float32) * scale_ref[...] + shift_ref[...]
    o_ref[...] = jnp.where(y >= 0.0, y, LRELU_SLOPE * y).astype(o_ref.dtype)


# ----------------------------------------------------------------------------
# Glue: im2col patch extraction (NHWC, bf16), weight layout (kh, kw, Cin)
# ----------------------------------------------------------------------------
def _im2col(x_nhwc, stride):
    N, H, W, C = x_nhwc.shape
    xp = jnp.pad(x_nhwc, ((0, 0), (PADW, PADW), (PADW, PADW), (0, 0)))
    Hp, Wp = H + 2 * PADW, W + 2 * PADW
    H_out = (Hp - KW) // stride + 1
    W_out = (Wp - KW) // stride + 1
    cols = []
    for i in range(KW):
        for j in range(KW):
            cols.append(xp[:,
                           i:i + stride * (H_out - 1) + 1:stride,
                           j:j + stride * (W_out - 1) + 1:stride,
                           :])
    patches = jnp.concatenate(cols, axis=-1)             # (N, Ho, Wo, 16*C) bf16
    return patches.reshape(N * H_out * W_out, KW * KW * C), (N, H_out, W_out)


def _pick_tm(Kp, Cp, out_itemsize):
    """Largest M-tile (<= TM_CAP, mult of 16) whose double-buffered tiles fit."""
    budget = int(VMEM_LIMIT * 0.75)                 # headroom for compiler scratch
    fixed = 2 * Kp * Cp * 2 + (2 << 20)             # weights (2 bufs, bf16) + misc
    per_row = 2 * (Kp * 2 + Cp * out_itemsize) + Cp * 8
    tm = TM_CAP
    while tm > 128 and fixed + tm * per_row > budget:
        tm //= 2
    return tm


def _tile_m(M, tm_budget):
    """>= 2 tiles whenever possible (v7x shards the 'parallel' axis on 2 TCs)."""
    nt = max(_cdiv(M, tm_budget), 2) if M > 16 else 1
    tm = _round_up(_cdiv(M, nt), 16)                # 16: bf16 sublane packing
    return tm, nt, tm * nt


# ----------------------------------------------------------------------------
# One conv layer: bf16 im2col -> padded tiled Pallas matmul (+BN+LeakyReLU)
# ----------------------------------------------------------------------------
def _conv_layer(x_nhwc, layer):
    stride = layer["stride"]
    w = layer["w"]                                  # (KW, KW, Cin, Cout) f32
    cout = w.shape[3]

    patches, (n, ho, wo) = _im2col(x_nhwc.astype(jnp.bfloat16), stride)
    M, K = patches.shape
    Kp = _round_up(K, LANE)
    Cp = _round_up(cout, LANE)
    tm, nt, Mp = _tile_m(M, _pick_tm(Kp, Cp, 2))

    p_bf16 = jnp.pad(patches, ((0, Mp - M), (0, Kp - K)))       # already bf16
    w_bf16 = jnp.pad(w.reshape(K, cout),
                     ((0, Kp - K), (0, Cp - cout))).astype(jnp.bfloat16)

    if layer["use_bn"]:
        # Pass 1: conv (no bias) + per-tile partial statistics.
        y, stats = pl.pallas_call(
            _conv_stats_kernel,
            out_shape=(jax.ShapeDtypeStruct((Mp, Cp), jnp.bfloat16),
                       jax.ShapeDtypeStruct((nt * 8, Cp), jnp.float32)),
            grid=(nt,),
            in_specs=[pl.BlockSpec((tm, Kp), lambda i: (i, 0)),
                      pl.BlockSpec((Kp, Cp), lambda i: (0, 0))],
            out_specs=(pl.BlockSpec((tm, Cp), lambda i: (i, 0)),
                       pl.BlockSpec((8, Cp), lambda i: (i, 0))),
            compiler_params=_CPARAMS,
        )(p_bf16, w_bf16)

        # Global batch statistics from per-tile partials (tiny, f32).  Zero-
        # padded M rows produce exactly-zero conv rows (no bias), so they add
        # nothing to the sums; divide by the real M.
        stats = stats.reshape(nt, 8, Cp)
        inv_m = 1.0 / float(M)
        mean = jnp.sum(stats[:, 0, :], axis=0) * inv_m
        var = jnp.maximum(jnp.sum(stats[:, 1, :], axis=0) * inv_m - mean * mean,
                          0.0)                                  # biased, train-mode
        gamma = jnp.pad(layer["gamma"], ((0, 0), (0, Cp - cout)))
        beta = jnp.pad(layer["beta"], ((0, 0), (0, Cp - cout)))
        scale = gamma * jax.lax.rsqrt(var + BN_EPS)[None, :]
        shift = beta - mean[None, :] * scale

        # Pass 2: normalize + affine + LeakyReLU, written in place over y.
        y = pl.pallas_call(
            _bn_act_kernel,
            out_shape=jax.ShapeDtypeStruct((Mp, Cp), jnp.bfloat16),
            grid=(nt,),
            in_specs=[pl.BlockSpec((tm, Cp), lambda i: (i, 0)),
                      pl.BlockSpec((1, Cp), lambda i: (0, 0)),
                      pl.BlockSpec((1, Cp), lambda i: (0, 0))],
            out_specs=pl.BlockSpec((tm, Cp), lambda i: (i, 0)),
            input_output_aliases={0: 0},
            compiler_params=_CPARAMS,
        )(y, scale, shift)
    else:
        b = jnp.pad(layer["b"], ((0, 0), (0, Cp - cout)))
        y = pl.pallas_call(
            functools.partial(_conv_bias_act_kernel, use_act=layer["use_act"]),
            out_shape=jax.ShapeDtypeStruct((Mp, Cp), jnp.bfloat16),
            grid=(nt,),
            in_specs=[pl.BlockSpec((tm, Kp), lambda i: (i, 0)),
                      pl.BlockSpec((Kp, Cp), lambda i: (0, 0)),
                      pl.BlockSpec((1, Cp), lambda i: (0, 0))],
            out_specs=pl.BlockSpec((tm, Cp), lambda i: (i, 0)),
            compiler_params=_CPARAMS,
        )(p_bf16, w_bf16, b)

    return y[:M, :cout].reshape(n, ho, wo, cout)


# ----------------------------------------------------------------------------
# Final 1-channel conv, im2col-free: contract channels first into 16 tap maps
# (one lane-dense matmul), then spatially shift-add the taps.
# ----------------------------------------------------------------------------
def _final_conv_layer(x_nhwc, layer):
    w = layer["w"]                                  # (KW, KW, Cin, 1)
    b = layer["b"]                                  # (1, 1)
    N, H, W, C = x_nhwc.shape
    M = N * H * W
    Kp = _round_up(C, LANE)
    Cp = LANE                                       # 16 taps -> one lane-dense tile

    # w_tap[c, i*KW + j] = w[i, j, c, 0]
    w_tap = jnp.transpose(w[:, :, :, 0].reshape(KW * KW, C))
    w_bf16 = jnp.pad(w_tap, ((0, Kp - C), (0, Cp - KW * KW))).astype(jnp.bfloat16)
    tm, nt, Mp = _tile_m(M, _pick_tm(Kp, Cp, 4))
    p_bf16 = jnp.pad(x_nhwc.reshape(M, C).astype(jnp.bfloat16),
                     ((0, Mp - M), (0, Kp - C)))
    zero_b = jnp.zeros((1, Cp), jnp.float32)        # bias added once after shift-add

    z = pl.pallas_call(
        functools.partial(_conv_bias_act_kernel, use_act=False),
        out_shape=jax.ShapeDtypeStruct((Mp, Cp), jnp.float32),
        grid=(nt,),
        in_specs=[pl.BlockSpec((tm, Kp), lambda i: (i, 0)),
                  pl.BlockSpec((Kp, Cp), lambda i: (0, 0)),
                  pl.BlockSpec((1, Cp), lambda i: (0, 0))],
        out_specs=pl.BlockSpec((tm, Cp), lambda i: (i, 0)),
        compiler_params=_CPARAMS,
    )(p_bf16, w_bf16, zero_b)

    z = z[:M, :KW * KW].reshape(N, H, W, KW * KW)
    zp = jnp.pad(z, ((0, 0), (PADW, PADW), (PADW, PADW), (0, 0)))
    ho = H + 2 * PADW - KW + 1
    wo = W + 2 * PADW - KW + 1
    out = jnp.zeros((N, ho, wo), jnp.float32)
    for i in range(KW):                             # 16 cheap shift-adds (XLA glue)
        for j in range(KW):
            out = out + zp[:, i:i + ho, j:j + wo, i * KW + j]
    return (out + b[0, 0])[..., None]               # (N, Ho, Wo, 1) f32


# ----------------------------------------------------------------------------
# Parameter construction (deterministic, matches module __init__ shapes)
# ----------------------------------------------------------------------------
def init_nlayer_discriminator_params(key, input_nc, ndf=64, n_layers=3):
    """Per-layer dicts: {'w','b','gamma','beta','stride','use_bn','use_act'}.
    Conv weights stored as (kh, kw, Cin, Cout)."""
    layers = []

    def conv_params(k, cin, cout):
        kw_, kb_ = jax.random.split(k)
        w = 0.02 * jax.random.normal(kw_, (KW, KW, cin, cout), jnp.float32)
        b = 0.02 * jax.random.normal(kb_, (1, cout), jnp.float32)
        return w, b

    keys = jax.random.split(key, n_layers + 2)

    # layer 0: conv(input_nc -> ndf, s=2) + LeakyReLU (no norm)
    w, b = conv_params(keys[0], input_nc, ndf)
    layers.append(dict(w=w, b=b,
                       gamma=jnp.ones((1, ndf), jnp.float32),
                       beta=jnp.zeros((1, ndf), jnp.float32),
                       stride=2, use_bn=False, use_act=True))

    nf_mult = 1
    for n in range(1, n_layers):
        nf_mult_prev = nf_mult
        nf_mult = min(2 ** n, 8)
        cin, cout = ndf * nf_mult_prev, ndf * nf_mult
        w, b = conv_params(keys[n], cin, cout)
        layers.append(dict(w=w, b=b,
                           gamma=jnp.ones((1, cout), jnp.float32),
                           beta=jnp.zeros((1, cout), jnp.float32),
                           stride=2, use_bn=True, use_act=True))

    nf_mult_prev = nf_mult
    nf_mult = min(2 ** n_layers, 8)
    cin, cout = ndf * nf_mult_prev, ndf * nf_mult
    w, b = conv_params(keys[n_layers], cin, cout)
    layers.append(dict(w=w, b=b,
                       gamma=jnp.ones((1, cout), jnp.float32),
                       beta=jnp.zeros((1, cout), jnp.float32),
                       stride=1, use_bn=True, use_act=True))

    # final conv: ndf*nf_mult -> 1, stride 1, no norm, no activation
    w, b = conv_params(keys[n_layers + 1], cout, 1)
    layers.append(dict(w=w, b=b,
                       gamma=jnp.ones((1, 1), jnp.float32),
                       beta=jnp.zeros((1, 1), jnp.float32),
                       stride=1, use_bn=False, use_act=False))
    # TODO(synk): use_sigmoid=False path only; Sigmoid tail not instantiated.
    return layers


# ----------------------------------------------------------------------------
# Forward pass (accepts NCHW, returns NCHW)
# ----------------------------------------------------------------------------
def nlayer_discriminator_forward(params, x_nchw):
    x = jnp.transpose(x_nchw, (0, 2, 3, 1)).astype(jnp.bfloat16)  # NCHW -> NHWC
    for layer in params[:-1]:
        x = _conv_layer(x, layer)
    y = _final_conv_layer(x, params[-1])                          # f32
    return jnp.transpose(y, (0, 3, 1, 2))                         # NHWC -> NCHW


if __name__ == "__main__":
    key = jax.random.PRNGKey(0)
    k_x, k_p = jax.random.split(key)

    # small shapes: batch=2, input_nc=4, spatial=16, ndf=8, n_layers=3
    N, C, H, W = 2, 4, 16, 16
    x = jax.random.normal(k_x, (N, C, H, W), jnp.float32)

    params = init_nlayer_discriminator_params(k_p, input_nc=C, ndf=8, n_layers=3)

    fwd = jax.jit(lambda inp: nlayer_discriminator_forward(params, inp))
    out = jax.block_until_ready(fwd(x))

    # PatchGAN output for 16x16 input, n_layers=3, k=4, pad=2: (N, 1, 5, 5)
    assert out.shape == (N, 1, 5, 5), out.shape
    assert bool(jnp.all(jnp.isfinite(out)))
    print("KERNEL_OK")
</pallas_src>

<mosaic_0001>
module attributes {stable_mosaic.version = 11 : i64} {
  func.func @_conv_bias_act_kernel(%arg0: i32, %arg1: memref<96x128xbf16, #tpu.memory_space<vmem>>, %arg2: memref<128x128xbf16, #tpu.memory_space<vmem>>, %arg3: memref<1x128xf32, #tpu.memory_space<vmem>>, %arg4: memref<96x128xbf16, #tpu.memory_space<vmem>>) attributes {dimension_semantics = [#tpu.dimension_semantics<parallel>], iteration_bounds = array<i64: 2>, scalar_prefetch = 0 : i64, scratch_operands = 0 : i64, tpu.core_type = #tpu.core_type<tc>, window_params = [{transform_indices = @transform_0, window_bounds = array<i64: 96, 128>}, {pipeline_mode = #tpu.pipeline_mode<synchronous>, transform_indices = @transform_1, window_bounds = array<i64: 128, 128>}, {pipeline_mode = #tpu.pipeline_mode<synchronous>, transform_indices = @transform_2, window_bounds = array<i64: 1, 128>}, {transform_indices = @transform_3, window_bounds = array<i64: 96, 128>}]} {
    %c0 = arith.constant 0 : index
    %c0_0 = arith.constant 0 : index
    %0 = vector.load %arg1[%c0, %c0_0] : memref<96x128xbf16, #tpu.memory_space<vmem>>, vector<96x128xbf16>
    %c0_1 = arith.constant 0 : index
    %c0_2 = arith.constant 0 : index
    %1 = vector.load %arg2[%c0_1, %c0_2] : memref<128x128xbf16, #tpu.memory_space<vmem>>, vector<128x128xbf16>
    %cst = arith.constant dense<0.000000e+00> : vector<96x128xf32>
    %2 = tpu.matmul %0, %1, %cst {dimension_numbers = #tpu.dot_dimension_numbers<[1], [0], [0], [1], [0, 0, 1, 1], [], []>} : vector<96x128xbf16>, vector<128x128xbf16>, vector<96x128xf32> -> vector<96x128xf32>
    %c0_3 = arith.constant 0 : index
    %c0_4 = arith.constant 0 : index
    %3 = vector.load %arg3[%c0_3, %c0_4] : memref<1x128xf32, #tpu.memory_space<vmem>>, vector<1x128xf32>
    %4 = vector.broadcast %3 : vector<1x128xf32> to vector<96x128xf32>
    %5 = arith.addf %2, %4 : vector<96x128xf32>
    %cst_5 = arith.constant 0.000000e+00 : f32
    %6 = vector.broadcast %cst_5 : f32 to vector<96x128xf32>
    %7 = arith.cmpf oge, %5, %6 : vector<96x128xf32>
    %cst_6 = arith.constant 2.000000e-01 : f32
    %8 = vector.broadcast %cst_6 : f32 to vector<96x128xf32>
    %9 = arith.mulf %8, %5 : vector<96x128xf32>
    %10 = arith.select %7, %5, %9 : vector<96x128xi1>, vector<96x128xf32>
    %11 = arith.truncf %10 : vector<96x128xf32> to vector<96x128xbf16>
    %c0_7 = arith.constant 0 : index
    %c0_8 = arith.constant 0 : index
    %12 = vector.load %arg4[%c0_7, %c0_8] : memref<96x128xbf16, #tpu.memory_space<vmem>>, vector<96x128xbf16>
    tpu.vector_store %arg4[%c0_7, %c0_8], %11 {strides = array<i32>} : memref<96x128xbf16, #tpu.memory_space<vmem>>, vector<96x128xbf16>,
    return
  }
  func.func @transform_0(%arg0: i32) -> (i32, i32) {
    %c0_i32 = arith.constant 0 : i32
    %c0_i32_0 = arith.constant 0 : i32
    return %arg0, %c0_i32 : i32, i32
  }
  func.func @transform_1(%arg0: i32) -> (i32, i32) {
    %c0_i32 = arith.constant 0 : i32
    %c0_i32_0 = arith.constant 0 : i32
    %c0_i32_1 = arith.constant 0 : i32
    return %c0_i32, %c0_i32_0 : i32, i32
  }
  func.func @transform_2(%arg0: i32) -> (i32, i32) {
    %c0_i32 = arith.constant 0 : i32
    %c0_i32_0 = arith.constant 0 : i32
    %c0_i32_1 = arith.constant 0 : i32
    return %c0_i32, %c0_i32_0 : i32, i32
  }
  func.func @transform_3(%arg0: i32) -> (i32, i32) {
    %c0_i32 = arith.constant 0 : i32
    %c0_i32_0 = arith.constant 0 : i32
    return %arg0, %c0_i32 : i32, i32
  }
}

module attributes {stable_mosaic.version = 11 : i64} {
  func.func @_bn_act_kernel(%arg0: i32, %arg1: memref<32x128xbf16, #tpu.memory_space<vmem>>, %arg2: memref<1x128xf32, #tpu.memory_space<vmem>>, %arg3: memref<1x128xf32, #tpu.memory_space<vmem>>, %arg4: memref<32x128xbf16, #tpu.memory_space<vmem>>) attributes {dimension_semantics = [#tpu.dimension_semantics<parallel>], iteration_bounds = array<i64: 2>, scalar_prefetch = 0 : i64, scratch_operands = 0 : i64, tpu.core_type = #tpu.core_type<tc>, window_params = [{transform_indices = @transform_0, window_bounds = array<i64: 32, 128>}, {pipeline_mode = #tpu.pipeline_mode<synchronous>, transform_indices = @transform_1, window_bounds = array<i64: 1, 128>}, {pipeline_mode = #tpu.pipeline_mode<synchronous>, transform_indices = @transform_2, window_bounds = array<i64: 1, 128>}, {transform_indices = @transform_3, window_bounds = array<i64: 32, 128>}]} {
    %c0 = arith.constant 0 : index
    %c0_0 = arith.constant 0 : index
    %0 = vector.load %arg1[%c0, %c0_0] : memref<32x128xbf16, #tpu.memory_space<vmem>>, vector<32x128xbf16>
    %1 = arith.extf %0 : vector<32x128xbf16> to vector<32x128xf32>
    %c0_1 = arith.constant 0 : index
    %c0_2 = arith.constant 0 : index
    %2 = vector.load %arg2[%c0_1, %c0_2] : memref<1x128xf32, #tpu.memory_space<vmem>>, vector<1x128xf32>
    %3 = vector.broadcast %2 : vector<1x128xf32> to vector<32x128xf32>
    %4 = arith.mulf %1, %3 : vector<32x128xf32>
    %c0_3 = arith.constant 0 : index
    %c0_4 = arith.constant 0 : index
    %5 = vector.load %arg3[%c0_3, %c0_4] : memref<1x128xf32, #tpu.memory_space<vmem>>, vector<1x128xf32>
    %6 = vector.broadcast %5 : vector<1x128xf32> to vector<32x128xf32>
    %7 = arith.addf %4, %6 : vector<32x128xf32>
    %cst = arith.constant 0.000000e+00 : f32
    %8 = vector.broadcast %cst : f32 to vector<32x128xf32>
    %9 = arith.cmpf oge, %7, %8 : vector<32x128xf32>
    %cst_5 = arith.constant 2.000000e-01 : f32
    %10 = vector.broadcast %cst_5 : f32 to vector<32x128xf32>
    %11 = arith.mulf %10, %7 : vector<32x128xf32>
    %12 = arith.select %9, %7, %11 : vector<32x128xi1>, vector<32x128xf32>
    %13 = arith.truncf %12 : vector<32x128xf32> to vector<32x128xbf16>
    %c0_6 = arith.constant 0 : index
    %c0_7 = arith.constant 0 : index
    %14 = vector.load %arg4[%c0_6, %c0_7] : memref<32x128xbf16, #tpu.memory_space<vmem>>, vector<32x128xbf16>
    tpu.vector_store %arg4[%c0_6, %c0_7], %13 {strides = array<i32>} : memref<32x128xbf16, #tpu.memory_space<vmem>>, vector<32x128xbf16>,
    return
  }
  func.func @transform_0(%arg0: i32) -> (i32, i32) {
    %c0_i32 = arith.constant 0 : i32
    %c0_i32_0 = arith.constant 0 : i32
    return %arg0, %c0_i32 : i32, i32
  }
  func.func @transform_1(%arg0: i32) -> (i32, i32) {
    %c0_i32 = arith.constant 0 : i32
    %c0_i32_0 = arith.constant 0 : i32
    %c0_i32_1 = arith.constant 0 : i32
    return %c0_i32, %c0_i32_0 : i32, i32
  }
  func.func @transform_2(%arg0: i32) -> (i32, i32) {
    %c0_i32 = arith.constant 0 : i32
    %c0_i32_0 = arith.constant 0 : i32
    %c0_i32_1 = arith.constant 0 : i32
    return %c0_i32, %c0_i32_0 : i32, i32
  }
  func.func @transform_3(%arg0: i32) -> (i32, i32) {
    %c0_i32 = arith.constant 0 : i32
    %c0_i32_0 = arith.constant 0 : i32
    return %arg0, %c0_i32 : i32, i32
  }
}

module attributes {stable_mosaic.version = 11 : i64} {
  func.func @_conv_stats_kernel(%arg0: i32, %arg1: memref<32x128xbf16, #tpu.memory_space<vmem>>, %arg2: memref<128x128xbf16, #tpu.memory_space<vmem>>, %arg3: memref<32x128xbf16, #tpu.memory_space<vmem>>, %arg4: memref<8x128xf32, #tpu.memory_space<vmem>>) attributes {dimension_semantics = [#tpu.dimension_semantics<parallel>], iteration_bounds = array<i64: 2>, scalar_prefetch = 0 : i64, scratch_operands = 0 : i64, tpu.core_type = #tpu.core_type<tc>, window_params = [{transform_indices = @transform_0, window_bounds = array<i64: 32, 128>}, {pipeline_mode = #tpu.pipeline_mode<synchronous>, transform_indices = @transform_1, window_bounds = array<i64: 128, 128>}, {transform_indices = @transform_2, window_bounds = array<i64: 32, 128>}, {transform_indices = @transform_3, window_bounds = array<i64: 8, 128>}]} {
    %c0 = arith.constant 0 : index
    %c0_0 = arith.constant 0 : index
    %0 = vector.load %arg1[%c0, %c0_0] : memref<32x128xbf16, #tpu.memory_space<vmem>>, vector<32x128xbf16>
    %c0_1 = arith.constant 0 : index
    %c0_2 = arith.constant 0 : index
    %1 = vector.load %arg2[%c0_1, %c0_2] : memref<128x128xbf16, #tpu.memory_space<vmem>>, vector<128x128xbf16>
    %cst = arith.constant dense<0.000000e+00> : vector<32x128xf32>
    %2 = tpu.matmul %0, %1, %cst {dimension_numbers = #tpu.dot_dimension_numbers<[1], [0], [0], [1], [0, 0, 1, 1], [], []>} : vector<32x128xbf16>, vector<128x128xbf16>, vector<32x128xf32> -> vector<32x128xf32>
    %3 = arith.truncf %2 : vector<32x128xf32> to vector<32x128xbf16>
    %c0_3 = arith.constant 0 : index
    %c0_4 = arith.constant 0 : index
    %4 = vector.load %arg3[%c0_3, %c0_4] : memref<32x128xbf16, #tpu.memory_space<vmem>>, vector<32x128xbf16>
    tpu.vector_store %arg3[%c0_3, %c0_4], %3 {strides = array<i32>} : memref<32x128xbf16, #tpu.memory_space<vmem>>, vector<32x128xbf16>,
    %5 = arith.extf %3 : vector<32x128xbf16> to vector<32x128xf32>
    %cst_5 = arith.constant dense<0.000000e+00> : vector<128xf32>
    %6 = vector.multi_reduction <add>, %5, %cst_5 [0] : vector<32x128xf32> to vector<128xf32>
    %7 = vector.shape_cast %6 : vector<128xf32> to vector<1x128xf32>
    %c0_6 = arith.constant 0 : index
    %c0_7 = arith.constant 0 : index
    %8 = vector.load %arg4[%c0_6, %c0_7] : memref<8x128xf32, #tpu.memory_space<vmem>>, vector<1x128xf32>
    tpu.vector_store %arg4[%c0_6, %c0_7], %7 {strides = array<i32>} : memref<8x128xf32, #tpu.memory_space<vmem>>, vector<1x128xf32>,
    %9 = arith.mulf %5, %5 : vector<32x128xf32>
    %cst_8 = arith.constant dense<0.000000e+00> : vector<128xf32>
    %10 = vector.multi_reduction <add>, %9, %cst_8 [0] : vector<32x128xf32> to vector<128xf32>
    %11 = vector.shape_cast %10 : vector<128xf32> to vector<1x128xf32>
    %c1 = arith.constant 1 : index
    %c0_9 = arith.constant 0 : index
    %12 = vector.load %arg4[%c1, %c0_9] : memref<8x128xf32, #tpu.memory_space<vmem>>, vector<1x128xf32>
    tpu.vector_store %arg4[%c1, %c0_9], %11 {strides = array<i32>} : memref<8x128xf32, #tpu.memory_space<vmem>>, vector<1x128xf32>,
    return
  }
  func.func @transform_0(%arg0: i32) -> (i32, i32) {
    %c0_i32 = arith.constant 0 : i32
    %c0_i32_0 = arith.constant 0 : i32
    return %arg0, %c0_i32 : i32, i32
  }
  func.func @transform_1(%arg0: i32) -> (i32, i32) {
    %c0_i32 = arith.constant 0 : i32
    %c0_i32_0 = arith.constant 0 : i32
    %c0_i32_1 = arith.constant 0 : i32
    return %c0_i32, %c0_i32_0 : i32, i32
  }
  func.func @transform_2(%arg0: i32) -> (i32, i32) {
    %c0_i32 = arith.constant 0 : i32
    %c0_i32_0 = arith.constant 0 : i32
    return %arg0, %c0_i32 : i32, i32
  }
  func.func @transform_3(%arg0: i32) -> (i32, i32) {
    %c0_i32 = arith.constant 0 : i32
    %c0_i32_0 = arith.constant 0 : i32
    return %arg0, %c0_i32 : i32, i32
  }
}

module attributes {stable_mosaic.version = 11 : i64} {
  func.func @_conv_stats_kernel(%arg0: i32, %arg1: memref<16x256xbf16, #tpu.memory_space<vmem>>, %arg2: memref<256x128xbf16, #tpu.memory_space<vmem>>, %arg3: memref<16x128xbf16, #tpu.memory_space<vmem>>, %arg4: memref<8x128xf32, #tpu.memory_space<vmem>>) attributes {dimension_semantics = [#tpu.dimension_semantics<parallel>], iteration_bounds = array<i64: 2>, scalar_prefetch = 0 : i64, scratch_operands = 0 : i64, tpu.core_type = #tpu.core_type<tc>, window_params = [{transform_indices = @transform_0, window_bounds = array<i64: 16, 256>}, {pipeline_mode = #tpu.pipeline_mode<synchronous>, transform_indices = @transform_1, window_bounds = array<i64: 256, 128>}, {transform_indices = @transform_2, window_bounds = array<i64: 16, 128>}, {transform_indices = @transform_3, window_bounds = array<i64: 8, 128>}]} {
    %c0 = arith.constant 0 : index
    %c0_0 = arith.constant 0 : index
    %0 = vector.load %arg1[%c0, %c0_0] : memref<16x256xbf16, #tpu.memory_space<vmem>>, vector<16x256xbf16>
    %c0_1 = arith.constant 0 : index
    %c0_2 = arith.constant 0 : index
    %1 = vector.load %arg2[%c0_1, %c0_2] : memref<256x128xbf16, #tpu.memory_space<vmem>>, vector<256x128xbf16>
    %cst = arith.constant dense<0.000000e+00> : vector<16x128xf32>
    %2 = tpu.matmul %0, %1, %cst {dimension_numbers = #tpu.dot_dimension_numbers<[1], [0], [0], [1], [0, 0, 1, 1], [], []>} : vector<16x256xbf16>, vector<256x128xbf16>, vector<16x128xf32> -> vector<16x128xf32>
    %3 = arith.truncf %2 : vector<16x128xf32> to vector<16x128xbf16>
    %c0_3 = arith.constant 0 : index
    %c0_4 = arith.constant 0 : index
    %4 = vector.load %arg3[%c0_3, %c0_4] : memref<16x128xbf16, #tpu.memory_space<vmem>>, vector<16x128xbf16>
    tpu.vector_store %arg3[%c0_3, %c0_4], %3 {strides = array<i32>} : memref<16x128xbf16, #tpu.memory_space<vmem>>, vector<16x128xbf16>,
    %5 = arith.extf %3 : vector<16x128xbf16> to vector<16x128xf32>
    %cst_5 = arith.constant dense<0.000000e+00> : vector<128xf32>
    %6 = vector.multi_reduction <add>, %5, %cst_5 [0] : vector<16x128xf32> to vector<128xf32>
    %7 = vector.shape_cast %6 : vector<128xf32> to vector<1x128xf32>
    %c0_6 = arith.constant 0 : index
    %c0_7 = arith.constant 0 : index
    %8 = vector.load %arg4[%c0_6, %c0_7] : memref<8x128xf32, #tpu.memory_space<vmem>>, vector<1x128xf32>
    tpu.vector_store %arg4[%c0_6, %c0_7], %7 {strides = array<i32>} : memref<8x128xf32, #tpu.memory_space<vmem>>, vector<1x128xf32>,
    %9 = arith.mulf %5, %5 : vector<16x128xf32>
    %cst_8 = arith.constant dense<0.000000e+00> : vector<128xf32>
    %10 = vector.multi_reduction <add>, %9, %cst_8 [0] : vector<16x128xf32> to vector<128xf32>
    %11 = vector.shape_cast %10 : vector<128xf32> to vector<1x128xf32>
    %c1 = arith.constant 1 : index
    %c0_9 = arith.constant 0 : index
    %12 = vector.load %arg4[%c1, %c0_9] : memref<8x128xf32, #tpu.memory_space<vmem>>, vector<1x128xf32>
    tpu.vector_store %arg4[%c1, %c0_9], %11 {strides = array<i32>} : memref<8x128xf32, #tpu.memory_space<vmem>>, vector<1x128xf32>,
    return
  }
  func.func @transform_0(%arg0: i32) -> (i32, i32) {
    %c0_i32 = arith.constant 0 : i32
    %c0_i32_0 = arith.constant 0 : i32
    return %arg0, %c0_i32 : i32, i32
  }
  func.func @transform_1(%arg0: i32) -> (i32, i32) {
    %c0_i32 = arith.constant 0 : i32
    %c0_i32_0 = arith.constant 0 : i32
    %c0_i32_1 = arith.constant 0 : i32
    return %c0_i32, %c0_i32_0 : i32, i32
  }
  func.func @transform_2(%arg0: i32) -> (i32, i32) {
    %c0_i32 = arith.constant 0 : i32
    %c0_i32_0 = arith.constant 0 : i32
    return %arg0, %c0_i32 : i32, i32
  }
  func.func @transform_3(%arg0: i32) -> (i32, i32) {
    %c0_i32 = arith.constant 0 : i32
    %c0_i32_0 = arith.constant 0 : i32
    return %arg0, %c0_i32 : i32, i32
  }
}

module attributes {stable_mosaic.version = 11 : i64} {
  func.func @_bn_act_kernel(%arg0: i32, %arg1: memref<16x128xbf16, #tpu.memory_space<vmem>>, %arg2: memref<1x128xf32, #tpu.memory_space<vmem>>, %arg3: memref<1x128xf32, #tpu.memory_space<vmem>>, %arg4: memref<16x128xbf16, #tpu.memory_space<vmem>>) attributes {dimension_semantics = [#tpu.dimension_semantics<parallel>], iteration_bounds = array<i64: 2>, scalar_prefetch = 0 : i64, scratch_operands = 0 : i64, tpu.core_type = #tpu.core_type<tc>, window_params = [{transform_indices = @transform_0, window_bounds = array<i64: 16, 128>}, {pipeline_mode = #tpu.pipeline_mode<synchronous>, transform_indices = @transform_1, window_bounds = array<i64: 1, 128>}, {pipeline_mode = #tpu.pipeline_mode<synchronous>, transform_indices = @transform_2, window_bounds = array<i64: 1, 128>}, {transform_indices = @transform_3, window_bounds = array<i64: 16, 128>}]} {
    %c0 = arith.constant 0 : index
    %c0_0 = arith.constant 0 : index
    %0 = vector.load %arg1[%c0, %c0_0] : memref<16x128xbf16, #tpu.memory_space<vmem>>, vector<16x128xbf16>
    %1 = arith.extf %0 : vector<16x128xbf16> to vector<16x128xf32>
    %c0_1 = arith.constant 0 : index
    %c0_2 = arith.constant 0 : index
    %2 = vector.load %arg2[%c0_1, %c0_2] : memref<1x128xf32, #tpu.memory_space<vmem>>, vector<1x128xf32>
    %3 = vector.broadcast %2 : vector<1x128xf32> to vector<16x128xf32>
    %4 = arith.mulf %1, %3 : vector<16x128xf32>
    %c0_3 = arith.constant 0 : index
    %c0_4 = arith.constant 0 : index
    %5 = vector.load %arg3[%c0_3, %c0_4] : memref<1x128xf32, #tpu.memory_space<vmem>>, vector<1x128xf32>
    %6 = vector.broadcast %5 : vector<1x128xf32> to vector<16x128xf32>
    %7 = arith.addf %4, %6 : vector<16x128xf32>
    %cst = arith.constant 0.000000e+00 : f32
    %8 = vector.broadcast %cst : f32 to vector<16x128xf32>
    %9 = arith.cmpf oge, %7, %8 : vector<16x128xf32>
    %cst_5 = arith.constant 2.000000e-01 : f32
    %10 = vector.broadcast %cst_5 : f32 to vector<16x128xf32>
    %11 = arith.mulf %10, %7 : vector<16x128xf32>
    %12 = arith.select %9, %7, %11 : vector<16x128xi1>, vector<16x128xf32>
    %13 = arith.truncf %12 : vector<16x128xf32> to vector<16x128xbf16>
    %c0_6 = arith.constant 0 : index
    %c0_7 = arith.constant 0 : index
    %14 = vector.load %arg4[%c0_6, %c0_7] : memref<16x128xbf16, #tpu.memory_space<vmem>>, vector<16x128xbf16>
    tpu.vector_store %arg4[%c0_6, %c0_7], %13 {strides = array<i32>} : memref<16x128xbf16, #tpu.memory_space<vmem>>, vector<16x128xbf16>,
    return
  }
  func.func @transform_0(%arg0: i32) -> (i32, i32) {
    %c0_i32 = arith.constant 0 : i32
    %c0_i32_0 = arith.constant 0 : i32
    return %arg0, %c0_i32 : i32, i32
  }
  func.func @transform_1(%arg0: i32) -> (i32, i32) {
    %c0_i32 = arith.constant 0 : i32
    %c0_i32_0 = arith.constant 0 : i32
    %c0_i32_1 = arith.constant 0 : i32
    return %c0_i32, %c0_i32_0 : i32, i32
  }
  func.func @transform_2(%arg0: i32) -> (i32, i32) {
    %c0_i32 = arith.constant 0 : i32
    %c0_i32_0 = arith.constant 0 : i32
    %c0_i32_1 = arith.constant 0 : i32
    return %c0_i32, %c0_i32_0 : i32, i32
  }
  func.func @transform_3(%arg0: i32) -> (i32, i32) {
    %c0_i32 = arith.constant 0 : i32
    %c0_i32_0 = arith.constant 0 : i32
    return %arg0, %c0_i32 : i32, i32
  }
}

module attributes {stable_mosaic.version = 11 : i64} {
  func.func @_conv_stats_kernel(%arg0: i32, %arg1: memref<16x512xbf16, #tpu.memory_space<vmem>>, %arg2: memref<512x128xbf16, #tpu.memory_space<vmem>>, %arg3: memref<16x128xbf16, #tpu.memory_space<vmem>>, %arg4: memref<8x128xf32, #tpu.memory_space<vmem>>) attributes {dimension_semantics = [#tpu.dimension_semantics<parallel>], iteration_bounds = array<i64: 2>, scalar_prefetch = 0 : i64, scratch_operands = 0 : i64, tpu.core_type = #tpu.core_type<tc>, window_params = [{transform_indices = @transform_0, window_bounds = array<i64: 16, 512>}, {pipeline_mode = #tpu.pipeline_mode<synchronous>, transform_indices = @transform_1, window_bounds = array<i64: 512, 128>}, {transform_indices = @transform_2, window_bounds = array<i64: 16, 128>}, {transform_indices = @transform_3, window_bounds = array<i64: 8, 128>}]} {
    %c0 = arith.constant 0 : index
    %c0_0 = arith.constant 0 : index
    %0 = vector.load %arg1[%c0, %c0_0] : memref<16x512xbf16, #tpu.memory_space<vmem>>, vector<16x512xbf16>
    %c0_1 = arith.constant 0 : index
    %c0_2 = arith.constant 0 : index
    %1 = vector.load %arg2[%c0_1, %c0_2] : memref<512x128xbf16, #tpu.memory_space<vmem>>, vector<512x128xbf16>
    %cst = arith.constant dense<0.000000e+00> : vector<16x128xf32>
    %2 = tpu.matmul %0, %1, %cst {dimension_numbers = #tpu.dot_dimension_numbers<[1], [0], [0], [1], [0, 0, 1, 1], [], []>} : vector<16x512xbf16>, vector<512x128xbf16>, vector<16x128xf32> -> vector<16x128xf32>
    %3 = arith.truncf %2 : vector<16x128xf32> to vector<16x128xbf16>
    %c0_3 = arith.constant 0 : index
    %c0_4 = arith.constant 0 : index
    %4 = vector.load %arg3[%c0_3, %c0_4] : memref<16x128xbf16, #tpu.memory_space<vmem>>, vector<16x128xbf16>
    tpu.vector_store %arg3[%c0_3, %c0_4], %3 {strides = array<i32>} : memref<16x128xbf16, #tpu.memory_space<vmem>>, vector<16x128xbf16>,
    %5 = arith.extf %3 : vector<16x128xbf16> to vector<16x128xf32>
    %cst_5 = arith.constant dense<0.000000e+00> : vector<128xf32>
    %6 = vector.multi_reduction <add>, %5, %cst_5 [0] : vector<16x128xf32> to vector<128xf32>
    %7 = vector.shape_cast %6 : vector<128xf32> to vector<1x128xf32>
    %c0_6 = arith.constant 0 : index
    %c0_7 = arith.constant 0 : index
    %8 = vector.load %arg4[%c0_6, %c0_7] : memref<8x128xf32, #tpu.memory_space<vmem>>, vector<1x128xf32>
    tpu.vector_store %arg4[%c0_6, %c0_7], %7 {strides = array<i32>} : memref<8x128xf32, #tpu.memory_space<vmem>>, vector<1x128xf32>,
    %9 = arith.mulf %5, %5 : vector<16x128xf32>
    %cst_8 = arith.constant dense<0.000000e+00> : vector<128xf32>
    %10 = vector.multi_reduction <add>, %9, %cst_8 [0] : vector<16x128xf32> to vector<128xf32>
    %11 = vector.shape_cast %10 : vector<128xf32> to vector<1x128xf32>
    %c1 = arith.constant 1 : index
    %c0_9 = arith.constant 0 : index
    %12 = vector.load %arg4[%c1, %c0_9] : memref<8x128xf32, #tpu.memory_space<vmem>>, vector<1x128xf32>
    tpu.vector_store %arg4[%c1, %c0_9], %11 {strides = array<i32>} : memref<8x128xf32, #tpu.memory_space<vmem>>, vector<1x128xf32>,
    return
  }
  func.func @transform_0(%arg0: i32) -> (i32, i32) {
    %c0_i32 = arith.constant 0 : i32
    %c0_i32_0 = arith.constant 0 : i32
    return %arg0, %c0_i32 : i32, i32
  }
  func.func @transform_1(%arg0: i32) -> (i32, i32) {
    %c0_i32 = arith.constant 0 : i32
    %c0_i32_0 = arith.constant 0 : i32
    %c0_i32_1 = arith.constant 0 : i32
    return %c0_i32, %c0_i32_0 : i32, i32
  }
  func.func @transform_2(%arg0: i32) -> (i32, i32) {
    %c0_i32 = arith.constant 0 : i32
    %c0_i32_0 = arith.constant 0 : i32
    return %arg0, %c0_i32 : i32, i32
  }
  func.func @transform_3(%arg0: i32) -> (i32, i32) {
    %c0_i32 = arith.constant 0 : i32
    %c0_i32_0 = arith.constant 0 : i32
    return %arg0, %c0_i32 : i32, i32
  }
}

module attributes {stable_mosaic.version = 11 : i64} {
  func.func @_conv_bias_act_kernel(%arg0: i32, %arg1: memref<16x128xbf16, #tpu.memory_space<vmem>>, %arg2: memref<128x128xbf16, #tpu.memory_space<vmem>>, %arg3: memref<1x128xf32, #tpu.memory_space<vmem>>, %arg4: memref<16x128xf32, #tpu.memory_space<vmem>>) attributes {dimension_semantics = [#tpu.dimension_semantics<parallel>], iteration_bounds = array<i64: 2>, scalar_prefetch = 0 : i64, scratch_operands = 0 : i64, tpu.core_type = #tpu.core_type<tc>, window_params = [{transform_indices = @transform_0, window_bounds = array<i64: 16, 128>}, {pipeline_mode = #tpu.pipeline_mode<synchronous>, transform_indices = @transform_1, window_bounds = array<i64: 128, 128>}, {pipeline_mode = #tpu.pipeline_mode<synchronous>, transform_indices = @transform_2, window_bounds = array<i64: 1, 128>}, {transform_indices = @transform_3, window_bounds = array<i64: 16, 128>}]} {
    %c0 = arith.constant 0 : index
    %c0_0 = arith.constant 0 : index
    %0 = vector.load %arg1[%c0, %c0_0] : memref<16x128xbf16, #tpu.memory_space<vmem>>, vector<16x128xbf16>
    %c0_1 = arith.constant 0 : index
    %c0_2 = arith.constant 0 : index
    %1 = vector.load %arg2[%c0_1, %c0_2] : memref<128x128xbf16, #tpu.memory_space<vmem>>, vector<128x128xbf16>
    %cst = arith.constant dense<0.000000e+00> : vector<16x128xf32>
    %2 = tpu.matmul %0, %1, %cst {dimension_numbers = #tpu.dot_dimension_numbers<[1], [0], [0], [1], [0, 0, 1, 1], [], []>} : vector<16x128xbf16>, vector<128x128xbf16>, vector<16x128xf32> -> vector<16x128xf32>
    %c0_3 = arith.constant 0 : index
    %c0_4 = arith.constant 0 : index
    %3 = vector.load %arg3[%c0_3, %c0_4] : memref<1x128xf32, #tpu.memory_space<vmem>>, vector<1x128xf32>
    %4 = vector.broadcast %3 : vector<1x128xf32> to vector<16x128xf32>
    %5 = arith.addf %2, %4 : vector<16x128xf32>
    %c0_5 = arith.constant 0 : index
    %c0_6 = arith.constant 0 : index
    %6 = vector.load %arg4[%c0_5, %c0_6] : memref<16x128xf32, #tpu.memory_space<vmem>>, vector<16x128xf32>
    tpu.vector_store %arg4[%c0_5, %c0_6], %5 {strides = array<i32>} : memref<16x128xf32, #tpu.memory_space<vmem>>, vector<16x128xf32>,
    return
  }
  func.func @transform_0(%arg0: i32) -> (i32, i32) {
    %c0_i32 = arith.constant 0 : i32
    %c0_i32_0 = arith.constant 0 : i32
    return %arg0, %c0_i32 : i32, i32
  }
  func.func @transform_1(%arg0: i32) -> (i32, i32) {
    %c0_i32 = arith.constant 0 : i32
    %c0_i32_0 = arith.constant 0 : i32
    %c0_i32_1 = arith.constant 0 : i32
    return %c0_i32, %c0_i32_0 : i32, i32
  }
  func.func @transform_2(%arg0: i32) -> (i32, i32) {
    %c0_i32 = arith.constant 0 : i32
    %c0_i32_0 = arith.constant 0 : i32
    %c0_i32_1 = arith.constant 0 : i32
    return %c0_i32, %c0_i32_0 : i32, i32
  }
  func.func @transform_3(%arg0: i32) -> (i32, i32) {
    %c0_i32 = arith.constant 0 : i32
    %c0_i32_0 = arith.constant 0 : i32
    return %arg0, %c0_i32 : i32, i32
  }
}

</mosaic_0001>

<llo_original>
// kernel: _lambda_.8
$region0: #{_lambda_.8}
  #allocation0 [shape = 'u32[]', space=smem, size = 0x4, offset = 0x4, fixed_abs, tag = 'smem constant byte address 0x4 - core index']
  #allocation1 [shape = 'u32[144,128]{1,0:T(1,128)}', space=vmem, size = 0x12000, scoped, tag = 'internal scratch']
  %s0 = inlined_call_operand.vmem [shape: bf16[192,128], index: 0, kind: input, shape index: {}]
  %s1 = inlined_call_operand.vmem [shape: bf16[128,128], index: 1, kind: input, shape index: {}]
  %s2 = inlined_call_operand.vmem [shape: f32[1,128], index: 2, kind: input, shape index: {}]
  %s3 = inlined_call_operand.vmem [shape: bf16[192,128], index: 3, kind: output, shape index: {}]
  %s4 = sld [smem:[#allocation0]]
  $region45: #{_lambda_.8} parent=0
    _
  %s6 = ssub.s32 1, %s4
  %s7 = scalar_select 0, %s6, %s4
  loop: start=0, step=1, limit=4
  $region2: #{_lambda_.8} parent=0 // loop_pre_header
    _
  $region3: #{_lambda_.8} parent=0 // loop_header
    %s9 = sphi 0, %s13
    %p10 = scmp.ge.s32.totalorder %s9, 4
    %s19 = sphi 0, %s21
    %s22 = sphi 0, %s19
    %s23 = sphi 0, %s22
    %s39 = sphi 0, %s23
    %s43 = sphi 0, %s43
    %s45 = sphi 0, %s43
    %s46 = sphi 0, %s45
    %s60 = sphi 0, %s46
    %s64 = sphi 0, %s64
    %s66 = sphi 0, %s64
    %s67 = sphi 0, %s66
    %s81 = sphi 0, %s67
    %s87 = sphi 0, %s89
    %s90 = sphi 0, %s87
    %s91 = sphi 0, %s90
    %s107 = sphi 0, %s91
  $region4: #{_lambda_.8} parent=0 // loop_header_branch
    %12 = sbr.rel (%p10) target = $region8
  $region5: #{_lambda_.8} parent=0 // loop_body
    %s14 = ssub.s32 %s9, 1
    %s15 = ssub.s32 %s9, 2
    %s16 = sadd.s32 %s9, 1
    %s17 = ssub.s32 %s9, %s16
    %p18 = scmp.eq.s32.totalorder %s17, 0
    %s20 = sadd.s32 %s19, 1
    %s21 = scalar_select %p18, %s19, %s20
    %p24 = pneg %p18
    %p25 = scmp.eq.s32.totalorder %s9, 1
    %p26 = por %p24, %p25
    %p27 = scmp.ne.s32.totalorder %s19, %s22
    %p28 = scmp.eq.s32.totalorder %s9, 0
    %p29 = por %p27, %p28
    %p30 = scmp.ne.s32.totalorder %s19, %s22
    %p31 = scmp.eq.s32.totalorder %s14, 1
    %p32 = por %p30, %p31
    %p33 = scmp.ne.s32.totalorder %s22, %s23
    %p34 = scmp.eq.s32.totalorder %s14, 0
    %p35 = por %p33, %p34
    %p36 = scmp.ne.s32.totalorder %s22, %s23
    %p37 = scmp.eq.s32.totalorder %s15, 1
    %p38 = por %p36, %p37
    %p40 = scmp.ne.s32.totalorder %s23, %s39
    %p41 = scmp.eq.s32.totalorder %s15, 0
    %p42 = por %p40, %p41
    %s44 = sadd.s32 %s43, 1
    %p47 = scmp.eq.s32.totalorder %s9, 1
    %p48 = scmp.ne.s32.totalorder %s43, %s45
    %p49 = scmp.eq.s32.totalorder %s9, 0
    %p50 = por %p48, %p49
    %p51 = scmp.ne.s32.totalorder %s43, %s45
    %p52 = scmp.eq.s32.totalorder %s14, 1
    %p53 = por %p51, %p52
    %p54 = scmp.ne.s32.totalorder %s45, %s46
    %p55 = scmp.eq.s32.totalorder %s14, 0
    %p56 = por %p54, %p55
    %p57 = scmp.ne.s32.totalorder %s45, %s46
    %p58 = scmp.eq.s32.totalorder %s15, 1
    %p59 = por %p57, %p58
    %p61 = scmp.ne.s32.totalorder %s46, %s60
    %p62 = scmp.eq.s32.totalorder %s15, 0
    %p63 = por %p61, %p62
    %s65 = sadd.s32 %s64, 1
    %p68 = scmp.eq.s32.totalorder %s9, 1
    %p69 = scmp.ne.s32.totalorder %s64, %s66
    %p70 = scmp.eq.s32.totalorder %s9, 0
    %p71 = por %p69, %p70
    %p72 = scmp.ne.s32.totalorder %s64, %s66
    %p73 = scmp.eq.s32.totalorder %s14, 1
    %p74 = por %p72, %p73
    %p75 = scmp.ne.s32.totalorder %s66, %s67
    %p76 = scmp.eq.s32.totalorder %s14, 0
    %p77 = por %p75, %p76
    %p78 = scmp.ne.s32.totalorder %s66, %s67
    %p79 = scmp.eq.s32.totalorder %s15, 1
    %p80 = por %p78, %p79
    %p82 = scmp.ne.s32.totalorder %s67, %s81
    %p83 = scmp.eq.s32.totalorder %s15, 0
    %p84 = por %p82, %p83
    %s85 = ssub.s32 %s9, %s16
    %p86 = scmp.eq.s32.totalorder %s85, 0
    %s88 = sadd.s32 %s87, 1
    %s89 = scalar_select %p86, %s87, %s88
    %p92 = pneg %p86
    %p93 = scmp.eq.s32.totalorder %s9, 1
    %p94 = por %p92, %p93
    %p95 = scmp.ne.s32.totalorder %s87, %s90
    %p96 = scmp.eq.s32.totalorder %s9, 0
    %p97 = por %p95, %p96
    %p98 = scmp.ne.s32.totalorder %s87, %s90
    %p99 = scmp.eq.s32.totalorder %s14, 1
    %p100 = por %p98, %p99
    %p101 = scmp.ne.s32.totalorder %s90, %s91
    %p102 = scmp.eq.s32.totalorder %s14, 0
    %p103 = por %p101, %p102
    %p104 = scmp.ne.s32.totalorder %s90, %s91
    %p105 = scmp.eq.s32.totalorder %s15, 1
    %p106 = por %p104, %p105
    %p108 = scmp.ne.s32.totalorder %s91, %s107
    %p109 = scmp.eq.s32.totalorder %s15, 0
    %p110 = por %p108, %p109
    %p111 = scmp.le.s32.totalorder 1, %s9
    %p112 = scmp.lt.s32.totalorder %s9, 3
    %p113 = pnand %p111, %p112
    %p114 = pneg %p113
    // Predicated region
    $region9: #{_lambda_.8} parent=5 // pred_check
      _
    $region10: #{_lambda_.8} parent=5 // pred_check_branch
      %116 = sbr.rel (%p113) target = $region12
    $region11: #{_lambda_.8} parent=5 // pred_region
      %s117 = ssub.s32 %s9, 1
      // Predicated region
      $region13: #{_lambda_.8} parent=11 // pred_check
        %p118 = pneg %p56
      $region14: #{_lambda_.8} parent=11 // pred_check_branch
        %120 = sbr.rel (%p118) target = $region16
      $region15: #{_lambda_.8} parent=11 // pred_region
        _
      $region16: #{_lambda_.8} parent=11 // pred_fallthru
        _
      // Predicated region
      $region17: #{_lambda_.8} parent=11 // pred_check
        %p121 = pneg %p77
      $region18: #{_lambda_.8} parent=11 // pred_check_branch
        %123 = sbr.rel (%p121) target = $region20
      $region19: #{_lambda_.8} parent=11 // pred_region
        _
      $region20: #{_lambda_.8} parent=11 // pred_fallthru
        _
    $region12: #{_lambda_.8} parent=5 // pred_fallthru
      _
    %p124 = scmp.lt.s32.totalorder %s9, 2
    // Predicated region
    $region21: #{_lambda_.8} parent=5 // pred_check
      %p125 = pneg %p124
    $region22: #{_lambda_.8} parent=5 // pred_check_branch
      %127 = sbr.rel (%p125) target = $region24
    $region23: #{_lambda_.8} parent=5 // pred_region
      // Predicated region
      $region25: #{_lambda_.8} parent=23 // pred_check
        %p128 = pneg %p29
      $region26: #{_lambda_.8} parent=23 // pred_check_branch
        %130 = sbr.rel (%p128) target = $region28
      $region27: #{_lambda_.8} parent=23 // pred_region
        %s131 = smul.u32 12, %s9
        %p132 = scmp.lt.s32.totalorder %s131, 23
        %s133 = scalar_select %p132, %s131, 23
        %s134 = smul.addr %s133, 4
        %s135 = scalar_lea.vmem %s0, %s134
        %s136 = smul.u32 12, %s9
      $region28: #{_lambda_.8} parent=23 // pred_fallthru
        _
    $region24: #{_lambda_.8} parent=5 // pred_fallthru
      _
    %p137 = scmp.le.s32.totalorder 1, %s9
    %p138 = scmp.lt.s32.totalorder %s9, 3
    %p139 = pnand %p137, %p138
    %p140 = pneg %p139
    // Predicated region
    $region29: #{_lambda_.8} parent=5 // pred_check
      _
    $region30: #{_lambda_.8} parent=5 // pred_check_branch
      %142 = sbr.rel (%p139) target = $region32
    $region31: #{_lambda_.8} parent=5 // pred_region
      %s143 = ssub.s32 %s9, 1
      %s144 = smul.u32 12, %s14
      %p145 = scmp.lt.s32.totalorder %s144, 23
      %s146 = scalar_select %p145, %s144, 23
      %s147 = smul.addr %s146, 4
      %s148 = scalar_lea.vmem %s0, %s147
      %p149 = pneg %p35
      %p150 = pneg %p32
      %p151 = pneg %p56
      %p152 = pneg %p53
      %p153 = pneg %p77
      %p154 = pneg %p74
      %p155 = pneg %p103
      %p156 = pneg %p100
      %s157 = smul.u32 12, %s14
      %p158 = scmp.lt.s32.totalorder %s157, 23
      %s159 = scalar_select %p158, %s157, 23
      %s160 = smul.addr %s159, 4
      %s161 = scalar_lea.vmem %s3, %s160
      %s162 = smul.u32 12, %s14
      %p163 = scmp.lt.s32.totalorder %s162, 23
      %s164 = scalar_select %p163, %s162, 23
      %s165 = smul.addr %s164, 4
      %s166 = scalar_lea.vmem %s0, %s165
      %s167 = smul.u32 12, %s14
      %s168 = smul.u32 12, %s14
      %p169 = scmp.lt.s32.totalorder %s168, 23
      %s170 = scalar_select %p169, %s168, 23
      %s171 = smul.addr %s170, 4
      %s172 = scalar_lea.vmem %s3, %s171
      %s173 = smul.u32 12, %s14
      %v175 = vld [vmem:[%s166] sm:$0xf]
      %v176 = vld [vmem:[%s166 + $0x4] sm:$0xf]
      %v177 = vld [vmem:[%s166 + $0x8] sm:$0xf]
      %v178 = vld [vmem:[%s166 + $0xc] sm:$0xf]
      %v179 = vld [vmem:[%s166 + $0x10] sm:$0xf]
      %v180 = vld [vmem:[%s166 + $0x14] sm:$0xf]
      %v181 = vld [vmem:[%s166 + $0x18] sm:$0xf]
      %v182 = vld [vmem:[%s166 + $0x1c] sm:$0xf]
      %v183 = vld [vmem:[%s166 + $0x20] sm:$0xf]
      %v184 = vld [vmem:[%s166 + $0x24] sm:$0xf]
      %v185 = vld [vmem:[%s166 + $0x28] sm:$0xf]
      %v186 = vld [vmem:[%s166 + $0x2c] sm:$0xf]
      %v187 = vld [vmem:[%s1] sm:$0xf]
      %v188 = vld [vmem:[%s1 + $0x4] sm:$0xf]
      %v189 = vld [vmem:[%s1 + $0x8] sm:$0xf]
      %v190 = vld [vmem:[%s1 + $0xc] sm:$0xf]
      %v191 = vld [vmem:[%s1 + $0x10] sm:$0xf]
      %v192 = vld [vmem:[%s1 + $0x14] sm:$0xf]
      %v193 = vld [vmem:[%s1 + $0x18] sm:$0xf]
      %v194 = vld [vmem:[%s1 + $0x1c] sm:$0xf]
      %v195 = vld [vmem:[%s1 + $0x20] sm:$0xf]
      %v196 = vld [vmem:[%s1 + $0x24] sm:$0xf]
      %v197 = vld [vmem:[%s1 + $0x28] sm:$0xf]
      %v198 = vld [vmem:[%s1 + $0x2c] sm:$0xf]
      %v199 = vld [vmem:[%s1 + $0x30] sm:$0xf]
      %v200 = vld [vmem:[%s1 + $0x34] sm:$0xf]
      %v201 = vld [vmem:[%s1 + $0x38] sm:$0xf]
      %v202 = vld [vmem:[%s1 + $0x3c] sm:$0xf]
      %v203 = vld [vmem:[%s2] sm:$0x1]
      %v205 = vlaneseq
      %v206 = vshrl.u32 %v205, 7
      %v207 = vsub.s32 0, %v206
      %v208 = vrot.slane %v203, %v207
      %v222 = vunpack.c.l.b16 %v175
      %v223 = vunpack.c.l.b16 %v176
      %v224 = vunpack.c.l.b16 %v177
      %v225 = vunpack.c.l.b16 %v178
      %v226 = vunpack.c.l.b16 %v179
      %v227 = vunpack.c.l.b16 %v180
      %v228 = vunpack.c.l.b16 %v181
      %v229 = vunpack.c.l.b16 %v182
      %v230 = vunpack.c.l.b16 %v183
      %v231 = vunpack.c.l.b16 %v184
      %v232 = vunpack.c.l.b16 %v185
      %v233 = vunpack.c.l.b16 %v186
      %v234 = vpack.c.b16 %v223, %v222
      %v235 = vpack.c.b16 %v225, %v224
      %v236 = vpack.c.b16 %v227, %v226
      %v237 = vpack.c.b16 %v229, %v228
      %v238 = vpack.c.b16 %v231, %v230
      %v239 = vpack.c.b16 %v233, %v232
      %v262 = vunpack.c.l.b16 %v187
      %v263 = vunpack.c.l.b16 %v188
      %v264 = vunpack.c.l.b16 %v189
      %v265 = vunpack.c.l.b16 %v190
      %v266 = vunpack.c.l.b16 %v191
      %v267 = vunpack.c.l.b16 %v192
      %v268 = vunpack.c.l.b16 %v193
      %v269 = vunpack.c.l.b16 %v194
      %v270 = vunpack.c.l.b16 %v195
      %v271 = vunpack.c.l.b16 %v196
      %v272 = vunpack.c.l.b16 %v197
      %v273 = vunpack.c.l.b16 %v198
      %v274 = vunpack.c.l.b16 %v199
      %v275 = vunpack.c.l.b16 %v200
      %v276 = vunpack.c.l.b16 %v201
      %v277 = vunpack.c.l.b16 %v202
      %v278 = vpack.c.b16 %v263, %v262
      %v279 = vpack.c.b16 %v265, %v264
      %v280 = vpack.c.b16 %v267, %v266
      %v281 = vpack.c.b16 %v269, %v268
      %v282 = vpack.c.b16 %v271, %v270
      %v283 = vpack.c.b16 %v273, %v272
      %v284 = vpack.c.b16 %v275, %v274
      %v285 = vpack.c.b16 %v277, %v276
      %294 = vmatprep.subr.bf16.mxu0 0
      %295 = vmatpush1.bf16.msra.mxu0 %v278
      %296 = vmatprep.subr.bf16.mxu0 0
      %297 = vmatpush1.bf16.msra.mxu0 %v279
      %298 = vmatprep.subr.bf16.mxu0 0
      %299 = vmatpush1.bf16.msra.mxu0 %v280
      %300 = vmatprep.subr.bf16.mxu0 0
      %301 = vmatpush1.bf16.msra.mxu0 %v281
      %302 = vmatprep.subr.bf16.mxu0 0
      %303 = vmatpush1.bf16.msra.mxu0 %v282
      %304 = vmatprep.subr.bf16.mxu0 0
      %305 = vmatpush1.bf16.msra.mxu0 %v283
      %306 = vmatprep.subr.bf16.mxu0 0
      %307 = vmatpush1.bf16.msra.mxu0 %v284
      %308 = vmatprep.subr.bf16.mxu0 0
      %309 = vmatpush1.bf16.msra.mxu0 %v285
      %310 = vmatprep.subr.bf16.mxu0 0
      %311 = vmatpush1.bf16.msra.mxu0 0
      %312 = vmatprep.subr.bf16.mxu0 0
      %313 = vmatpush1.bf16.msra.mxu0 0
      %314 = vmatprep.subr.bf16.mxu0 0
      %315 = vmatpush1.bf16.msra.mxu0 0
      %316 = vmatprep.subr.bf16.mxu0 0
      %317 = vmatpush1.bf16.msra.mxu0 0
      %318 = vmatprep.subr.bf16.mxu0 0
      %319 = vmatpush1.bf16.msra.mxu0 0
      %320 = vmatprep.subr.bf16.mxu0 0
      %321 = vmatpush1.bf16.msra.mxu0 0
      %322 = vmatprep.subr.bf16.mxu0 0
      %323 = vmatpush1.bf16.msra.mxu0 0
      %324 = vmatprep.subr.bf16.mxu0 0
      %325 = vmatpush1.bf16.msra.mxu0 0
      %326 = vmatprep.mubr.bf16.mxu0 0
      %327 = vmatmul.mubr.bf16.gmra.mrb[0].mxu0 %v234
      %v328 = vpop.f32.mrb[0].mxu0
      %v329 = vadd.f32 %v208, %v328
      %v330 = vpop.f32.mrb[0].mxu0
      %v331 = vpop.f32.mrb[0].mxu0
      %v332 = vadd.f32 %v208, %v331
      %v333 = vpop.f32.mrb[0].mxu0
      %334 = vmatprep.mubr.bf16.mxu0 0
      %335 = vmatmul.mubr.bf16.gmra.mrb[0].mxu0 %v235
      %v336 = vpop.f32.mrb[0].mxu0
      %v337 = vadd.f32 %v208, %v336
      %v338 = vpop.f32.mrb[0].mxu0
      %v339 = vpop.f32.mrb[0].mxu0
      %v340 = vadd.f32 %v208, %v339
      %v341 = vpop.f32.mrb[0].mxu0
      %342 = vmatprep.mubr.bf16.mxu0 0
      %343 = vmatmul.mubr.bf16.gmra.mrb[0].mxu0 %v236
      %v344 = vpop.f32.mrb[0].mxu0
      %v345 = vadd.f32 %v208, %v344
      %v346 = vpop.f32.mrb[0].mxu0
      %v347 = vpop.f32.mrb[0].mxu0
      %v348 = vadd.f32 %v208, %v347
      %v349 = vpop.f32.mrb[0].mxu0
      %350 = vmatprep.mubr.bf16.mxu0 0
      %351 = vmatmul.mubr.bf16.gmra.mrb[0].mxu0 %v237
      %v352 = vpop.f32.mrb[0].mxu0
      %v353 = vadd.f32 %v208, %v352
      %v354 = vpop.f32.mrb[0].mxu0
      %v355 = vpop.f32.mrb[0].mxu0
      %v356 = vadd.f32 %v208, %v355
      %v357 = vpop.f32.mrb[0].mxu0
      %358 = vmatprep.mubr.bf16.mxu0 0
      %359 = vmatmul.mubr.bf16.gmra.mrb[0].mxu0 %v238
      %v360 = vpop.f32.mrb[0].mxu0
      %v361 = vadd.f32 %v208, %v360
      %v362 = vpop.f32.mrb[0].mxu0
      %v363 = vpop.f32.mrb[0].mxu0
      %v364 = vadd.f32 %v208, %v363
      %v365 = vpop.f32.mrb[0].mxu0
      %366 = vmatprep.mubr.bf16.mxu0 0
      %367 = vmatmul.mubr.bf16.gmra.mrb[0].mxu0 %v239
      %v368 = vpop.f32.mrb[0].mxu0
      %v369 = vadd.f32 %v208, %v368
      %v370 = vpop.f32.mrb[0].mxu0
      %v371 = vpop.f32.mrb[0].mxu0
      %v372 = vadd.f32 %v208, %v371
      %v373 = vpop.f32.mrb[0].mxu0
      %374 = vdwg.mxu0
      %vm375 = vcmp.ge.f32.partialorder %v329, 0.0
      %vm376 = vcmp.ge.f32.partialorder %v332, 0.0
      %vm377 = vcmp.ge.f32.partialorder %v337, 0.0
      %vm378 = vcmp.ge.f32.partialorder %v340, 0.0
      %vm379 = vcmp.ge.f32.partialorder %v345, 0.0
      %vm380 = vcmp.ge.f32.partialorder %v348, 0.0
      %vm381 = vcmp.ge.f32.partialorder %v353, 0.0
      %vm382 = vcmp.ge.f32.partialorder %v356, 0.0
      %vm383 = vcmp.ge.f32.partialorder %v361, 0.0
      %vm384 = vcmp.ge.f32.partialorder %v364, 0.0
      %vm385 = vcmp.ge.f32.partialorder %v369, 0.0
      %vm386 = vcmp.ge.f32.partialorder %v372, 0.0
      %v387 = vmul.f32 %v329, 0.2
      %v388 = vmul.f32 %v332, 0.2
      %v389 = vmul.f32 %v337, 0.2
      %v390 = vmul.f32 %v340, 0.2
      %v391 = vmul.f32 %v345, 0.2
      %v392 = vmul.f32 %v348, 0.2
      %v393 = vmul.f32 %v353, 0.2
      %v394 = vmul.f32 %v356, 0.2
      %v395 = vmul.f32 %v361, 0.2
      %v396 = vmul.f32 %v364, 0.2
      %v397 = vmul.f32 %v369, 0.2
      %v398 = vmul.f32 %v372, 0.2
      %v399 = vsel %vm375, %v329, %v387
      %v400 = vsel %vm376, %v332, %v388
      %v401 = vsel %vm377, %v337, %v389
      %v402 = vsel %vm378, %v340, %v390
      %v403 = vsel %vm379, %v345, %v391
      %v404 = vsel %vm380, %v348, %v392
      %v405 = vsel %vm381, %v353, %v393
      %v406 = vsel %vm382, %v356, %v394
      %v407 = vsel %vm383, %v361, %v395
      %v408 = vsel %vm384, %v364, %v396
      %v409 = vsel %vm385, %v369, %v397
      %v410 = vsel %vm386, %v372, %v398
      %v411 = vpack.c.bf16 %v400, %v399
      %v412 = vpack.c.bf16 %v402, %v401
      %v413 = vpack.c.bf16 %v404, %v403
      %v414 = vpack.c.bf16 %v406, %v405
      %v415 = vpack.c.bf16 %v408, %v407
      %v416 = vpack.c.bf16 %v410, %v409
      %v423 = vunpack.c.l.b16 %v411
      %v424 = vunpack.c.h.b16 %v411
      %v425 = vunpack.c.l.b16 %v412
      %v426 = vunpack.c.h.b16 %v412
      %v427 = vunpack.c.l.b16 %v413
      %v428 = vunpack.c.h.b16 %v413
      %v429 = vunpack.c.l.b16 %v414
      %v430 = vunpack.c.h.b16 %v414
      %v431 = vunpack.c.l.b16 %v415
      %v432 = vunpack.c.h.b16 %v415
      %v433 = vunpack.c.l.b16 %v416
      %v434 = vunpack.c.h.b16 %v416
      %v435 = vpack.c.b16 %v423, %v423
      %v436 = vpack.c.b16 %v424, %v424
      %v437 = vpack.c.b16 %v425, %v425
      %v438 = vpack.c.b16 %v426, %v426
      %v439 = vpack.c.b16 %v427, %v427
      %v440 = vpack.c.b16 %v428, %v428
      %v441 = vpack.c.b16 %v429, %v429
      %v442 = vpack.c.b16 %v430, %v430
      %v443 = vpack.c.b16 %v431, %v431
      %v444 = vpack.c.b16 %v432, %v432
      %v445 = vpack.c.b16 %v433, %v433
      %v446 = vpack.c.b16 %v434, %v434
      %459 = vst [vmem:[%s172] sm:$0xf] %v435
      %460 = vst [vmem:[%s172 + $0x4] sm:$0xf] %v436
      %461 = vst [vmem:[%s172 + $0x8] sm:$0xf] %v437
      %462 = vst [vmem:[%s172 + $0xc] sm:$0xf] %v438
      %463 = vst [vmem:[%s172 + $0x10] sm:$0xf] %v439
      %464 = vst [vmem:[%s172 + $0x14] sm:$0xf] %v440
      %465 = vst [vmem:[%s172 + $0x18] sm:$0xf] %v441
      %466 = vst [vmem:[%s172 + $0x1c] sm:$0xf] %v442
      %467 = vst [vmem:[%s172 + $0x20] sm:$0xf] %v443
      %468 = vst [vmem:[%s172 + $0x24] sm:$0xf] %v444
      %469 = vst [vmem:[%s172 + $0x28] sm:$0xf] %v445
      %470 = vst [vmem:[%s172 + $0x2c] sm:$0xf] %v446
      %s471 = smul.u32 12, %s14
      %p472 = scmp.lt.s32.totalorder %s471, 23
      %s473 = scalar_select %p472, %s471, 23
      %s474 = smul.addr %s473, 4
      %s475 = scalar_lea.vmem %s3, %s474
      // Predicated region
      $region33: #{_lambda_.8} parent=31 // pred_check
        %p476 = pneg %p100
      $region34: #{_lambda_.8} parent=31 // pred_check_branch
        %478 = sbr.rel (%p476) target = $region36
      $region35: #{_lambda_.8} parent=31 // pred_region
        %s479 = smul.u32 12, %s14
      $region36: #{_lambda_.8} parent=31 // pred_fallthru
        _
    $region32: #{_lambda_.8} parent=5 // pred_fallthru
      _
    %p480 = scmp.le.s32.totalorder 2, %s9
    // Predicated region
    $region37: #{_lambda_.8} parent=5 // pred_check
      %p481 = pneg %p480
    $region38: #{_lambda_.8} parent=5 // pred_check_branch
      %483 = sbr.rel (%p481) target = $region40
    $region39: #{_lambda_.8} parent=5 // pred_region
      %s484 = ssub.s32 %s9, 2
      // Predicated region
      $region41: #{_lambda_.8} parent=39 // pred_check
        %p485 = pneg %p106
      $region42: #{_lambda_.8} parent=39 // pred_check_branch
        %487 = sbr.rel (%p485) target = $region44
      $region43: #{_lambda_.8} parent=39 // pred_region
        %s488 = smul.u32 12, %s15
        %p489 = scmp.lt.s32.totalorder %s488, 23
        %s490 = scalar_select %p489, %s488, 23
        %s491 = smul.addr %s490, 4
        %s492 = scalar_lea.vmem %s3, %s491
      $region44: #{_lambda_.8} parent=39 // pred_fallthru
        _
    $region40: #{_lambda_.8} parent=5 // pred_fallthru
      _
  $region6: #{_lambda_.8} parent=0 // loop_footer
    %s13 = sadd.s32 1, %s9
  $region7: #{_lambda_.8} parent=0 // loop_footer_branch
    %8 = sbr.rel target = $region3
  $region8: #{_lambda_.8} parent=0 // loop_exit
    _

// kernel: _lambda_.10
$region0: #{_lambda_.10}
  #allocation0 [shape = 'u32[]', space=smem, size = 0x4, offset = 0x4, fixed_abs, tag = 'smem constant byte address 0x4 - core index']
  #allocation1 [shape = 'u32[144,128]{1,0:T(1,128)}', space=vmem, size = 0x12000, scoped, tag = 'internal scratch']
  %s0 = inlined_call_operand.vmem [shape: bf16[64,128], index: 0, kind: input, shape index: {}, may-alias: {0,3}]
  %s1 = inlined_call_operand.vmem [shape: f32[1,128], index: 1, kind: input, shape index: {}]
  %s2 = inlined_call_operand.vmem [shape: f32[1,128], index: 2, kind: input, shape index: {}]
  %s3 = inlined_call_operand.vmem [shape: bf16[64,128], index: 3, kind: output, shape index: {}, may-alias: {0,3}]
  %s4 = sld [smem:[#allocation0]]
  $region45: #{_lambda_.10} parent=0
    _
  %s6 = ssub.s32 1, %s4
  %s7 = scalar_select 0, %s6, %s4
  loop: start=0, step=1, limit=4
  $region2: #{_lambda_.10} parent=0 // loop_pre_header
    _
  $region3: #{_lambda_.10} parent=0 // loop_header
    %s9 = sphi 0, %s13
    %p10 = scmp.ge.s32.totalorder %s9, 4
    %s19 = sphi 0, %s21
    %s22 = sphi 0, %s19
    %s23 = sphi 0, %s22
    %s39 = sphi 0, %s23
    %s43 = sphi 0, %s43
    %s45 = sphi 0, %s43
    %s46 = sphi 0, %s45
    %s60 = sphi 0, %s46
    %s64 = sphi 0, %s64
    %s66 = sphi 0, %s64
    %s67 = sphi 0, %s66
    %s81 = sphi 0, %s67
    %s87 = sphi 0, %s89
    %s90 = sphi 0, %s87
    %s91 = sphi 0, %s90
    %s107 = sphi 0, %s91
  $region4: #{_lambda_.10} parent=0 // loop_header_branch
    %12 = sbr.rel (%p10) target = $region8
  $region5: #{_lambda_.10} parent=0 // loop_body
    %s14 = ssub.s32 %s9, 1
    %s15 = ssub.s32 %s9, 2
    %s16 = sadd.s32 %s9, 1
    %s17 = ssub.s32 %s9, %s16
    %p18 = scmp.eq.s32.totalorder %s17, 0
    %s20 = sadd.s32 %s19, 1
    %s21 = scalar_select %p18, %s19, %s20
    %p24 = pneg %p18
    %p25 = scmp.eq.s32.totalorder %s9, 1
    %p26 = por %p24, %p25
    %p27 = scmp.ne.s32.totalorder %s19, %s22
    %p28 = scmp.eq.s32.totalorder %s9, 0
    %p29 = por %p27, %p28
    %p30 = scmp.ne.s32.totalorder %s19, %s22
    %p31 = scmp.eq.s32.totalorder %s14, 1
    %p32 = por %p30, %p31
    %p33 = scmp.ne.s32.totalorder %s22, %s23
    %p34 = scmp.eq.s32.totalorder %s14, 0
    %p35 = por %p33, %p34
    %p36 = scmp.ne.s32.totalorder %s22, %s23
    %p37 = scmp.eq.s32.totalorder %s15, 1
    %p38 = por %p36, %p37
    %p40 = scmp.ne.s32.totalorder %s23, %s39
    %p41 = scmp.eq.s32.totalorder %s15, 0
    %p42 = por %p40, %p41
    %s44 = sadd.s32 %s43, 1
    %p47 = scmp.eq.s32.totalorder %s9, 1
    %p48 = scmp.ne.s32.totalorder %s43, %s45
    %p49 = scmp.eq.s32.totalorder %s9, 0
    %p50 = por %p48, %p49
    %p51 = scmp.ne.s32.totalorder %s43, %s45
    %p52 = scmp.eq.s32.totalorder %s14, 1
    %p53 = por %p51, %p52
    %p54 = scmp.ne.s32.totalorder %s45, %s46
    %p55 = scmp.eq.s32.totalorder %s14, 0
    %p56 = por %p54, %p55
    %p57 = scmp.ne.s32.totalorder %s45, %s46
    %p58 = scmp.eq.s32.totalorder %s15, 1
    %p59 = por %p57, %p58
    %p61 = scmp.ne.s32.totalorder %s46, %s60
    %p62 = scmp.eq.s32.totalorder %s15, 0
    %p63 = por %p61, %p62
    %s65 = sadd.s32 %s64, 1
    %p68 = scmp.eq.s32.totalorder %s9, 1
    %p69 = scmp.ne.s32.totalorder %s64, %s66
    %p70 = scmp.eq.s32.totalorder %s9, 0
    %p71 = por %p69, %p70
    %p72 = scmp.ne.s32.totalorder %s64, %s66
    %p73 = scmp.eq.s32.totalorder %s14, 1
    %p74 = por %p72, %p73
    %p75 = scmp.ne.s32.totalorder %s66, %s67
    %p76 = scmp.eq.s32.totalorder %s14, 0
    %p77 = por %p75, %p76
    %p78 = scmp.ne.s32.totalorder %s66, %s67
    %p79 = scmp.eq.s32.totalorder %s15, 1
    %p80 = por %p78, %p79
    %p82 = scmp.ne.s32.totalorder %s67, %s81
    %p83 = scmp.eq.s32.totalorder %s15, 0
    %p84 = por %p82, %p83
    %s85 = ssub.s32 %s9, %s16
    %p86 = scmp.eq.s32.totalorder %s85, 0
    %s88 = sadd.s32 %s87, 1
    %s89 = scalar_select %p86, %s87, %s88
    %p92 = pneg %p86
    %p93 = scmp.eq.s32.totalorder %s9, 1
    %p94 = por %p92, %p93
    %p95 = scmp.ne.s32.totalorder %s87, %s90
    %p96 = scmp.eq.s32.totalorder %s9, 0
    %p97 = por %p95, %p96
    %p98 = scmp.ne.s32.totalorder %s87, %s90
    %p99 = scmp.eq.s32.totalorder %s14, 1
    %p100 = por %p98, %p99
    %p101 = scmp.ne.s32.totalorder %s90, %s91
    %p102 = scmp.eq.s32.totalorder %s14, 0
    %p103 = por %p101, %p102
    %p104 = scmp.ne.s32.totalorder %s90, %s91
    %p105 = scmp.eq.s32.totalorder %s15, 1
    %p106 = por %p104, %p105
    %p108 = scmp.ne.s32.totalorder %s91, %s107
    %p109 = scmp.eq.s32.totalorder %s15, 0
    %p110 = por %p108, %p109
    %p111 = scmp.le.s32.totalorder 1, %s9
    %p112 = scmp.lt.s32.totalorder %s9, 3
    %p113 = pnand %p111, %p112
    %p114 = pneg %p113
    // Predicated region
    $region9: #{_lambda_.10} parent=5 // pred_check
      _
    $region10: #{_lambda_.10} parent=5 // pred_check_branch
      %116 = sbr.rel (%p113) target = $region12
    $region11: #{_lambda_.10} parent=5 // pred_region
      %s117 = ssub.s32 %s9, 1
      // Predicated region
      $region13: #{_lambda_.10} parent=11 // pred_check
        %p118 = pneg %p56
      $region14: #{_lambda_.10} parent=11 // pred_check_branch
        %120 = sbr.rel (%p118) target = $region16
      $region15: #{_lambda_.10} parent=11 // pred_region
        _
      $region16: #{_lambda_.10} parent=11 // pred_fallthru
        _
      // Predicated region
      $region17: #{_lambda_.10} parent=11 // pred_check
        %p121 = pneg %p77
      $region18: #{_lambda_.10} parent=11 // pred_check_branch
        %123 = sbr.rel (%p121) target = $region20
      $region19: #{_lambda_.10} parent=11 // pred_region
        _
      $region20: #{_lambda_.10} parent=11 // pred_fallthru
        _
    $region12: #{_lambda_.10} parent=5 // pred_fallthru
      _
    %p124 = scmp.lt.s32.totalorder %s9, 2
    // Predicated region
    $region21: #{_lambda_.10} parent=5 // pred_check
      %p125 = pneg %p124
    $region22: #{_lambda_.10} parent=5 // pred_check_branch
      %127 = sbr.rel (%p125) target = $region24
    $region23: #{_lambda_.10} parent=5 // pred_region
      // Predicated region
      $region25: #{_lambda_.10} parent=23 // pred_check
        %p128 = pneg %p29
      $region26: #{_lambda_.10} parent=23 // pred_check_branch
        %130 = sbr.rel (%p128) target = $region28
      $region27: #{_lambda_.10} parent=23 // pred_region
        %s131 = smul.u32 4, %s9
        %p132 = scmp.lt.s32.totalorder %s131, 7
        %s133 = scalar_select %p132, %s131, 7
        %s134 = smul.addr %s133, 4
        %s135 = scalar_lea.vmem %s0, %s134
        %s136 = smul.u32 4, %s9
      $region28: #{_lambda_.10} parent=23 // pred_fallthru
        _
    $region24: #{_lambda_.10} parent=5 // pred_fallthru
      _
    %p137 = scmp.le.s32.totalorder 1, %s9
    %p138 = scmp.lt.s32.totalorder %s9, 3
    %p139 = pnand %p137, %p138
    %p140 = pneg %p139
    // Predicated region
    $region29: #{_lambda_.10} parent=5 // pred_check
      _
    $region30: #{_lambda_.10} parent=5 // pred_check_branch
      %142 = sbr.rel (%p139) target = $region32
    $region31: #{_lambda_.10} parent=5 // pred_region
      %s143 = ssub.s32 %s9, 1
      %s144 = smul.u32 4, %s14
      %p145 = scmp.lt.s32.totalorder %s144, 7
      %s146 = scalar_select %p145, %s144, 7
      %s147 = smul.addr %s146, 4
      %s148 = scalar_lea.vmem %s0, %s147
      %p149 = pneg %p35
      %p150 = pneg %p32
      %p151 = pneg %p56
      %p152 = pneg %p53
      %p153 = pneg %p77
      %p154 = pneg %p74
      %p155 = pneg %p103
      %p156 = pneg %p100
      %s157 = smul.u32 4, %s14
      %p158 = scmp.lt.s32.totalorder %s157, 7
      %s159 = scalar_select %p158, %s157, 7
      %s160 = smul.addr %s159, 4
      %s161 = scalar_lea.vmem %s3, %s160
      %s162 = smul.u32 4, %s14
      %p163 = scmp.lt.s32.totalorder %s162, 7
      %s164 = scalar_select %p163, %s162, 7
      %s165 = smul.addr %s164, 4
      %s166 = scalar_lea.vmem %s0, %s165
      %s167 = smul.u32 4, %s14
      %s168 = smul.u32 4, %s14
      %p169 = scmp.lt.s32.totalorder %s168, 7
      %s170 = scalar_select %p169, %s168, 7
      %s171 = smul.addr %s170, 4
      %s172 = scalar_lea.vmem %s3, %s171
      %s173 = smul.u32 4, %s14
      %v174 = vld [vmem:[%s166] sm:$0xf]
      %v175 = vld [vmem:[%s166 + $0x4] sm:$0xf]
      %v176 = vld [vmem:[%s166 + $0x8] sm:$0xf]
      %v177 = vld [vmem:[%s166 + $0xc] sm:$0xf]
      %v178 = vunpack.c.l.bf16 %v174
      %v179 = vunpack.c.l.bf16 %v175
      %v180 = vunpack.c.l.bf16 %v176
      %v181 = vunpack.c.l.bf16 %v177
      %v182 = vld [vmem:[%s1] sm:$0x1]
      %v184 = vlaneseq
      %v185 = vshrl.u32 %v184, 7
      %v186 = vsub.s32 0, %v185
      %v187 = vrot.slane %v182, %v186
      %v189 = vmul.f32 %v178, %v187
      %v190 = vmul.f32 %v179, %v187
      %v191 = vmul.f32 %v180, %v187
      %v192 = vmul.f32 %v181, %v187
      %v193 = vld [vmem:[%s2] sm:$0x1]
      %v195 = vlaneseq
      %v196 = vshrl.u32 %v195, 7
      %v197 = vsub.s32 0, %v196
      %v198 = vrot.slane %v193, %v197
      %v200 = vadd.f32 %v189, %v198
      %v201 = vadd.f32 %v190, %v198
      %v202 = vadd.f32 %v191, %v198
      %v203 = vadd.f32 %v192, %v198
      %vm204 = vcmp.ge.f32.partialorder %v200, 0.0
      %vm205 = vcmp.ge.f32.partialorder %v201, 0.0
      %vm206 = vcmp.ge.f32.partialorder %v202, 0.0
      %vm207 = vcmp.ge.f32.partialorder %v203, 0.0
      %v208 = vmul.f32 %v200, 0.2
      %v209 = vmul.f32 %v201, 0.2
      %v210 = vmul.f32 %v202, 0.2
      %v211 = vmul.f32 %v203, 0.2
      %v212 = vsel %vm204, %v200, %v208
      %v213 = vsel %vm205, %v201, %v209
      %v214 = vsel %vm206, %v202, %v210
      %v215 = vsel %vm207, %v203, %v211
      %v216 = vpack.c.bf16 %v213, %v212
      %v217 = vpack.c.bf16 %v215, %v214
      %v220 = vunpack.c.l.b16 %v216
      %v221 = vunpack.c.h.b16 %v216
      %v222 = vunpack.c.l.b16 %v217
      %v223 = vunpack.c.h.b16 %v217
      %v224 = vpack.c.b16 %v220, %v220
      %v225 = vpack.c.b16 %v221, %v221
      %v226 = vpack.c.b16 %v222, %v222
      %v227 = vpack.c.b16 %v223, %v223
      %232 = vst [vmem:[%s172] sm:$0xf] %v224
      %233 = vst [vmem:[%s172 + $0x4] sm:$0xf] %v225
      %234 = vst [vmem:[%s172 + $0x8] sm:$0xf] %v226
      %235 = vst [vmem:[%s172 + $0xc] sm:$0xf] %v227
      %s236 = smul.u32 4, %s14
      %p237 = scmp.lt.s32.totalorder %s236, 7
      %s238 = scalar_select %p237, %s236, 7
      %s239 = smul.addr %s238, 4
      %s240 = scalar_lea.vmem %s3, %s239
      // Predicated region
      $region33: #{_lambda_.10} parent=31 // pred_check
        %p241 = pneg %p100
      $region34: #{_lambda_.10} parent=31 // pred_check_branch
        %243 = sbr.rel (%p241) target = $region36
      $region35: #{_lambda_.10} parent=31 // pred_region
        %s244 = smul.u32 4, %s14
      $region36: #{_lambda_.10} parent=31 // pred_fallthru
        _
    $region32: #{_lambda_.10} parent=5 // pred_fallthru
      _
    %p245 = scmp.le.s32.totalorder 2, %s9
    // Predicated region
    $region37: #{_lambda_.10} parent=5 // pred_check
      %p246 = pneg %p245
    $region38: #{_lambda_.10} parent=5 // pred_check_branch
      %248 = sbr.rel (%p246) target = $region40
    $region39: #{_lambda_.10} parent=5 // pred_region
      %s249 = ssub.s32 %s9, 2
      // Predicated region
      $region41: #{_lambda_.10} parent=39 // pred_check
        %p250 = pneg %p106
      $region42: #{_lambda_.10} parent=39 // pred_check_branch
        %252 = sbr.rel (%p250) target = $region44
      $region43: #{_lambda_.10} parent=39 // pred_region
        %s253 = smul.u32 4, %s15
        %p254 = scmp.lt.s32.totalorder %s253, 7
        %s255 = scalar_select %p254, %s253, 7
        %s256 = smul.addr %s255, 4
        %s257 = scalar_lea.vmem %s3, %s256
      $region44: #{_lambda_.10} parent=39 // pred_fallthru
        _
    $region40: #{_lambda_.10} parent=5 // pred_fallthru
      _
  $region6: #{_lambda_.10} parent=0 // loop_footer
    %s13 = sadd.s32 1, %s9
  $region7: #{_lambda_.10} parent=0 // loop_footer_branch
    %8 = sbr.rel target = $region3
  $region8: #{_lambda_.10} parent=0 // loop_exit
    _

// kernel: _lambda_.9
$region0: #{_lambda_.9}
  #allocation0 [shape = 'u32[]', space=smem, size = 0x4, offset = 0x4, fixed_abs, tag = 'smem constant byte address 0x4 - core index']
  #allocation1 [shape = 'u32[144,128]{1,0:T(1,128)}', space=vmem, size = 0x12000, scoped, tag = 'internal scratch']
  %s0 = inlined_call_operand.vmem [shape: bf16[64,128], index: 0, kind: input, shape index: {}]
  %s1 = inlined_call_operand.vmem [shape: bf16[128,128], index: 1, kind: input, shape index: {}]
  %s2 = inlined_call_operand.vmem [shape: bf16[64,128], index: 2, kind: output, shape index: {0}]
  %s3 = inlined_call_operand.vmem [shape: f32[16,128], index: 3, kind: output, shape index: {1}]
  %4 = xla_tuple %s2, %s3
  %s5 = sld [smem:[#allocation0]]
  $region49: #{_lambda_.9} parent=0
    _
  %s7 = ssub.s32 1, %s5
  %s8 = scalar_select 0, %s7, %s5
  loop: start=0, step=1, limit=4
  $region2: #{_lambda_.9} parent=0 // loop_pre_header
    _
  $region3: #{_lambda_.9} parent=0 // loop_header
    %s10 = sphi 0, %s14
    %p11 = scmp.ge.s32.totalorder %s10, 4
    %s20 = sphi 0, %s22
    %s23 = sphi 0, %s20
    %s24 = sphi 0, %s23
    %s40 = sphi 0, %s24
    %s44 = sphi 0, %s44
    %s46 = sphi 0, %s44
    %s47 = sphi 0, %s46
    %s61 = sphi 0, %s47
    %s67 = sphi 0, %s69
    %s70 = sphi 0, %s67
    %s71 = sphi 0, %s70
    %s87 = sphi 0, %s71
    %s93 = sphi 0, %s95
    %s96 = sphi 0, %s93
    %s97 = sphi 0, %s96
    %s113 = sphi 0, %s97
  $region4: #{_lambda_.9} parent=0 // loop_header_branch
    %13 = sbr.rel (%p11) target = $region8
  $region5: #{_lambda_.9} parent=0 // loop_body
    %s15 = ssub.s32 %s10, 1
    %s16 = ssub.s32 %s10, 2
    %s17 = sadd.s32 %s10, 1
    %s18 = ssub.s32 %s10, %s17
    %p19 = scmp.eq.s32.totalorder %s18, 0
    %s21 = sadd.s32 %s20, 1
    %s22 = scalar_select %p19, %s20, %s21
    %p25 = pneg %p19
    %p26 = scmp.eq.s32.totalorder %s10, 1
    %p27 = por %p25, %p26
    %p28 = scmp.ne.s32.totalorder %s20, %s23
    %p29 = scmp.eq.s32.totalorder %s10, 0
    %p30 = por %p28, %p29
    %p31 = scmp.ne.s32.totalorder %s20, %s23
    %p32 = scmp.eq.s32.totalorder %s15, 1
    %p33 = por %p31, %p32
    %p34 = scmp.ne.s32.totalorder %s23, %s24
    %p35 = scmp.eq.s32.totalorder %s15, 0
    %p36 = por %p34, %p35
    %p37 = scmp.ne.s32.totalorder %s23, %s24
    %p38 = scmp.eq.s32.totalorder %s16, 1
    %p39 = por %p37, %p38
    %p41 = scmp.ne.s32.totalorder %s24, %s40
    %p42 = scmp.eq.s32.totalorder %s16, 0
    %p43 = por %p41, %p42
    %s45 = sadd.s32 %s44, 1
    %p48 = scmp.eq.s32.totalorder %s10, 1
    %p49 = scmp.ne.s32.totalorder %s44, %s46
    %p50 = scmp.eq.s32.totalorder %s10, 0
    %p51 = por %p49, %p50
    %p52 = scmp.ne.s32.totalorder %s44, %s46
    %p53 = scmp.eq.s32.totalorder %s15, 1
    %p54 = por %p52, %p53
    %p55 = scmp.ne.s32.totalorder %s46, %s47
    %p56 = scmp.eq.s32.totalorder %s15, 0
    %p57 = por %p55, %p56
    %p58 = scmp.ne.s32.totalorder %s46, %s47
    %p59 = scmp.eq.s32.totalorder %s16, 1
    %p60 = por %p58, %p59
    %p62 = scmp.ne.s32.totalorder %s47, %s61
    %p63 = scmp.eq.s32.totalorder %s16, 0
    %p64 = por %p62, %p63
    %s65 = ssub.s32 %s10, %s17
    %p66 = scmp.eq.s32.totalorder %s65, 0
    %s68 = sadd.s32 %s67, 1
    %s69 = scalar_select %p66, %s67, %s68
    %p72 = pneg %p66
    %p73 = scmp.eq.s32.totalorder %s10, 1
    %p74 = por %p72, %p73
    %p75 = scmp.ne.s32.totalorder %s67, %s70
    %p76 = scmp.eq.s32.totalorder %s10, 0
    %p77 = por %p75, %p76
    %p78 = scmp.ne.s32.totalorder %s67, %s70
    %p79 = scmp.eq.s32.totalorder %s15, 1
    %p80 = por %p78, %p79
    %p81 = scmp.ne.s32.totalorder %s70, %s71
    %p82 = scmp.eq.s32.totalorder %s15, 0
    %p83 = por %p81, %p82
    %p84 = scmp.ne.s32.totalorder %s70, %s71
    %p85 = scmp.eq.s32.totalorder %s16, 1
    %p86 = por %p84, %p85
    %p88 = scmp.ne.s32.totalorder %s71, %s87
    %p89 = scmp.eq.s32.totalorder %s16, 0
    %p90 = por %p88, %p89
    %s91 = ssub.s32 %s10, %s17
    %p92 = scmp.eq.s32.totalorder %s91, 0
    %s94 = sadd.s32 %s93, 1
    %s95 = scalar_select %p92, %s93, %s94
    %p98 = pneg %p92
    %p99 = scmp.eq.s32.totalorder %s10, 1
    %p100 = por %p98, %p99
    %p101 = scmp.ne.s32.totalorder %s93, %s96
    %p102 = scmp.eq.s32.totalorder %s10, 0
    %p103 = por %p101, %p102
    %p104 = scmp.ne.s32.totalorder %s93, %s96
    %p105 = scmp.eq.s32.totalorder %s15, 1
    %p106 = por %p104, %p105
    %p107 = scmp.ne.s32.totalorder %s96, %s97
    %p108 = scmp.eq.s32.totalorder %s15, 0
    %p109 = por %p107, %p108
    %p110 = scmp.ne.s32.totalorder %s96, %s97
    %p111 = scmp.eq.s32.totalorder %s16, 1
    %p112 = por %p110, %p111
    %p114 = scmp.ne.s32.totalorder %s97, %s113
    %p115 = scmp.eq.s32.totalorder %s16, 0
    %p116 = por %p114, %p115
    %p117 = scmp.le.s32.totalorder 1, %s10
    %p118 = scmp.lt.s32.totalorder %s10, 3
    %p119 = pnand %p117, %p118
    %p120 = pneg %p119
    // Predicated region
    $region9: #{_lambda_.9} parent=5 // pred_check
      _
    $region10: #{_lambda_.9} parent=5 // pred_check_branch
      %122 = sbr.rel (%p119) target = $region12
    $region11: #{_lambda_.9} parent=5 // pred_region
      %s123 = ssub.s32 %s10, 1
      // Predicated region
      $region13: #{_lambda_.9} parent=11 // pred_check
        %p124 = pneg %p57
      $region14: #{_lambda_.9} parent=11 // pred_check_branch
        %126 = sbr.rel (%p124) target = $region16
      $region15: #{_lambda_.9} parent=11 // pred_region
        _
      $region16: #{_lambda_.9} parent=11 // pred_fallthru
        _
    $region12: #{_lambda_.9} parent=5 // pred_fallthru
      _
    %p127 = scmp.lt.s32.totalorder %s10, 2
    // Predicated region
    $region17: #{_lambda_.9} parent=5 // pred_check
      %p128 = pneg %p127
    $region18: #{_lambda_.9} parent=5 // pred_check_branch
      %130 = sbr.rel (%p128) target = $region20
    $region19: #{_lambda_.9} parent=5 // pred_region
      // Predicated region
      $region21: #{_lambda_.9} parent=19 // pred_check
        %p131 = pneg %p30
      $region22: #{_lambda_.9} parent=19 // pred_check_branch
        %133 = sbr.rel (%p131) target = $region24
      $region23: #{_lambda_.9} parent=19 // pred_region
        %s134 = smul.u32 4, %s10
        %p135 = scmp.lt.s32.totalorder %s134, 7
        %s136 = scalar_select %p135, %s134, 7
        %s137 = smul.addr %s136, 4
        %s138 = scalar_lea.vmem %s0, %s137
        %s139 = smul.u32 4, %s10
      $region24: #{_lambda_.9} parent=19 // pred_fallthru
        _
    $region20: #{_lambda_.9} parent=5 // pred_fallthru
      _
    %p140 = scmp.le.s32.totalorder 1, %s10
    %p141 = scmp.lt.s32.totalorder %s10, 3
    %p142 = pnand %p140, %p141
    %p143 = pneg %p142
    // Predicated region
    $region25: #{_lambda_.9} parent=5 // pred_check
      _
    $region26: #{_lambda_.9} parent=5 // pred_check_branch
      %145 = sbr.rel (%p142) target = $region28
    $region27: #{_lambda_.9} parent=5 // pred_region
      %s146 = ssub.s32 %s10, 1
      %s147 = smul.u32 4, %s15
      %p148 = scmp.lt.s32.totalorder %s147, 7
      %s149 = scalar_select %p148, %s147, 7
      %s150 = smul.addr %s149, 4
      %s151 = scalar_lea.vmem %s0, %s150
      %p152 = pneg %p36
      %p153 = pneg %p33
      %p154 = pneg %p57
      %p155 = pneg %p54
      %p156 = pneg %p83
      %p157 = pneg %p80
      %s158 = smul.u32 4, %s15
      %p159 = scmp.lt.s32.totalorder %s158, 7
      %s160 = scalar_select %p159, %s158, 7
      %s161 = smul.addr %s160, 4
      %s162 = scalar_lea.vmem %s2, %s161
      %p163 = pneg %p109
      %p164 = pneg %p106
      %p165 = scmp.lt.s32.totalorder %s15, 1
      %s166 = scalar_select %p165, %s15, 1
      %s167 = smul.addr %s166, 8
      %s168 = scalar_lea.vmem %s3, %s167
      %s169 = smul.u32 4, %s15
      %p170 = scmp.lt.s32.totalorder %s169, 7
      %s171 = scalar_select %p170, %s169, 7
      %s172 = smul.addr %s171, 4
      %s173 = scalar_lea.vmem %s0, %s172
      %s174 = smul.u32 4, %s15
      %s175 = smul.u32 4, %s15
      %p176 = scmp.lt.s32.totalorder %s175, 7
      %s177 = scalar_select %p176, %s175, 7
      %s178 = smul.addr %s177, 4
      %s179 = scalar_lea.vmem %s2, %s178
      %s180 = smul.u32 4, %s15
      %p181 = scmp.lt.s32.totalorder %s15, 1
      %s182 = scalar_select %p181, %s15, 1
      %s183 = smul.addr %s182, 8
      %s184 = scalar_lea.vmem %s3, %s183
      %v186 = vld [vmem:[%s173] sm:$0xf]
      %v187 = vld [vmem:[%s173 + $0x4] sm:$0xf]
      %v188 = vld [vmem:[%s173 + $0x8] sm:$0xf]
      %v189 = vld [vmem:[%s173 + $0xc] sm:$0xf]
      %v190 = vld [vmem:[%s1] sm:$0xf]
      %v191 = vld [vmem:[%s1 + $0x4] sm:$0xf]
      %v192 = vld [vmem:[%s1 + $0x8] sm:$0xf]
      %v193 = vld [vmem:[%s1 + $0xc] sm:$0xf]
      %v194 = vld [vmem:[%s1 + $0x10] sm:$0xf]
      %v195 = vld [vmem:[%s1 + $0x14] sm:$0xf]
      %v196 = vld [vmem:[%s1 + $0x18] sm:$0xf]
      %v197 = vld [vmem:[%s1 + $0x1c] sm:$0xf]
      %v198 = vld [vmem:[%s1 + $0x20] sm:$0xf]
      %v199 = vld [vmem:[%s1 + $0x24] sm:$0xf]
      %v200 = vld [vmem:[%s1 + $0x28] sm:$0xf]
      %v201 = vld [vmem:[%s1 + $0x2c] sm:$0xf]
      %v202 = vld [vmem:[%s1 + $0x30] sm:$0xf]
      %v203 = vld [vmem:[%s1 + $0x34] sm:$0xf]
      %v204 = vld [vmem:[%s1 + $0x38] sm:$0xf]
      %v205 = vld [vmem:[%s1 + $0x3c] sm:$0xf]
      %v210 = vunpack.c.l.b16 %v186
      %v211 = vunpack.c.l.b16 %v187
      %v212 = vunpack.c.l.b16 %v188
      %v213 = vunpack.c.l.b16 %v189
      %v214 = vpack.c.b16 %v211, %v210
      %v215 = vpack.c.b16 %v213, %v212
      %v234 = vunpack.c.l.b16 %v190
      %v235 = vunpack.c.l.b16 %v191
      %v236 = vunpack.c.l.b16 %v192
      %v237 = vunpack.c.l.b16 %v193
      %v238 = vunpack.c.l.b16 %v194
      %v239 = vunpack.c.l.b16 %v195
      %v240 = vunpack.c.l.b16 %v196
      %v241 = vunpack.c.l.b16 %v197
      %v242 = vunpack.c.l.b16 %v198
      %v243 = vunpack.c.l.b16 %v199
      %v244 = vunpack.c.l.b16 %v200
      %v245 = vunpack.c.l.b16 %v201
      %v246 = vunpack.c.l.b16 %v202
      %v247 = vunpack.c.l.b16 %v203
      %v248 = vunpack.c.l.b16 %v204
      %v249 = vunpack.c.l.b16 %v205
      %v250 = vpack.c.b16 %v235, %v234
      %v251 = vpack.c.b16 %v237, %v236
      %v252 = vpack.c.b16 %v239, %v238
      %v253 = vpack.c.b16 %v241, %v240
      %v254 = vpack.c.b16 %v243, %v242
      %v255 = vpack.c.b16 %v245, %v244
      %v256 = vpack.c.b16 %v247, %v246
      %v257 = vpack.c.b16 %v249, %v248
      %266 = vmatprep.subr.bf16.mxu0 0
      %267 = vmatpush1.bf16.msra.mxu0 %v250
      %268 = vmatprep.subr.bf16.mxu0 0
      %269 = vmatpush1.bf16.msra.mxu0 %v251
      %270 = vmatprep.subr.bf16.mxu0 0
      %271 = vmatpush1.bf16.msra.mxu0 %v252
      %272 = vmatprep.subr.bf16.mxu0 0
      %273 = vmatpush1.bf16.msra.mxu0 %v253
      %274 = vmatprep.subr.bf16.mxu0 0
      %275 = vmatpush1.bf16.msra.mxu0 %v254
      %276 = vmatprep.subr.bf16.mxu0 0
      %277 = vmatpush1.bf16.msra.mxu0 %v255
      %278 = vmatprep.subr.bf16.mxu0 0
      %279 = vmatpush1.bf16.msra.mxu0 %v256
      %280 = vmatprep.subr.bf16.mxu0 0
      %281 = vmatpush1.bf16.msra.mxu0 %v257
      %282 = vmatprep.subr.bf16.mxu0 0
      %283 = vmatpush1.bf16.msra.mxu0 0
      %284 = vmatprep.subr.bf16.mxu0 0
      %285 = vmatpush1.bf16.msra.mxu0 0
      %286 = vmatprep.subr.bf16.mxu0 0
      %287 = vmatpush1.bf16.msra.mxu0 0
      %288 = vmatprep.subr.bf16.mxu0 0
      %289 = vmatpush1.bf16.msra.mxu0 0
      %290 = vmatprep.subr.bf16.mxu0 0
      %291 = vmatpush1.bf16.msra.mxu0 0
      %292 = vmatprep.subr.bf16.mxu0 0
      %293 = vmatpush1.bf16.msra.mxu0 0
      %294 = vmatprep.subr.bf16.mxu0 0
      %295 = vmatpush1.bf16.msra.mxu0 0
      %296 = vmatprep.subr.bf16.mxu0 0
      %297 = vmatpush1.bf16.msra.mxu0 0
      %298 = vmatprep.mubr.bf16.mxu0 0
      %299 = vmatmul.mubr.bf16.gmra.mrb[0].mxu0 %v214
      %v300 = vpop.f32.mrb[0].mxu0
      %v301 = vadd.f32 0.0, %v300
      %v302 = vpop.f32.mrb[0].mxu0
      %v303 = vpop.f32.mrb[0].mxu0
      %v304 = vadd.f32 0.0, %v303
      %v305 = vpop.f32.mrb[0].mxu0
      %306 = vmatprep.mubr.bf16.mxu0 0
      %307 = vmatmul.mubr.bf16.gmra.mrb[0].mxu0 %v215
      %v308 = vpop.f32.mrb[0].mxu0
      %v309 = vadd.f32 0.0, %v308
      %v310 = vpop.f32.mrb[0].mxu0
      %v311 = vpop.f32.mrb[0].mxu0
      %v312 = vadd.f32 0.0, %v311
      %v313 = vpop.f32.mrb[0].mxu0
      %314 = vdwg.mxu0
      %v315 = vpack.c.bf16 %v304, %v301
      %v316 = vpack.c.bf16 %v312, %v309
      %v319 = vunpack.c.l.b16 %v315
      %v320 = vunpack.c.h.b16 %v315
      %v321 = vunpack.c.l.b16 %v316
      %v322 = vunpack.c.h.b16 %v316
      %v323 = vpack.c.b16 %v319, %v319
      %v324 = vpack.c.b16 %v320, %v320
      %v325 = vpack.c.b16 %v321, %v321
      %v326 = vpack.c.b16 %v322, %v322
      %331 = vst [vmem:[%s179] sm:$0xf] %v323
      %332 = vst [vmem:[%s179 + $0x4] sm:$0xf] %v324
      %333 = vst [vmem:[%s179 + $0x8] sm:$0xf] %v325
      %334 = vst [vmem:[%s179 + $0xc] sm:$0xf] %v326
      %v335 = vunpack.c.l.bf16 %v315
      %v336 = vunpack.c.h.bf16 %v315
      %v337 = vunpack.c.l.bf16 %v316
      %v338 = vunpack.c.h.bf16 %v316
      %v339 = vadd.f32 %v335, %v336
      %v340 = vadd.f32 %v339, %v337
      %v341 = vadd.f32 %v340, %v338
      %v342 = vrot.slane %v341, 4
      %v343 = vadd.f32 %v341, %v342
      %v344 = vrot.slane %v343, 2
      %v345 = vadd.f32 %v343, %v344
      %v346 = vrot.slane %v345, 1
      %v347 = vadd.f32 %v345, %v346
      %348 = vst [vmem:[%s184] sm:$0x1] %v347
      %v349 = vmul.f32 %v335, %v335
      %v350 = vmul.f32 %v336, %v336
      %v351 = vmul.f32 %v337, %v337
      %v352 = vmul.f32 %v338, %v338
      %v353 = vadd.f32 %v349, %v350
      %v354 = vadd.f32 %v353, %v351
      %v355 = vadd.f32 %v354, %v352
      %v356 = vrot.slane %v355, 4
      %v357 = vadd.f32 %v355, %v356
      %v358 = vrot.slane %v357, 2
      %v359 = vadd.f32 %v357, %v358
      %v360 = vrot.slane %v359, 1
      %v361 = vadd.f32 %v359, %v360
      %362 = vst [vmem:[%s184 + $0x1] sm:$0x1] %v361
      %s363 = smul.u32 4, %s15
      %p364 = scmp.lt.s32.totalorder %s363, 7
      %s365 = scalar_select %p364, %s363, 7
      %s366 = smul.addr %s365, 4
      %s367 = scalar_lea.vmem %s2, %s366
      %p368 = scmp.lt.s32.totalorder %s15, 1
      %s369 = scalar_select %p368, %s15, 1
      %s370 = smul.addr %s369, 8
      %s371 = scalar_lea.vmem %s3, %s370
      // Predicated region
      $region29: #{_lambda_.9} parent=27 // pred_check
        %p372 = pneg %p80
      $region30: #{_lambda_.9} parent=27 // pred_check_branch
        %374 = sbr.rel (%p372) target = $region32
      $region31: #{_lambda_.9} parent=27 // pred_region
        %s375 = smul.u32 4, %s15
      $region32: #{_lambda_.9} parent=27 // pred_fallthru
        _
      // Predicated region
      $region33: #{_lambda_.9} parent=27 // pred_check
        %p376 = pneg %p106
      $region34: #{_lambda_.9} parent=27 // pred_check_branch
        %378 = sbr.rel (%p376) target = $region36
      $region35: #{_lambda_.9} parent=27 // pred_region
        _
      $region36: #{_lambda_.9} parent=27 // pred_fallthru
        _
    $region28: #{_lambda_.9} parent=5 // pred_fallthru
      _
    %p379 = scmp.le.s32.totalorder 2, %s10
    // Predicated region
    $region37: #{_lambda_.9} parent=5 // pred_check
      %p380 = pneg %p379
    $region38: #{_lambda_.9} parent=5 // pred_check_branch
      %382 = sbr.rel (%p380) target = $region40
    $region39: #{_lambda_.9} parent=5 // pred_region
      %s383 = ssub.s32 %s10, 2
      // Predicated region
      $region41: #{_lambda_.9} parent=39 // pred_check
        %p384 = pneg %p86
      $region42: #{_lambda_.9} parent=39 // pred_check_branch
        %386 = sbr.rel (%p384) target = $region44
      $region43: #{_lambda_.9} parent=39 // pred_region
        %s387 = smul.u32 4, %s16
        %p388 = scmp.lt.s32.totalorder %s387, 7
        %s389 = scalar_select %p388, %s387, 7
        %s390 = smul.addr %s389, 4
        %s391 = scalar_lea.vmem %s2, %s390
      $region44: #{_lambda_.9} parent=39 // pred_fallthru
        _
      // Predicated region
      $region45: #{_lambda_.9} parent=39 // pred_check
        %p392 = pneg %p112
      $region46: #{_lambda_.9} parent=39 // pred_check_branch
        %394 = sbr.rel (%p392) target = $region48
      $region47: #{_lambda_.9} parent=39 // pred_region
        %p395 = scmp.lt.s32.totalorder %s16, 1
        %s396 = scalar_select %p395, %s16, 1
        %s397 = smul.addr %s396, 8
        %s398 = scalar_lea.vmem %s3, %s397
      $region48: #{_lambda_.9} parent=39 // pred_fallthru
        _
    $region40: #{_lambda_.9} parent=5 // pred_fallthru
      _
  $region6: #{_lambda_.9} parent=0 // loop_footer
    %s14 = sadd.s32 1, %s10
  $region7: #{_lambda_.9} parent=0 // loop_footer_branch
    %9 = sbr.rel target = $region3
  $region8: #{_lambda_.9} parent=0 // loop_exit
    _

// kernel: _lambda_.12
$region0: #{_lambda_.12}
  #allocation0 [shape = 'u32[]', space=smem, size = 0x4, offset = 0x4, fixed_abs, tag = 'smem constant byte address 0x4 - core index']
  #allocation1 [shape = 'u32[144,128]{1,0:T(1,128)}', space=vmem, size = 0x12000, scoped, tag = 'internal scratch']
  %s0 = inlined_call_operand.vmem [shape: bf16[32,128], index: 0, kind: input, shape index: {}, may-alias: {0,3}]
  %s1 = inlined_call_operand.vmem [shape: f32[1,128], index: 1, kind: input, shape index: {}]
  %s2 = inlined_call_operand.vmem [shape: f32[1,128], index: 2, kind: input, shape index: {}]
  %s3 = inlined_call_operand.vmem [shape: bf16[32,128], index: 3, kind: output, shape index: {}, may-alias: {0,3}]
  %s4 = sld [smem:[#allocation0]]
  $region45: #{_lambda_.12} parent=0
    _
  %s6 = ssub.s32 1, %s4
  %s7 = scalar_select 0, %s6, %s4
  loop: start=0, step=1, limit=4
  $region2: #{_lambda_.12} parent=0 // loop_pre_header
    _
  $region3: #{_lambda_.12} parent=0 // loop_header
    %s9 = sphi 0, %s13
    %p10 = scmp.ge.s32.totalorder %s9, 4
    %s19 = sphi 0, %s21
    %s22 = sphi 0, %s19
    %s23 = sphi 0, %s22
    %s39 = sphi 0, %s23
    %s43 = sphi 0, %s43
    %s45 = sphi 0, %s43
    %s46 = sphi 0, %s45
    %s60 = sphi 0, %s46
    %s64 = sphi 0, %s64
    %s66 = sphi 0, %s64
    %s67 = sphi 0, %s66
    %s81 = sphi 0, %s67
    %s87 = sphi 0, %s89
    %s90 = sphi 0, %s87
    %s91 = sphi 0, %s90
    %s107 = sphi 0, %s91
  $region4: #{_lambda_.12} parent=0 // loop_header_branch
    %12 = sbr.rel (%p10) target = $region8
  $region5: #{_lambda_.12} parent=0 // loop_body
    %s14 = ssub.s32 %s9, 1
    %s15 = ssub.s32 %s9, 2
    %s16 = sadd.s32 %s9, 1
    %s17 = ssub.s32 %s9, %s16
    %p18 = scmp.eq.s32.totalorder %s17, 0
    %s20 = sadd.s32 %s19, 1
    %s21 = scalar_select %p18, %s19, %s20
    %p24 = pneg %p18
    %p25 = scmp.eq.s32.totalorder %s9, 1
    %p26 = por %p24, %p25
    %p27 = scmp.ne.s32.totalorder %s19, %s22
    %p28 = scmp.eq.s32.totalorder %s9, 0
    %p29 = por %p27, %p28
    %p30 = scmp.ne.s32.totalorder %s19, %s22
    %p31 = scmp.eq.s32.totalorder %s14, 1
    %p32 = por %p30, %p31
    %p33 = scmp.ne.s32.totalorder %s22, %s23
    %p34 = scmp.eq.s32.totalorder %s14, 0
    %p35 = por %p33, %p34
    %p36 = scmp.ne.s32.totalorder %s22, %s23
    %p37 = scmp.eq.s32.totalorder %s15, 1
    %p38 = por %p36, %p37
    %p40 = scmp.ne.s32.totalorder %s23, %s39
    %p41 = scmp.eq.s32.totalorder %s15, 0
    %p42 = por %p40, %p41
    %s44 = sadd.s32 %s43, 1
    %p47 = scmp.eq.s32.totalorder %s9, 1
    %p48 = scmp.ne.s32.totalorder %s43, %s45
    %p49 = scmp.eq.s32.totalorder %s9, 0
    %p50 = por %p48, %p49
    %p51 = scmp.ne.s32.totalorder %s43, %s45
    %p52 = scmp.eq.s32.totalorder %s14, 1
    %p53 = por %p51, %p52
    %p54 = scmp.ne.s32.totalorder %s45, %s46
    %p55 = scmp.eq.s32.totalorder %s14, 0
    %p56 = por %p54, %p55
    %p57 = scmp.ne.s32.totalorder %s45, %s46
    %p58 = scmp.eq.s32.totalorder %s15, 1
    %p59 = por %p57, %p58
    %p61 = scmp.ne.s32.totalorder %s46, %s60
    %p62 = scmp.eq.s32.totalorder %s15, 0
    %p63 = por %p61, %p62
    %s65 = sadd.s32 %s64, 1
    %p68 = scmp.eq.s32.totalorder %s9, 1
    %p69 = scmp.ne.s32.totalorder %s64, %s66
    %p70 = scmp.eq.s32.totalorder %s9, 0
    %p71 = por %p69, %p70
    %p72 = scmp.ne.s32.totalorder %s64, %s66
    %p73 = scmp.eq.s32.totalorder %s14, 1
    %p74 = por %p72, %p73
    %p75 = scmp.ne.s32.totalorder %s66, %s67
    %p76 = scmp.eq.s32.totalorder %s14, 0
    %p77 = por %p75, %p76
    %p78 = scmp.ne.s32.totalorder %s66, %s67
    %p79 = scmp.eq.s32.totalorder %s15, 1
    %p80 = por %p78, %p79
    %p82 = scmp.ne.s32.totalorder %s67, %s81
    %p83 = scmp.eq.s32.totalorder %s15, 0
    %p84 = por %p82, %p83
    %s85 = ssub.s32 %s9, %s16
    %p86 = scmp.eq.s32.totalorder %s85, 0
    %s88 = sadd.s32 %s87, 1
    %s89 = scalar_select %p86, %s87, %s88
    %p92 = pneg %p86
    %p93 = scmp.eq.s32.totalorder %s9, 1
    %p94 = por %p92, %p93
    %p95 = scmp.ne.s32.totalorder %s87, %s90
    %p96 = scmp.eq.s32.totalorder %s9, 0
    %p97 = por %p95, %p96
    %p98 = scmp.ne.s32.totalorder %s87, %s90
    %p99 = scmp.eq.s32.totalorder %s14, 1
    %p100 = por %p98, %p99
    %p101 = scmp.ne.s32.totalorder %s90, %s91
    %p102 = scmp.eq.s32.totalorder %s14, 0
    %p103 = por %p101, %p102
    %p104 = scmp.ne.s32.totalorder %s90, %s91
    %p105 = scmp.eq.s32.totalorder %s15, 1
    %p106 = por %p104, %p105
    %p108 = scmp.ne.s32.totalorder %s91, %s107
    %p109 = scmp.eq.s32.totalorder %s15, 0
    %p110 = por %p108, %p109
    %p111 = scmp.le.s32.totalorder 1, %s9
    %p112 = scmp.lt.s32.totalorder %s9, 3
    %p113 = pnand %p111, %p112
    %p114 = pneg %p113
    // Predicated region
    $region9: #{_lambda_.12} parent=5 // pred_check
      _
    $region10: #{_lambda_.12} parent=5 // pred_check_branch
      %116 = sbr.rel (%p113) target = $region12
    $region11: #{_lambda_.12} parent=5 // pred_region
      %s117 = ssub.s32 %s9, 1
      // Predicated region
      $region13: #{_lambda_.12} parent=11 // pred_check
        %p118 = pneg %p56
      $region14: #{_lambda_.12} parent=11 // pred_check_branch
        %120 = sbr.rel (%p118) target = $region16
      $region15: #{_lambda_.12} parent=11 // pred_region
        _
      $region16: #{_lambda_.12} parent=11 // pred_fallthru
        _
      // Predicated region
      $region17: #{_lambda_.12} parent=11 // pred_check
        %p121 = pneg %p77
      $region18: #{_lambda_.12} parent=11 // pred_check_branch
        %123 = sbr.rel (%p121) target = $region20
      $region19: #{_lambda_.12} parent=11 // pred_region
        _
      $region20: #{_lambda_.12} parent=11 // pred_fallthru
        _
    $region12: #{_lambda_.12} parent=5 // pred_fallthru
      _
    %p124 = scmp.lt.s32.totalorder %s9, 2
    // Predicated region
    $region21: #{_lambda_.12} parent=5 // pred_check
      %p125 = pneg %p124
    $region22: #{_lambda_.12} parent=5 // pred_check_branch
      %127 = sbr.rel (%p125) target = $region24
    $region23: #{_lambda_.12} parent=5 // pred_region
      // Predicated region
      $region25: #{_lambda_.12} parent=23 // pred_check
        %p128 = pneg %p29
      $region26: #{_lambda_.12} parent=23 // pred_check_branch
        %130 = sbr.rel (%p128) target = $region28
      $region27: #{_lambda_.12} parent=23 // pred_region
        %s131 = smul.u32 2, %s9
        %p132 = scmp.lt.s32.totalorder %s131, 3
        %s133 = scalar_select %p132, %s131, 3
        %s134 = smul.addr %s133, 4
        %s135 = scalar_lea.vmem %s0, %s134
        %s136 = smul.u32 2, %s9
      $region28: #{_lambda_.12} parent=23 // pred_fallthru
        _
    $region24: #{_lambda_.12} parent=5 // pred_fallthru
      _
    %p137 = scmp.le.s32.totalorder 1, %s9
    %p138 = scmp.lt.s32.totalorder %s9, 3
    %p139 = pnand %p137, %p138
    %p140 = pneg %p139
    // Predicated region
    $region29: #{_lambda_.12} parent=5 // pred_check
      _
    $region30: #{_lambda_.12} parent=5 // pred_check_branch
      %142 = sbr.rel (%p139) target = $region32
    $region31: #{_lambda_.12} parent=5 // pred_region
      %s143 = ssub.s32 %s9, 1
      %s144 = smul.u32 2, %s14
      %p145 = scmp.lt.s32.totalorder %s144, 3
      %s146 = scalar_select %p145, %s144, 3
      %s147 = smul.addr %s146, 4
      %s148 = scalar_lea.vmem %s0, %s147
      %p149 = pneg %p35
      %p150 = pneg %p32
      %p151 = pneg %p56
      %p152 = pneg %p53
      %p153 = pneg %p77
      %p154 = pneg %p74
      %p155 = pneg %p103
      %p156 = pneg %p100
      %s157 = smul.u32 2, %s14
      %p158 = scmp.lt.s32.totalorder %s157, 3
      %s159 = scalar_select %p158, %s157, 3
      %s160 = smul.addr %s159, 4
      %s161 = scalar_lea.vmem %s3, %s160
      %s162 = smul.u32 2, %s14
      %p163 = scmp.lt.s32.totalorder %s162, 3
      %s164 = scalar_select %p163, %s162, 3
      %s165 = smul.addr %s164, 4
      %s166 = scalar_lea.vmem %s0, %s165
      %s167 = smul.u32 2, %s14
      %s168 = smul.u32 2, %s14
      %p169 = scmp.lt.s32.totalorder %s168, 3
      %s170 = scalar_select %p169, %s168, 3
      %s171 = smul.addr %s170, 4
      %s172 = scalar_lea.vmem %s3, %s171
      %s173 = smul.u32 2, %s14
      %v174 = vld [vmem:[%s166] sm:$0xf]
      %v175 = vld [vmem:[%s166 + $0x4] sm:$0xf]
      %v176 = vunpack.c.l.bf16 %v174
      %v177 = vunpack.c.l.bf16 %v175
      %v178 = vld [vmem:[%s1] sm:$0x1]
      %v180 = vlaneseq
      %v181 = vshrl.u32 %v180, 7
      %v182 = vsub.s32 0, %v181
      %v183 = vrot.slane %v178, %v182
      %v185 = vmul.f32 %v176, %v183
      %v186 = vmul.f32 %v177, %v183
      %v187 = vld [vmem:[%s2] sm:$0x1]
      %v189 = vlaneseq
      %v190 = vshrl.u32 %v189, 7
      %v191 = vsub.s32 0, %v190
      %v192 = vrot.slane %v187, %v191
      %v194 = vadd.f32 %v185, %v192
      %v195 = vadd.f32 %v186, %v192
      %vm196 = vcmp.ge.f32.partialorder %v194, 0.0
      %vm197 = vcmp.ge.f32.partialorder %v195, 0.0
      %v198 = vmul.f32 %v194, 0.2
      %v199 = vmul.f32 %v195, 0.2
      %v200 = vsel %vm196, %v194, %v198
      %v201 = vsel %vm197, %v195, %v199
      %v202 = vpack.c.bf16 %v201, %v200
      %v204 = vunpack.c.l.b16 %v202
      %v205 = vunpack.c.h.b16 %v202
      %v206 = vpack.c.b16 %v204, %v204
      %v207 = vpack.c.b16 %v205, %v205
      %210 = vst [vmem:[%s172] sm:$0xf] %v206
      %211 = vst [vmem:[%s172 + $0x4] sm:$0xf] %v207
      %s212 = smul.u32 2, %s14
      %p213 = scmp.lt.s32.totalorder %s212, 3
      %s214 = scalar_select %p213, %s212, 3
      %s215 = smul.addr %s214, 4
      %s216 = scalar_lea.vmem %s3, %s215
      // Predicated region
      $region33: #{_lambda_.12} parent=31 // pred_check
        %p217 = pneg %p100
      $region34: #{_lambda_.12} parent=31 // pred_check_branch
        %219 = sbr.rel (%p217) target = $region36
      $region35: #{_lambda_.12} parent=31 // pred_region
        %s220 = smul.u32 2, %s14
      $region36: #{_lambda_.12} parent=31 // pred_fallthru
        _
    $region32: #{_lambda_.12} parent=5 // pred_fallthru
      _
    %p221 = scmp.le.s32.totalorder 2, %s9
    // Predicated region
    $region37: #{_lambda_.12} parent=5 // pred_check
      %p222 = pneg %p221
    $region38: #{_lambda_.12} parent=5 // pred_check_branch
      %224 = sbr.rel (%p222) target = $region40
    $region39: #{_lambda_.12} parent=5 // pred_region
      %s225 = ssub.s32 %s9, 2
      // Predicated region
      $region41: #{_lambda_.12} parent=39 // pred_check
        %p226 = pneg %p106
      $region42: #{_lambda_.12} parent=39 // pred_check_branch
        %228 = sbr.rel (%p226) target = $region44
      $region43: #{_lambda_.12} parent=39 // pred_region
        %s229 = smul.u32 2, %s15
        %p230 = scmp.lt.s32.totalorder %s229, 3
        %s231 = scalar_select %p230, %s229, 3
        %s232 = smul.addr %s231, 4
        %s233 = scalar_lea.vmem %s3, %s232
      $region44: #{_lambda_.12} parent=39 // pred_fallthru
        _
    $region40: #{_lambda_.12} parent=5 // pred_fallthru
      _
  $region6: #{_lambda_.12} parent=0 // loop_footer
    %s13 = sadd.s32 1, %s9
  $region7: #{_lambda_.12} parent=0 // loop_footer_branch
    %8 = sbr.rel target = $region3
  $region8: #{_lambda_.12} parent=0 // loop_exit
    _

// kernel: _lambda_.11
$region0: #{_lambda_.11}
  #allocation0 [shape = 'u32[]', space=smem, size = 0x4, offset = 0x4, fixed_abs, tag = 'smem constant byte address 0x4 - core index']
  #allocation1 [shape = 'u32[144,128]{1,0:T(1,128)}', space=vmem, size = 0x12000, scoped, tag = 'internal scratch']
  %s0 = inlined_call_operand.vmem [shape: bf16[32,256], index: 0, kind: input, shape index: {}]
  %s1 = inlined_call_operand.vmem [shape: bf16[256,128], index: 1, kind: input, shape index: {}]
  %s2 = inlined_call_operand.vmem [shape: bf16[32,128], index: 2, kind: output, shape index: {0}]
  %s3 = inlined_call_operand.vmem [shape: f32[16,128], index: 3, kind: output, shape index: {1}]
  %4 = xla_tuple %s2, %s3
  %s5 = sld [smem:[#allocation0]]
  $region49: #{_lambda_.11} parent=0
    _
  %s7 = ssub.s32 1, %s5
  %s8 = scalar_select 0, %s7, %s5
  loop: start=0, step=1, limit=4
  $region2: #{_lambda_.11} parent=0 // loop_pre_header
    _
  $region3: #{_lambda_.11} parent=0 // loop_header
    %s10 = sphi 0, %s14
    %p11 = scmp.ge.s32.totalorder %s10, 4
    %s20 = sphi 0, %s22
    %s23 = sphi 0, %s20
    %s24 = sphi 0, %s23
    %s40 = sphi 0, %s24
    %s44 = sphi 0, %s44
    %s46 = sphi 0, %s44
    %s47 = sphi 0, %s46
    %s61 = sphi 0, %s47
    %s67 = sphi 0, %s69
    %s70 = sphi 0, %s67
    %s71 = sphi 0, %s70
    %s87 = sphi 0, %s71
    %s93 = sphi 0, %s95
    %s96 = sphi 0, %s93
    %s97 = sphi 0, %s96
    %s113 = sphi 0, %s97
  $region4: #{_lambda_.11} parent=0 // loop_header_branch
    %13 = sbr.rel (%p11) target = $region8
  $region5: #{_lambda_.11} parent=0 // loop_body
    %s15 = ssub.s32 %s10, 1
    %s16 = ssub.s32 %s10, 2
    %s17 = sadd.s32 %s10, 1
    %s18 = ssub.s32 %s10, %s17
    %p19 = scmp.eq.s32.totalorder %s18, 0
    %s21 = sadd.s32 %s20, 1
    %s22 = scalar_select %p19, %s20, %s21
    %p25 = pneg %p19
    %p26 = scmp.eq.s32.totalorder %s10, 1
    %p27 = por %p25, %p26
    %p28 = scmp.ne.s32.totalorder %s20, %s23
    %p29 = scmp.eq.s32.totalorder %s10, 0
    %p30 = por %p28, %p29
    %p31 = scmp.ne.s32.totalorder %s20, %s23
    %p32 = scmp.eq.s32.totalorder %s15, 1
    %p33 = por %p31, %p32
    %p34 = scmp.ne.s32.totalorder %s23, %s24
    %p35 = scmp.eq.s32.totalorder %s15, 0
    %p36 = por %p34, %p35
    %p37 = scmp.ne.s32.totalorder %s23, %s24
    %p38 = scmp.eq.s32.totalorder %s16, 1
    %p39 = por %p37, %p38
    %p41 = scmp.ne.s32.totalorder %s24, %s40
    %p42 = scmp.eq.s32.totalorder %s16, 0
    %p43 = por %p41, %p42
    %s45 = sadd.s32 %s44, 1
    %p48 = scmp.eq.s32.totalorder %s10, 1
    %p49 = scmp.ne.s32.totalorder %s44, %s46
    %p50 = scmp.eq.s32.totalorder %s10, 0
    %p51 = por %p49, %p50
    %p52 = scmp.ne.s32.totalorder %s44, %s46
    %p53 = scmp.eq.s32.totalorder %s15, 1
    %p54 = por %p52, %p53
    %p55 = scmp.ne.s32.totalorder %s46, %s47
    %p56 = scmp.eq.s32.totalorder %s15, 0
    %p57 = por %p55, %p56
    %p58 = scmp.ne.s32.totalorder %s46, %s47
    %p59 = scmp.eq.s32.totalorder %s16, 1
    %p60 = por %p58, %p59
    %p62 = scmp.ne.s32.totalorder %s47, %s61
    %p63 = scmp.eq.s32.totalorder %s16, 0
    %p64 = por %p62, %p63
    %s65 = ssub.s32 %s10, %s17
    %p66 = scmp.eq.s32.totalorder %s65, 0
    %s68 = sadd.s32 %s67, 1
    %s69 = scalar_select %p66, %s67, %s68
    %p72 = pneg %p66
    %p73 = scmp.eq.s32.totalorder %s10, 1
    %p74 = por %p72, %p73
    %p75 = scmp.ne.s32.totalorder %s67, %s70
    %p76 = scmp.eq.s32.totalorder %s10, 0
    %p77 = por %p75, %p76
    %p78 = scmp.ne.s32.totalorder %s67, %s70
    %p79 = scmp.eq.s32.totalorder %s15, 1
    %p80 = por %p78, %p79
    %p81 = scmp.ne.s32.totalorder %s70, %s71
    %p82 = scmp.eq.s32.totalorder %s15, 0
    %p83 = por %p81, %p82
    %p84 = scmp.ne.s32.totalorder %s70, %s71
    %p85 = scmp.eq.s32.totalorder %s16, 1
    %p86 = por %p84, %p85
    %p88 = scmp.ne.s32.totalorder %s71, %s87
    %p89 = scmp.eq.s32.totalorder %s16, 0
    %p90 = por %p88, %p89
    %s91 = ssub.s32 %s10, %s17
    %p92 = scmp.eq.s32.totalorder %s91, 0
    %s94 = sadd.s32 %s93, 1
    %s95 = scalar_select %p92, %s93, %s94
    %p98 = pneg %p92
    %p99 = scmp.eq.s32.totalorder %s10, 1
    %p100 = por %p98, %p99
    %p101 = scmp.ne.s32.totalorder %s93, %s96
    %p102 = scmp.eq.s32.totalorder %s10, 0
    %p103 = por %p101, %p102
    %p104 = scmp.ne.s32.totalorder %s93, %s96
    %p105 = scmp.eq.s32.totalorder %s15, 1
    %p106 = por %p104, %p105
    %p107 = scmp.ne.s32.totalorder %s96, %s97
    %p108 = scmp.eq.s32.totalorder %s15, 0
    %p109 = por %p107, %p108
    %p110 = scmp.ne.s32.totalorder %s96, %s97
    %p111 = scmp.eq.s32.totalorder %s16, 1
    %p112 = por %p110, %p111
    %p114 = scmp.ne.s32.totalorder %s97, %s113
    %p115 = scmp.eq.s32.totalorder %s16, 0
    %p116 = por %p114, %p115
    %p117 = scmp.le.s32.totalorder 1, %s10
    %p118 = scmp.lt.s32.totalorder %s10, 3
    %p119 = pnand %p117, %p118
    %p120 = pneg %p119
    // Predicated region
    $region9: #{_lambda_.11} parent=5 // pred_check
      _
    $region10: #{_lambda_.11} parent=5 // pred_check_branch
      %122 = sbr.rel (%p119) target = $region12
    $region11: #{_lambda_.11} parent=5 // pred_region
      %s123 = ssub.s32 %s10, 1
      // Predicated region
      $region13: #{_lambda_.11} parent=11 // pred_check
        %p124 = pneg %p57
      $region14: #{_lambda_.11} parent=11 // pred_check_branch
        %126 = sbr.rel (%p124) target = $region16
      $region15: #{_lambda_.11} parent=11 // pred_region
        _
      $region16: #{_lambda_.11} parent=11 // pred_fallthru
        _
    $region12: #{_lambda_.11} parent=5 // pred_fallthru
      _
    %p127 = scmp.lt.s32.totalorder %s10, 2
    // Predicated region
    $region17: #{_lambda_.11} parent=5 // pred_check
      %p128 = pneg %p127
    $region18: #{_lambda_.11} parent=5 // pred_check_branch
      %130 = sbr.rel (%p128) target = $region20
    $region19: #{_lambda_.11} parent=5 // pred_region
      // Predicated region
      $region21: #{_lambda_.11} parent=19 // pred_check
        %p131 = pneg %p30
      $region22: #{_lambda_.11} parent=19 // pred_check_branch
        %133 = sbr.rel (%p131) target = $region24
      $region23: #{_lambda_.11} parent=19 // pred_region
        %s134 = smul.u32 2, %s10
        %p135 = scmp.lt.s32.totalorder %s134, 3
        %s136 = scalar_select %p135, %s134, 3
        %s137 = smul.addr %s136, 2
        %s138 = smul.addr %s137, 4
        %s139 = scalar_lea.vmem %s0, %s138
        %s140 = smul.u32 2, %s10
      $region24: #{_lambda_.11} parent=19 // pred_fallthru
        _
    $region20: #{_lambda_.11} parent=5 // pred_fallthru
      _
    %p141 = scmp.le.s32.totalorder 1, %s10
    %p142 = scmp.lt.s32.totalorder %s10, 3
    %p143 = pnand %p141, %p142
    %p144 = pneg %p143
    // Predicated region
    $region25: #{_lambda_.11} parent=5 // pred_check
      _
    $region26: #{_lambda_.11} parent=5 // pred_check_branch
      %146 = sbr.rel (%p143) target = $region28
    $region27: #{_lambda_.11} parent=5 // pred_region
      %s147 = ssub.s32 %s10, 1
      %s148 = smul.u32 2, %s15
      %p149 = scmp.lt.s32.totalorder %s148, 3
      %s150 = scalar_select %p149, %s148, 3
      %s151 = smul.addr %s150, 2
      %s152 = smul.addr %s151, 4
      %s153 = scalar_lea.vmem %s0, %s152
      %p154 = pneg %p36
      %p155 = pneg %p33
      %p156 = pneg %p57
      %p157 = pneg %p54
      %p158 = pneg %p83
      %p159 = pneg %p80
      %s160 = smul.u32 2, %s15
      %p161 = scmp.lt.s32.totalorder %s160, 3
      %s162 = scalar_select %p161, %s160, 3
      %s163 = smul.addr %s162, 4
      %s164 = scalar_lea.vmem %s2, %s163
      %p165 = pneg %p109
      %p166 = pneg %p106
      %p167 = scmp.lt.s32.totalorder %s15, 1
      %s168 = scalar_select %p167, %s15, 1
      %s169 = smul.addr %s168, 8
      %s170 = scalar_lea.vmem %s3, %s169
      %s171 = smul.u32 2, %s15
      %p172 = scmp.lt.s32.totalorder %s171, 3
      %s173 = scalar_select %p172, %s171, 3
      %s174 = smul.addr %s173, 2
      %s175 = smul.addr %s174, 4
      %s176 = scalar_lea.vmem %s0, %s175
      %s177 = smul.u32 2, %s15
      %s178 = smul.u32 2, %s15
      %p179 = scmp.lt.s32.totalorder %s178, 3
      %s180 = scalar_select %p179, %s178, 3
      %s181 = smul.addr %s180, 4
      %s182 = scalar_lea.vmem %s2, %s181
      %s183 = smul.u32 2, %s15
      %p184 = scmp.lt.s32.totalorder %s15, 1
      %s185 = scalar_select %p184, %s15, 1
      %s186 = smul.addr %s185, 8
      %s187 = scalar_lea.vmem %s3, %s186
      %v189 = vld [vmem:[%s176] sm:$0xff]
      %v190 = vld [vmem:[%s176 + $0x8] sm:$0xff]
      %v191 = vld [vmem:[%s1] sm:$0xf]
      %v192 = vld [vmem:[%s1 + $0x4] sm:$0xf]
      %v193 = vld [vmem:[%s1 + $0x8] sm:$0xf]
      %v194 = vld [vmem:[%s1 + $0xc] sm:$0xf]
      %v195 = vld [vmem:[%s1 + $0x10] sm:$0xf]
      %v196 = vld [vmem:[%s1 + $0x14] sm:$0xf]
      %v197 = vld [vmem:[%s1 + $0x18] sm:$0xf]
      %v198 = vld [vmem:[%s1 + $0x1c] sm:$0xf]
      %v199 = vld [vmem:[%s1 + $0x20] sm:$0xf]
      %v200 = vld [vmem:[%s1 + $0x24] sm:$0xf]
      %v201 = vld [vmem:[%s1 + $0x28] sm:$0xf]
      %v202 = vld [vmem:[%s1 + $0x2c] sm:$0xf]
      %v203 = vld [vmem:[%s1 + $0x30] sm:$0xf]
      %v204 = vld [vmem:[%s1 + $0x34] sm:$0xf]
      %v205 = vld [vmem:[%s1 + $0x38] sm:$0xf]
      %v206 = vld [vmem:[%s1 + $0x3c] sm:$0xf]
      %v207 = vld [vmem:[%s1 + $0x40] sm:$0xf]
      %v208 = vld [vmem:[%s1 + $0x44] sm:$0xf]
      %v209 = vld [vmem:[%s1 + $0x48] sm:$0xf]
      %v210 = vld [vmem:[%s1 + $0x4c] sm:$0xf]
      %v211 = vld [vmem:[%s1 + $0x50] sm:$0xf]
      %v212 = vld [vmem:[%s1 + $0x54] sm:$0xf]
      %v213 = vld [vmem:[%s1 + $0x58] sm:$0xf]
      %v214 = vld [vmem:[%s1 + $0x5c] sm:$0xf]
      %v215 = vld [vmem:[%s1 + $0x60] sm:$0xf]
      %v216 = vld [vmem:[%s1 + $0x64] sm:$0xf]
      %v217 = vld [vmem:[%s1 + $0x68] sm:$0xf]
      %v218 = vld [vmem:[%s1 + $0x6c] sm:$0xf]
      %v219 = vld [vmem:[%s1 + $0x70] sm:$0xf]
      %v220 = vld [vmem:[%s1 + $0x74] sm:$0xf]
      %v221 = vld [vmem:[%s1 + $0x78] sm:$0xf]
      %v222 = vld [vmem:[%s1 + $0x7c] sm:$0xf]
      %v225 = vunpack.c.l.b16 %v189
      %v226 = vunpack.c.h.b16 %v189
      %v227 = vunpack.c.l.b16 %v190
      %v228 = vunpack.c.h.b16 %v190
      %v229 = vpack.c.b16 %v227, %v225
      %v230 = vpack.c.b16 %v228, %v226
      %v265 = vunpack.c.l.b16 %v191
      %v266 = vunpack.c.l.b16 %v192
      %v267 = vunpack.c.l.b16 %v193
      %v268 = vunpack.c.l.b16 %v194
      %v269 = vunpack.c.l.b16 %v195
      %v270 = vunpack.c.l.b16 %v196
      %v271 = vunpack.c.l.b16 %v197
      %v272 = vunpack.c.l.b16 %v198
      %v273 = vunpack.c.l.b16 %v199
      %v274 = vunpack.c.l.b16 %v200
      %v275 = vunpack.c.l.b16 %v201
      %v276 = vunpack.c.l.b16 %v202
      %v277 = vunpack.c.l.b16 %v203
      %v278 = vunpack.c.l.b16 %v204
      %v279 = vunpack.c.l.b16 %v205
      %v280 = vunpack.c.l.b16 %v206
      %v281 = vunpack.c.l.b16 %v207
      %v282 = vunpack.c.l.b16 %v208
      %v283 = vunpack.c.l.b16 %v209
      %v284 = vunpack.c.l.b16 %v210
      %v285 = vunpack.c.l.b16 %v211
      %v286 = vunpack.c.l.b16 %v212
      %v287 = vunpack.c.l.b16 %v213
      %v288 = vunpack.c.l.b16 %v214
      %v289 = vunpack.c.l.b16 %v215
      %v290 = vunpack.c.l.b16 %v216
      %v291 = vunpack.c.l.b16 %v217
      %v292 = vunpack.c.l.b16 %v218
      %v293 = vunpack.c.l.b16 %v219
      %v294 = vunpack.c.l.b16 %v220
      %v295 = vunpack.c.l.b16 %v221
      %v296 = vunpack.c.l.b16 %v222
      %v297 = vpack.c.b16 %v266, %v265
      %v298 = vpack.c.b16 %v268, %v267
      %v299 = vpack.c.b16 %v270, %v269
      %v300 = vpack.c.b16 %v272, %v271
      %v301 = vpack.c.b16 %v274, %v273
      %v302 = vpack.c.b16 %v276, %v275
      %v303 = vpack.c.b16 %v278, %v277
      %v304 = vpack.c.b16 %v280, %v279
      %v305 = vpack.c.b16 %v282, %v281
      %v306 = vpack.c.b16 %v284, %v283
      %v307 = vpack.c.b16 %v286, %v285
      %v308 = vpack.c.b16 %v288, %v287
      %v309 = vpack.c.b16 %v290, %v289
      %v310 = vpack.c.b16 %v292, %v291
      %v311 = vpack.c.b16 %v294, %v293
      %v312 = vpack.c.b16 %v296, %v295
      %329 = vmatprep.subr.bf16.mxu0 0
      %330 = vmatpush1.bf16.msra.mxu0 %v297
      %331 = vmatprep.subr.bf16.mxu0 0
      %332 = vmatpush1.bf16.msra.mxu0 %v298
      %333 = vmatprep.subr.bf16.mxu0 0
      %334 = vmatpush1.bf16.msra.mxu0 %v299
      %335 = vmatprep.subr.bf16.mxu0 0
      %336 = vmatpush1.bf16.msra.mxu0 %v300
      %337 = vmatprep.subr.bf16.mxu0 0
      %338 = vmatpush1.bf16.msra.mxu0 %v301
      %339 = vmatprep.subr.bf16.mxu0 0
      %340 = vmatpush1.bf16.msra.mxu0 %v302
      %341 = vmatprep.subr.bf16.mxu0 0
      %342 = vmatpush1.bf16.msra.mxu0 %v303
      %343 = vmatprep.subr.bf16.mxu0 0
      %344 = vmatpush1.bf16.msra.mxu0 %v304
      %345 = vmatprep.subr.bf16.mxu0 0
      %346 = vmatpush1.bf16.msra.mxu0 %v305
      %347 = vmatprep.subr.bf16.mxu0 0
      %348 = vmatpush1.bf16.msra.mxu0 %v306
      %349 = vmatprep.subr.bf16.mxu0 0
      %350 = vmatpush1.bf16.msra.mxu0 %v307
      %351 = vmatprep.subr.bf16.mxu0 0
      %352 = vmatpush1.bf16.msra.mxu0 %v308
      %353 = vmatprep.subr.bf16.mxu0 0
      %354 = vmatpush1.bf16.msra.mxu0 %v309
      %355 = vmatprep.subr.bf16.mxu0 0
      %356 = vmatpush1.bf16.msra.mxu0 %v310
      %357 = vmatprep.subr.bf16.mxu0 0
      %358 = vmatpush1.bf16.msra.mxu0 %v311
      %359 = vmatprep.subr.bf16.mxu0 0
      %360 = vmatpush1.bf16.msra.mxu0 %v312
      %361 = vmatprep.mubr.bf16.mxu0 %v230
      %362 = vmatmul.mubr.bf16.gmra.mrb[0].mxu0 %v229
      %v363 = vpop.f32.mrb[0].mxu0
      %v364 = vadd.f32 0.0, %v363
      %v365 = vpop.f32.mrb[0].mxu0
      %v366 = vpop.f32.mrb[0].mxu0
      %v367 = vadd.f32 0.0, %v366
      %v368 = vpop.f32.mrb[0].mxu0
      %369 = vdwg.mxu0
      %v370 = vpack.c.bf16 %v367, %v364
      %v372 = vunpack.c.l.b16 %v370
      %v373 = vunpack.c.h.b16 %v370
      %v374 = vpack.c.b16 %v372, %v372
      %v375 = vpack.c.b16 %v373, %v373
      %378 = vst [vmem:[%s182] sm:$0xf] %v374
      %379 = vst [vmem:[%s182 + $0x4] sm:$0xf] %v375
      %v380 = vunpack.c.l.bf16 %v370
      %v381 = vunpack.c.h.bf16 %v370
      %v382 = vadd.f32 %v380, %v381
      %v383 = vrot.slane %v382, 4
      %v384 = vadd.f32 %v382, %v383
      %v385 = vrot.slane %v384, 2
      %v386 = vadd.f32 %v384, %v385
      %v387 = vrot.slane %v386, 1
      %v388 = vadd.f32 %v386, %v387
      %389 = vst [vmem:[%s187] sm:$0x1] %v388
      %v390 = vmul.f32 %v380, %v380
      %v391 = vmul.f32 %v381, %v381
      %v392 = vadd.f32 %v390, %v391
      %v393 = vrot.slane %v392, 4
      %v394 = vadd.f32 %v392, %v393
      %v395 = vrot.slane %v394, 2
      %v396 = vadd.f32 %v394, %v395
      %v397 = vrot.slane %v396, 1
      %v398 = vadd.f32 %v396, %v397
      %399 = vst [vmem:[%s187 + $0x1] sm:$0x1] %v398
      %s400 = smul.u32 2, %s15
      %p401 = scmp.lt.s32.totalorder %s400, 3
      %s402 = scalar_select %p401, %s400, 3
      %s403 = smul.addr %s402, 4
      %s404 = scalar_lea.vmem %s2, %s403
      %p405 = scmp.lt.s32.totalorder %s15, 1
      %s406 = scalar_select %p405, %s15, 1
      %s407 = smul.addr %s406, 8
      %s408 = scalar_lea.vmem %s3, %s407
      // Predicated region
      $region29: #{_lambda_.11} parent=27 // pred_check
        %p409 = pneg %p80
      $region30: #{_lambda_.11} parent=27 // pred_check_branch
        %411 = sbr.rel (%p409) target = $region32
      $region31: #{_lambda_.11} parent=27 // pred_region
        %s412 = smul.u32 2, %s15
      $region32: #{_lambda_.11} parent=27 // pred_fallthru
        _
      // Predicated region
      $region33: #{_lambda_.11} parent=27 // pred_check
        %p413 = pneg %p106
      $region34: #{_lambda_.11} parent=27 // pred_check_branch
        %415 = sbr.rel (%p413) target = $region36
      $region35: #{_lambda_.11} parent=27 // pred_region
        _
      $region36: #{_lambda_.11} parent=27 // pred_fallthru
        _
    $region28: #{_lambda_.11} parent=5 // pred_fallthru
      _
    %p416 = scmp.le.s32.totalorder 2, %s10
    // Predicated region
    $region37: #{_lambda_.11} parent=5 // pred_check
      %p417 = pneg %p416
    $region38: #{_lambda_.11} parent=5 // pred_check_branch
      %419 = sbr.rel (%p417) target = $region40
    $region39: #{_lambda_.11} parent=5 // pred_region
      %s420 = ssub.s32 %s10, 2
      // Predicated region
      $region41: #{_lambda_.11} parent=39 // pred_check
        %p421 = pneg %p86
      $region42: #{_lambda_.11} parent=39 // pred_check_branch
        %423 = sbr.rel (%p421) target = $region44
      $region43: #{_lambda_.11} parent=39 // pred_region
        %s424 = smul.u32 2, %s16
        %p425 = scmp.lt.s32.totalorder %s424, 3
        %s426 = scalar_select %p425, %s424, 3
        %s427 = smul.addr %s426, 4
        %s428 = scalar_lea.vmem %s2, %s427
      $region44: #{_lambda_.11} parent=39 // pred_fallthru
        _
      // Predicated region
      $region45: #{_lambda_.11} parent=39 // pred_check
        %p429 = pneg %p112
      $region46: #{_lambda_.11} parent=39 // pred_check_branch
        %431 = sbr.rel (%p429) target = $region48
      $region47: #{_lambda_.11} parent=39 // pred_region
        %p432 = scmp.lt.s32.totalorder %s16, 1
        %s433 = scalar_select %p432, %s16, 1
        %s434 = smul.addr %s433, 8
        %s435 = scalar_lea.vmem %s3, %s434
      $region48: #{_lambda_.11} parent=39 // pred_fallthru
        _
    $region40: #{_lambda_.11} parent=5 // pred_fallthru
      _
  $region6: #{_lambda_.11} parent=0 // loop_footer
    %s14 = sadd.s32 1, %s10
  $region7: #{_lambda_.11} parent=0 // loop_footer_branch
    %9 = sbr.rel target = $region3
  $region8: #{_lambda_.11} parent=0 // loop_exit
    _

// kernel: _lambda_.13
$region0: #{_lambda_.13}
  #allocation0 [shape = 'u32[]', space=smem, size = 0x4, offset = 0x4, fixed_abs, tag = 'smem constant byte address 0x4 - core index']
  #allocation1 [shape = 'u32[144,128]{1,0:T(1,128)}', space=vmem, size = 0x12000, scoped, tag = 'internal scratch']
  %s0 = inlined_call_operand.vmem [shape: bf16[32,512], index: 0, kind: input, shape index: {}]
  %s1 = inlined_call_operand.vmem [shape: bf16[512,128], index: 1, kind: input, shape index: {}]
  %s2 = inlined_call_operand.vmem [shape: bf16[32,128], index: 2, kind: output, shape index: {0}]
  %s3 = inlined_call_operand.vmem [shape: f32[16,128], index: 3, kind: output, shape index: {1}]
  %4 = xla_tuple %s2, %s3
  %s5 = sld [smem:[#allocation0]]
  $region49: #{_lambda_.13} parent=0
    _
  %s7 = ssub.s32 1, %s5
  %s8 = scalar_select 0, %s7, %s5
  loop: start=0, step=1, limit=4
  $region2: #{_lambda_.13} parent=0 // loop_pre_header
    _
  $region3: #{_lambda_.13} parent=0 // loop_header
    %s10 = sphi 0, %s14
    %p11 = scmp.ge.s32.totalorder %s10, 4
    %s20 = sphi 0, %s22
    %s23 = sphi 0, %s20
    %s24 = sphi 0, %s23
    %s40 = sphi 0, %s24
    %s44 = sphi 0, %s44
    %s46 = sphi 0, %s44
    %s47 = sphi 0, %s46
    %s61 = sphi 0, %s47
    %s67 = sphi 0, %s69
    %s70 = sphi 0, %s67
    %s71 = sphi 0, %s70
    %s87 = sphi 0, %s71
    %s93 = sphi 0, %s95
    %s96 = sphi 0, %s93
    %s97 = sphi 0, %s96
    %s113 = sphi 0, %s97
  $region4: #{_lambda_.13} parent=0 // loop_header_branch
    %13 = sbr.rel (%p11) target = $region8
  $region5: #{_lambda_.13} parent=0 // loop_body
    %s15 = ssub.s32 %s10, 1
    %s16 = ssub.s32 %s10, 2
    %s17 = sadd.s32 %s10, 1
    %s18 = ssub.s32 %s10, %s17
    %p19 = scmp.eq.s32.totalorder %s18, 0
    %s21 = sadd.s32 %s20, 1
    %s22 = scalar_select %p19, %s20, %s21
    %p25 = pneg %p19
    %p26 = scmp.eq.s32.totalorder %s10, 1
    %p27 = por %p25, %p26
    %p28 = scmp.ne.s32.totalorder %s20, %s23
    %p29 = scmp.eq.s32.totalorder %s10, 0
    %p30 = por %p28, %p29
    %p31 = scmp.ne.s32.totalorder %s20, %s23
    %p32 = scmp.eq.s32.totalorder %s15, 1
    %p33 = por %p31, %p32
    %p34 = scmp.ne.s32.totalorder %s23, %s24
    %p35 = scmp.eq.s32.totalorder %s15, 0
    %p36 = por %p34, %p35
    %p37 = scmp.ne.s32.totalorder %s23, %s24
    %p38 = scmp.eq.s32.totalorder %s16, 1
    %p39 = por %p37, %p38
    %p41 = scmp.ne.s32.totalorder %s24, %s40
    %p42 = scmp.eq.s32.totalorder %s16, 0
    %p43 = por %p41, %p42
    %s45 = sadd.s32 %s44, 1
    %p48 = scmp.eq.s32.totalorder %s10, 1
    %p49 = scmp.ne.s32.totalorder %s44, %s46
    %p50 = scmp.eq.s32.totalorder %s10, 0
    %p51 = por %p49, %p50
    %p52 = scmp.ne.s32.totalorder %s44, %s46
    %p53 = scmp.eq.s32.totalorder %s15, 1
    %p54 = por %p52, %p53
    %p55 = scmp.ne.s32.totalorder %s46, %s47
    %p56 = scmp.eq.s32.totalorder %s15, 0
    %p57 = por %p55, %p56
    %p58 = scmp.ne.s32.totalorder %s46, %s47
    %p59 = scmp.eq.s32.totalorder %s16, 1
    %p60 = por %p58, %p59
    %p62 = scmp.ne.s32.totalorder %s47, %s61
    %p63 = scmp.eq.s32.totalorder %s16, 0
    %p64 = por %p62, %p63
    %s65 = ssub.s32 %s10, %s17
    %p66 = scmp.eq.s32.totalorder %s65, 0
    %s68 = sadd.s32 %s67, 1
    %s69 = scalar_select %p66, %s67, %s68
    %p72 = pneg %p66
    %p73 = scmp.eq.s32.totalorder %s10, 1
    %p74 = por %p72, %p73
    %p75 = scmp.ne.s32.totalorder %s67, %s70
    %p76 = scmp.eq.s32.totalorder %s10, 0
    %p77 = por %p75, %p76
    %p78 = scmp.ne.s32.totalorder %s67, %s70
    %p79 = scmp.eq.s32.totalorder %s15, 1
    %p80 = por %p78, %p79
    %p81 = scmp.ne.s32.totalorder %s70, %s71
    %p82 = scmp.eq.s32.totalorder %s15, 0
    %p83 = por %p81, %p82
    %p84 = scmp.ne.s32.totalorder %s70, %s71
    %p85 = scmp.eq.s32.totalorder %s16, 1
    %p86 = por %p84, %p85
    %p88 = scmp.ne.s32.totalorder %s71, %s87
    %p89 = scmp.eq.s32.totalorder %s16, 0
    %p90 = por %p88, %p89
    %s91 = ssub.s32 %s10, %s17
    %p92 = scmp.eq.s32.totalorder %s91, 0
    %s94 = sadd.s32 %s93, 1
    %s95 = scalar_select %p92, %s93, %s94
    %p98 = pneg %p92
    %p99 = scmp.eq.s32.totalorder %s10, 1
    %p100 = por %p98, %p99
    %p101 = scmp.ne.s32.totalorder %s93, %s96
    %p102 = scmp.eq.s32.totalorder %s10, 0
    %p103 = por %p101, %p102
    %p104 = scmp.ne.s32.totalorder %s93, %s96
    %p105 = scmp.eq.s32.totalorder %s15, 1
    %p106 = por %p104, %p105
    %p107 = scmp.ne.s32.totalorder %s96, %s97
    %p108 = scmp.eq.s32.totalorder %s15, 0
    %p109 = por %p107, %p108
    %p110 = scmp.ne.s32.totalorder %s96, %s97
    %p111 = scmp.eq.s32.totalorder %s16, 1
    %p112 = por %p110, %p111
    %p114 = scmp.ne.s32.totalorder %s97, %s113
    %p115 = scmp.eq.s32.totalorder %s16, 0
    %p116 = por %p114, %p115
    %p117 = scmp.le.s32.totalorder 1, %s10
    %p118 = scmp.lt.s32.totalorder %s10, 3
    %p119 = pnand %p117, %p118
    %p120 = pneg %p119
    // Predicated region
    $region9: #{_lambda_.13} parent=5 // pred_check
      _
    $region10: #{_lambda_.13} parent=5 // pred_check_branch
      %122 = sbr.rel (%p119) target = $region12
    $region11: #{_lambda_.13} parent=5 // pred_region
      %s123 = ssub.s32 %s10, 1
      // Predicated region
      $region13: #{_lambda_.13} parent=11 // pred_check
        %p124 = pneg %p57
      $region14: #{_lambda_.13} parent=11 // pred_check_branch
        %126 = sbr.rel (%p124) target = $region16
      $region15: #{_lambda_.13} parent=11 // pred_region
        _
      $region16: #{_lambda_.13} parent=11 // pred_fallthru
        _
    $region12: #{_lambda_.13} parent=5 // pred_fallthru
      _
    %p127 = scmp.lt.s32.totalorder %s10, 2
    // Predicated region
    $region17: #{_lambda_.13} parent=5 // pred_check
      %p128 = pneg %p127
    $region18: #{_lambda_.13} parent=5 // pred_check_branch
      %130 = sbr.rel (%p128) target = $region20
    $region19: #{_lambda_.13} parent=5 // pred_region
      // Predicated region
      $region21: #{_lambda_.13} parent=19 // pred_check
        %p131 = pneg %p30
      $region22: #{_lambda_.13} parent=19 // pred_check_branch
        %133 = sbr.rel (%p131) target = $region24
      $region23: #{_lambda_.13} parent=19 // pred_region
        %s134 = smul.u32 2, %s10
        %p135 = scmp.lt.s32.totalorder %s134, 3
        %s136 = scalar_select %p135, %s134, 3
        %s137 = smul.addr %s136, 4
        %s138 = smul.addr %s137, 4
        %s139 = scalar_lea.vmem %s0, %s138
        %s140 = smul.u32 2, %s10
      $region24: #{_lambda_.13} parent=19 // pred_fallthru
        _
    $region20: #{_lambda_.13} parent=5 // pred_fallthru
      _
    %p141 = scmp.le.s32.totalorder 1, %s10
    %p142 = scmp.lt.s32.totalorder %s10, 3
    %p143 = pnand %p141, %p142
    %p144 = pneg %p143
    // Predicated region
    $region25: #{_lambda_.13} parent=5 // pred_check
      _
    $region26: #{_lambda_.13} parent=5 // pred_check_branch
      %146 = sbr.rel (%p143) target = $region28
    $region27: #{_lambda_.13} parent=5 // pred_region
      %s147 = ssub.s32 %s10, 1
      %s148 = smul.u32 2, %s15
      %p149 = scmp.lt.s32.totalorder %s148, 3
      %s150 = scalar_select %p149, %s148, 3
      %s151 = smul.addr %s150, 4
      %s152 = smul.addr %s151, 4
      %s153 = scalar_lea.vmem %s0, %s152
      %p154 = pneg %p36
      %p155 = pneg %p33
      %p156 = pneg %p57
      %p157 = pneg %p54
      %p158 = pneg %p83
      %p159 = pneg %p80
      %s160 = smul.u32 2, %s15
      %p161 = scmp.lt.s32.totalorder %s160, 3
      %s162 = scalar_select %p161, %s160, 3
      %s163 = smul.addr %s162, 4
      %s164 = scalar_lea.vmem %s2, %s163
      %p165 = pneg %p109
      %p166 = pneg %p106
      %p167 = scmp.lt.s32.totalorder %s15, 1
      %s168 = scalar_select %p167, %s15, 1
      %s169 = smul.addr %s168, 8
      %s170 = scalar_lea.vmem %s3, %s169
      %s171 = smul.u32 2, %s15
      %p172 = scmp.lt.s32.totalorder %s171, 3
      %s173 = scalar_select %p172, %s171, 3
      %s174 = smul.addr %s173, 4
      %s175 = smul.addr %s174, 4
      %s176 = scalar_lea.vmem %s0, %s175
      %s177 = smul.u32 2, %s15
      %s178 = smul.u32 2, %s15
      %p179 = scmp.lt.s32.totalorder %s178, 3
      %s180 = scalar_select %p179, %s178, 3
      %s181 = smul.addr %s180, 4
      %s182 = scalar_lea.vmem %s2, %s181
      %s183 = smul.u32 2, %s15
      %p184 = scmp.lt.s32.totalorder %s15, 1
      %s185 = scalar_select %p184, %s15, 1
      %s186 = smul.addr %s185, 8
      %s187 = scalar_lea.vmem %s3, %s186
      %v189 = vld [vmem:[%s176] sm:$0xff]
      %v190 = vld [vmem:[%s176 + $0x8] sm:$0xff]
      %v191 = vld [vmem:[%s176 + $0x10] sm:$0xff]
      %v192 = vld [vmem:[%s176 + $0x18] sm:$0xff]
      %v193 = vld [vmem:[%s1] sm:$0xf]
      %v194 = vld [vmem:[%s1 + $0x4] sm:$0xf]
      %v195 = vld [vmem:[%s1 + $0x8] sm:$0xf]
      %v196 = vld [vmem:[%s1 + $0xc] sm:$0xf]
      %v197 = vld [vmem:[%s1 + $0x10] sm:$0xf]
      %v198 = vld [vmem:[%s1 + $0x14] sm:$0xf]
      %v199 = vld [vmem:[%s1 + $0x18] sm:$0xf]
      %v200 = vld [vmem:[%s1 + $0x1c] sm:$0xf]
      %v201 = vld [vmem:[%s1 + $0x20] sm:$0xf]
      %v202 = vld [vmem:[%s1 + $0x24] sm:$0xf]
      %v203 = vld [vmem:[%s1 + $0x28] sm:$0xf]
      %v204 = vld [vmem:[%s1 + $0x2c] sm:$0xf]
      %v205 = vld [vmem:[%s1 + $0x30] sm:$0xf]
      %v206 = vld [vmem:[%s1 + $0x34] sm:$0xf]
      %v207 = vld [vmem:[%s1 + $0x38] sm:$0xf]
      %v208 = vld [vmem:[%s1 + $0x3c] sm:$0xf]
      %v209 = vld [vmem:[%s1 + $0x40] sm:$0xf]
      %v210 = vld [vmem:[%s1 + $0x44] sm:$0xf]
      %v211 = vld [vmem:[%s1 + $0x48] sm:$0xf]
      %v212 = vld [vmem:[%s1 + $0x4c] sm:$0xf]
      %v213 = vld [vmem:[%s1 + $0x50] sm:$0xf]
      %v214 = vld [vmem:[%s1 + $0x54] sm:$0xf]
      %v215 = vld [vmem:[%s1 + $0x58] sm:$0xf]
      %v216 = vld [vmem:[%s1 + $0x5c] sm:$0xf]
      %v217 = vld [vmem:[%s1 + $0x60] sm:$0xf]
      %v218 = vld [vmem:[%s1 + $0x64] sm:$0xf]
      %v219 = vld [vmem:[%s1 + $0x68] sm:$0xf]
      %v220 = vld [vmem:[%s1 + $0x6c] sm:$0xf]
      %v221 = vld [vmem:[%s1 + $0x70] sm:$0xf]
      %v222 = vld [vmem:[%s1 + $0x74] sm:$0xf]
      %v223 = vld [vmem:[%s1 + $0x78] sm:$0xf]
      %v224 = vld [vmem:[%s1 + $0x7c] sm:$0xf]
      %v225 = vld [vmem:[%s1 + $0x80] sm:$0xf]
      %v226 = vld [vmem:[%s1 + $0x84] sm:$0xf]
      %v227 = vld [vmem:[%s1 + $0x88] sm:$0xf]
      %v228 = vld [vmem:[%s1 + $0x8c] sm:$0xf]
      %v229 = vld [vmem:[%s1 + $0x90] sm:$0xf]
      %v230 = vld [vmem:[%s1 + $0x94] sm:$0xf]
      %v231 = vld [vmem:[%s1 + $0x98] sm:$0xf]
      %v232 = vld [vmem:[%s1 + $0x9c] sm:$0xf]
      %v233 = vld [vmem:[%s1 + $0xa0] sm:$0xf]
      %v234 = vld [vmem:[%s1 + $0xa4] sm:$0xf]
      %v235 = vld [vmem:[%s1 + $0xa8] sm:$0xf]
      %v236 = vld [vmem:[%s1 + $0xac] sm:$0xf]
      %v237 = vld [vmem:[%s1 + $0xb0] sm:$0xf]
      %v238 = vld [vmem:[%s1 + $0xb4] sm:$0xf]
      %v239 = vld [vmem:[%s1 + $0xb8] sm:$0xf]
      %v240 = vld [vmem:[%s1 + $0xbc] sm:$0xf]
      %v241 = vld [vmem:[%s1 + $0xc0] sm:$0xf]
      %v242 = vld [vmem:[%s1 + $0xc4] sm:$0xf]
      %v243 = vld [vmem:[%s1 + $0xc8] sm:$0xf]
      %v244 = vld [vmem:[%s1 + $0xcc] sm:$0xf]
      %v245 = vld [vmem:[%s1 + $0xd0] sm:$0xf]
      %v246 = vld [vmem:[%s1 + $0xd4] sm:$0xf]
      %v247 = vld [vmem:[%s1 + $0xd8] sm:$0xf]
      %v248 = vld [vmem:[%s1 + $0xdc] sm:$0xf]
      %v249 = vld [vmem:[%s1 + $0xe0] sm:$0xf]
      %v250 = vld [vmem:[%s1 + $0xe4] sm:$0xf]
      %v251 = vld [vmem:[%s1 + $0xe8] sm:$0xf]
      %v252 = vld [vmem:[%s1 + $0xec] sm:$0xf]
      %v253 = vld [vmem:[%s1 + $0xf0] sm:$0xf]
      %v254 = vld [vmem:[%s1 + $0xf4] sm:$0xf]
      %v255 = vld [vmem:[%s1 + $0xf8] sm:$0xf]
      %v256 = vld [vmem:[%s1 + $0xfc] sm:$0xf]
      %v261 = vunpack.c.l.b16 %v189
      %v262 = vunpack.c.h.b16 %v189
      %v263 = vunpack.c.l.b16 %v190
      %v264 = vunpack.c.h.b16 %v190
      %v265 = vunpack.c.l.b16 %v191
      %v266 = vunpack.c.h.b16 %v191
      %v267 = vunpack.c.l.b16 %v192
      %v268 = vunpack.c.h.b16 %v192
      %v269 = vpack.c.b16 %v265, %v261
      %v270 = vpack.c.b16 %v266, %v262
      %v271 = vpack.c.b16 %v267, %v263
      %v272 = vpack.c.b16 %v268, %v264
      %v341 = vunpack.c.l.b16 %v193
      %v342 = vunpack.c.l.b16 %v194
      %v343 = vunpack.c.l.b16 %v195
      %v344 = vunpack.c.l.b16 %v196
      %v345 = vunpack.c.l.b16 %v197
      %v346 = vunpack.c.l.b16 %v198
      %v347 = vunpack.c.l.b16 %v199
      %v348 = vunpack.c.l.b16 %v200
      %v349 = vunpack.c.l.b16 %v201
      %v350 = vunpack.c.l.b16 %v202
      %v351 = vunpack.c.l.b16 %v203
      %v352 = vunpack.c.l.b16 %v204
      %v353 = vunpack.c.l.b16 %v205
      %v354 = vunpack.c.l.b16 %v206
      %v355 = vunpack.c.l.b16 %v207
      %v356 = vunpack.c.l.b16 %v208
      %v357 = vunpack.c.l.b16 %v209
      %v358 = vunpack.c.l.b16 %v210
      %v359 = vunpack.c.l.b16 %v211
      %v360 = vunpack.c.l.b16 %v212
      %v361 = vunpack.c.l.b16 %v213
      %v362 = vunpack.c.l.b16 %v214
      %v363 = vunpack.c.l.b16 %v215
      %v364 = vunpack.c.l.b16 %v216
      %v365 = vunpack.c.l.b16 %v217
      %v366 = vunpack.c.l.b16 %v218
      %v367 = vunpack.c.l.b16 %v219
      %v368 = vunpack.c.l.b16 %v220
      %v369 = vunpack.c.l.b16 %v221
      %v370 = vunpack.c.l.b16 %v222
      %v371 = vunpack.c.l.b16 %v223
      %v372 = vunpack.c.l.b16 %v224
      %v373 = vunpack.c.l.b16 %v225
      %v374 = vunpack.c.l.b16 %v226
      %v375 = vunpack.c.l.b16 %v227
      %v376 = vunpack.c.l.b16 %v228
      %v377 = vunpack.c.l.b16 %v229
      %v378 = vunpack.c.l.b16 %v230
      %v379 = vunpack.c.l.b16 %v231
      %v380 = vunpack.c.l.b16 %v232
      %v381 = vunpack.c.l.b16 %v233
      %v382 = vunpack.c.l.b16 %v234
      %v383 = vunpack.c.l.b16 %v235
      %v384 = vunpack.c.l.b16 %v236
      %v385 = vunpack.c.l.b16 %v237
      %v386 = vunpack.c.l.b16 %v238
      %v387 = vunpack.c.l.b16 %v239
      %v388 = vunpack.c.l.b16 %v240
      %v389 = vunpack.c.l.b16 %v241
      %v390 = vunpack.c.l.b16 %v242
      %v391 = vunpack.c.l.b16 %v243
      %v392 = vunpack.c.l.b16 %v244
      %v393 = vunpack.c.l.b16 %v245
      %v394 = vunpack.c.l.b16 %v246
      %v395 = vunpack.c.l.b16 %v247
      %v396 = vunpack.c.l.b16 %v248
      %v397 = vunpack.c.l.b16 %v249
      %v398 = vunpack.c.l.b16 %v250
      %v399 = vunpack.c.l.b16 %v251
      %v400 = vunpack.c.l.b16 %v252
      %v401 = vunpack.c.l.b16 %v253
      %v402 = vunpack.c.l.b16 %v254
      %v403 = vunpack.c.l.b16 %v255
      %v404 = vunpack.c.l.b16 %v256
      %v405 = vpack.c.b16 %v342, %v341
      %v406 = vpack.c.b16 %v344, %v343
      %v407 = vpack.c.b16 %v346, %v345
      %v408 = vpack.c.b16 %v348, %v347
      %v409 = vpack.c.b16 %v350, %v349
      %v410 = vpack.c.b16 %v352, %v351
      %v411 = vpack.c.b16 %v354, %v353
      %v412 = vpack.c.b16 %v356, %v355
      %v413 = vpack.c.b16 %v358, %v357
      %v414 = vpack.c.b16 %v360, %v359
      %v415 = vpack.c.b16 %v362, %v361
      %v416 = vpack.c.b16 %v364, %v363
      %v417 = vpack.c.b16 %v366, %v365
      %v418 = vpack.c.b16 %v368, %v367
      %v419 = vpack.c.b16 %v370, %v369
      %v420 = vpack.c.b16 %v372, %v371
      %v421 = vpack.c.b16 %v374, %v373
      %v422 = vpack.c.b16 %v376, %v375
      %v423 = vpack.c.b16 %v378, %v377
      %v424 = vpack.c.b16 %v380, %v379
      %v425 = vpack.c.b16 %v382, %v381
      %v426 = vpack.c.b16 %v384, %v383
      %v427 = vpack.c.b16 %v386, %v385
      %v428 = vpack.c.b16 %v388, %v387
      %v429 = vpack.c.b16 %v390, %v389
      %v430 = vpack.c.b16 %v392, %v391
      %v431 = vpack.c.b16 %v394, %v393
      %v432 = vpack.c.b16 %v396, %v395
      %v433 = vpack.c.b16 %v398, %v397
      %v434 = vpack.c.b16 %v400, %v399
      %v435 = vpack.c.b16 %v402, %v401
      %v436 = vpack.c.b16 %v404, %v403
      %469 = vmatprep.subr.bf16.mxu0 0
      %470 = vmatpush1.bf16.msra.mxu0 %v405
      %471 = vmatprep.subr.bf16.mxu0 0
      %472 = vmatpush1.bf16.msra.mxu0 %v406
      %473 = vmatprep.subr.bf16.mxu0 0
      %474 = vmatpush1.bf16.msra.mxu0 %v407
      %475 = vmatprep.subr.bf16.mxu0 0
      %476 = vmatpush1.bf16.msra.mxu0 %v408
      %477 = vmatprep.subr.bf16.mxu0 0
      %478 = vmatpush1.bf16.msra.mxu0 %v409
      %479 = vmatprep.subr.bf16.mxu0 0
      %480 = vmatpush1.bf16.msra.mxu0 %v410
      %481 = vmatprep.subr.bf16.mxu0 0
      %482 = vmatpush1.bf16.msra.mxu0 %v411
      %483 = vmatprep.subr.bf16.mxu0 0
      %484 = vmatpush1.bf16.msra.mxu0 %v412
      %485 = vmatprep.subr.bf16.mxu0 0
      %486 = vmatpush1.bf16.msra.mxu0 %v413
      %487 = vmatprep.subr.bf16.mxu0 0
      %488 = vmatpush1.bf16.msra.mxu0 %v414
      %489 = vmatprep.subr.bf16.mxu0 0
      %490 = vmatpush1.bf16.msra.mxu0 %v415
      %491 = vmatprep.subr.bf16.mxu0 0
      %492 = vmatpush1.bf16.msra.mxu0 %v416
      %493 = vmatprep.subr.bf16.mxu0 0
      %494 = vmatpush1.bf16.msra.mxu0 %v417
      %495 = vmatprep.subr.bf16.mxu0 0
      %496 = vmatpush1.bf16.msra.mxu0 %v418
      %497 = vmatprep.subr.bf16.mxu0 0
      %498 = vmatpush1.bf16.msra.mxu0 %v419
      %499 = vmatprep.subr.bf16.mxu0 0
      %500 = vmatpush1.bf16.msra.mxu0 %v420
      %501 = vmatprep.mubr.bf16.mxu0 %v270
      %502 = vmatmul.mubr.bf16.gmra.mrb[0].mxu0 %v269
      %v503 = vpop.f32.mrb[0].mxu0
      %v504 = vadd.f32 0.0, %v503
      %v505 = vpop.f32.mrb[0].mxu0
      %v506 = vpop.f32.mrb[0].mxu0
      %v507 = vadd.f32 0.0, %v506
      %v508 = vpop.f32.mrb[0].mxu0
      %509 = vdwg.mxu0
      %510 = vmatprep.subr.bf16.mxu0 0
      %511 = vmatpush1.bf16.msra.mxu0 %v421
      %512 = vmatprep.subr.bf16.mxu0 0
      %513 = vmatpush1.bf16.msra.mxu0 %v422
      %514 = vmatprep.subr.bf16.mxu0 0
      %515 = vmatpush1.bf16.msra.mxu0 %v423
      %516 = vmatprep.subr.bf16.mxu0 0
      %517 = vmatpush1.bf16.msra.mxu0 %v424
      %518 = vmatprep.subr.bf16.mxu0 0
      %519 = vmatpush1.bf16.msra.mxu0 %v425
      %520 = vmatprep.subr.bf16.mxu0 0
      %521 = vmatpush1.bf16.msra.mxu0 %v426
      %522 = vmatprep.subr.bf16.mxu0 0
      %523 = vmatpush1.bf16.msra.mxu0 %v427
      %524 = vmatprep.subr.bf16.mxu0 0
      %525 = vmatpush1.bf16.msra.mxu0 %v428
      %526 = vmatprep.subr.bf16.mxu0 0
      %527 = vmatpush1.bf16.msra.mxu0 %v429
      %528 = vmatprep.subr.bf16.mxu0 0
      %529 = vmatpush1.bf16.msra.mxu0 %v430
      %530 = vmatprep.subr.bf16.mxu0 0
      %531 = vmatpush1.bf16.msra.mxu0 %v431
      %532 = vmatprep.subr.bf16.mxu0 0
      %533 = vmatpush1.bf16.msra.mxu0 %v432
      %534 = vmatprep.subr.bf16.mxu0 0
      %535 = vmatpush1.bf16.msra.mxu0 %v433
      %536 = vmatprep.subr.bf16.mxu0 0
      %537 = vmatpush1.bf16.msra.mxu0 %v434
      %538 = vmatprep.subr.bf16.mxu0 0
      %539 = vmatpush1.bf16.msra.mxu0 %v435
      %540 = vmatprep.subr.bf16.mxu0 0
      %541 = vmatpush1.bf16.msra.mxu0 %v436
      %542 = vmatprep.mubr.bf16.mxu0 %v272
      %543 = vmatmul.mubr.bf16.gmra.mrb[0].mxu0 %v271
      %v544 = vpop.f32.mrb[0].mxu0
      %v545 = vadd.f32 %v504, %v544
      %v546 = vpop.f32.mrb[0].mxu0
      %v547 = vpop.f32.mrb[0].mxu0
      %v548 = vadd.f32 %v507, %v547
      %v549 = vpop.f32.mrb[0].mxu0
      %550 = vdwg.mxu0
      %v551 = vpack.c.bf16 %v548, %v545
      %v553 = vunpack.c.l.b16 %v551
      %v554 = vunpack.c.h.b16 %v551
      %v555 = vpack.c.b16 %v553, %v553
      %v556 = vpack.c.b16 %v554, %v554
      %559 = vst [vmem:[%s182] sm:$0xf] %v555
      %560 = vst [vmem:[%s182 + $0x4] sm:$0xf] %v556
      %v561 = vunpack.c.l.bf16 %v551
      %v562 = vunpack.c.h.bf16 %v551
      %v563 = vadd.f32 %v561, %v562
      %v564 = vrot.slane %v563, 4
      %v565 = vadd.f32 %v563, %v564
      %v566 = vrot.slane %v565, 2
      %v567 = vadd.f32 %v565, %v566
      %v568 = vrot.slane %v567, 1
      %v569 = vadd.f32 %v567, %v568
      %570 = vst [vmem:[%s187] sm:$0x1] %v569
      %v571 = vmul.f32 %v561, %v561
      %v572 = vmul.f32 %v562, %v562
      %v573 = vadd.f32 %v571, %v572
      %v574 = vrot.slane %v573, 4
      %v575 = vadd.f32 %v573, %v574
      %v576 = vrot.slane %v575, 2
      %v577 = vadd.f32 %v575, %v576
      %v578 = vrot.slane %v577, 1
      %v579 = vadd.f32 %v577, %v578
      %580 = vst [vmem:[%s187 + $0x1] sm:$0x1] %v579
      %s581 = smul.u32 2, %s15
      %p582 = scmp.lt.s32.totalorder %s581, 3
      %s583 = scalar_select %p582, %s581, 3
      %s584 = smul.addr %s583, 4
      %s585 = scalar_lea.vmem %s2, %s584
      %p586 = scmp.lt.s32.totalorder %s15, 1
      %s587 = scalar_select %p586, %s15, 1
      %s588 = smul.addr %s587, 8
      %s589 = scalar_lea.vmem %s3, %s588
      // Predicated region
      $region29: #{_lambda_.13} parent=27 // pred_check
        %p590 = pneg %p80
      $region30: #{_lambda_.13} parent=27 // pred_check_branch
        %592 = sbr.rel (%p590) target = $region32
      $region31: #{_lambda_.13} parent=27 // pred_region
        %s593 = smul.u32 2, %s15
      $region32: #{_lambda_.13} parent=27 // pred_fallthru
        _
      // Predicated region
      $region33: #{_lambda_.13} parent=27 // pred_check
        %p594 = pneg %p106
      $region34: #{_lambda_.13} parent=27 // pred_check_branch
        %596 = sbr.rel (%p594) target = $region36
      $region35: #{_lambda_.13} parent=27 // pred_region
        _
      $region36: #{_lambda_.13} parent=27 // pred_fallthru
        _
    $region28: #{_lambda_.13} parent=5 // pred_fallthru
      _
    %p597 = scmp.le.s32.totalorder 2, %s10
    // Predicated region
    $region37: #{_lambda_.13} parent=5 // pred_check
      %p598 = pneg %p597
    $region38: #{_lambda_.13} parent=5 // pred_check_branch
      %600 = sbr.rel (%p598) target = $region40
    $region39: #{_lambda_.13} parent=5 // pred_region
      %s601 = ssub.s32 %s10, 2
      // Predicated region
      $region41: #{_lambda_.13} parent=39 // pred_check
        %p602 = pneg %p86
      $region42: #{_lambda_.13} parent=39 // pred_check_branch
        %604 = sbr.rel (%p602) target = $region44
      $region43: #{_lambda_.13} parent=39 // pred_region
        %s605 = smul.u32 2, %s16
        %p606 = scmp.lt.s32.totalorder %s605, 3
        %s607 = scalar_select %p606, %s605, 3
        %s608 = smul.addr %s607, 4
        %s609 = scalar_lea.vmem %s2, %s608
      $region44: #{_lambda_.13} parent=39 // pred_fallthru
        _
      // Predicated region
      $region45: #{_lambda_.13} parent=39 // pred_check
        %p610 = pneg %p112
      $region46: #{_lambda_.13} parent=39 // pred_check_branch
        %612 = sbr.rel (%p610) target = $region48
      $region47: #{_lambda_.13} parent=39 // pred_region
        %p613 = scmp.lt.s32.totalorder %s16, 1
        %s614 = scalar_select %p613, %s16, 1
        %s615 = smul.addr %s614, 8
        %s616 = scalar_lea.vmem %s3, %s615
      $region48: #{_lambda_.13} parent=39 // pred_fallthru
        _
    $region40: #{_lambda_.13} parent=5 // pred_fallthru
      _
  $region6: #{_lambda_.13} parent=0 // loop_footer
    %s14 = sadd.s32 1, %s10
  $region7: #{_lambda_.13} parent=0 // loop_footer_branch
    %9 = sbr.rel target = $region3
  $region8: #{_lambda_.13} parent=0 // loop_exit
    _

// kernel: _lambda_.15
$region0: #{_lambda_.15}
  #allocation0 [shape = 'u32[]', space=smem, size = 0x4, offset = 0x4, fixed_abs, tag = 'smem constant byte address 0x4 - core index']
  #allocation1 [shape = 'u32[144,128]{1,0:T(1,128)}', space=vmem, size = 0x12000, scoped, tag = 'internal scratch']
  %s0 = inlined_call_operand.vmem [shape: bf16[32,128], index: 0, kind: input, shape index: {}]
  %s1 = inlined_call_operand.vmem [shape: bf16[128,128], index: 1, kind: input, shape index: {}]
  %s2 = inlined_call_operand.vmem [shape: f32[1,128], index: 2, kind: input, shape index: {}]
  %s3 = inlined_call_operand.vmem [shape: f32[32,128], index: 3, kind: output, shape index: {}]
  %s4 = sld [smem:[#allocation0]]
  $region45: #{_lambda_.15} parent=0
    _
  %s6 = ssub.s32 1, %s4
  %s7 = scalar_select 0, %s6, %s4
  loop: start=0, step=1, limit=4
  $region2: #{_lambda_.15} parent=0 // loop_pre_header
    _
  $region3: #{_lambda_.15} parent=0 // loop_header
    %s9 = sphi 0, %s13
    %p10 = scmp.ge.s32.totalorder %s9, 4
    %s19 = sphi 0, %s21
    %s22 = sphi 0, %s19
    %s23 = sphi 0, %s22
    %s39 = sphi 0, %s23
    %s43 = sphi 0, %s43
    %s45 = sphi 0, %s43
    %s46 = sphi 0, %s45
    %s60 = sphi 0, %s46
    %s64 = sphi 0, %s64
    %s66 = sphi 0, %s64
    %s67 = sphi 0, %s66
    %s81 = sphi 0, %s67
    %s87 = sphi 0, %s89
    %s90 = sphi 0, %s87
    %s91 = sphi 0, %s90
    %s107 = sphi 0, %s91
  $region4: #{_lambda_.15} parent=0 // loop_header_branch
    %12 = sbr.rel (%p10) target = $region8
  $region5: #{_lambda_.15} parent=0 // loop_body
    %s14 = ssub.s32 %s9, 1
    %s15 = ssub.s32 %s9, 2
    %s16 = sadd.s32 %s9, 1
    %s17 = ssub.s32 %s9, %s16
    %p18 = scmp.eq.s32.totalorder %s17, 0
    %s20 = sadd.s32 %s19, 1
    %s21 = scalar_select %p18, %s19, %s20
    %p24 = pneg %p18
    %p25 = scmp.eq.s32.totalorder %s9, 1
    %p26 = por %p24, %p25
    %p27 = scmp.ne.s32.totalorder %s19, %s22
    %p28 = scmp.eq.s32.totalorder %s9, 0
    %p29 = por %p27, %p28
    %p30 = scmp.ne.s32.totalorder %s19, %s22
    %p31 = scmp.eq.s32.totalorder %s14, 1
    %p32 = por %p30, %p31
    %p33 = scmp.ne.s32.totalorder %s22, %s23
    %p34 = scmp.eq.s32.totalorder %s14, 0
    %p35 = por %p33, %p34
    %p36 = scmp.ne.s32.totalorder %s22, %s23
    %p37 = scmp.eq.s32.totalorder %s15, 1
    %p38 = por %p36, %p37
    %p40 = scmp.ne.s32.totalorder %s23, %s39
    %p41 = scmp.eq.s32.totalorder %s15, 0
    %p42 = por %p40, %p41
    %s44 = sadd.s32 %s43, 1
    %p47 = scmp.eq.s32.totalorder %s9, 1
    %p48 = scmp.ne.s32.totalorder %s43, %s45
    %p49 = scmp.eq.s32.totalorder %s9, 0
    %p50 = por %p48, %p49
    %p51 = scmp.ne.s32.totalorder %s43, %s45
    %p52 = scmp.eq.s32.totalorder %s14, 1
    %p53 = por %p51, %p52
    %p54 = scmp.ne.s32.totalorder %s45, %s46
    %p55 = scmp.eq.s32.totalorder %s14, 0
    %p56 = por %p54, %p55
    %p57 = scmp.ne.s32.totalorder %s45, %s46
    %p58 = scmp.eq.s32.totalorder %s15, 1
    %p59 = por %p57, %p58
    %p61 = scmp.ne.s32.totalorder %s46, %s60
    %p62 = scmp.eq.s32.totalorder %s15, 0
    %p63 = por %p61, %p62
    %s65 = sadd.s32 %s64, 1
    %p68 = scmp.eq.s32.totalorder %s9, 1
    %p69 = scmp.ne.s32.totalorder %s64, %s66
    %p70 = scmp.eq.s32.totalorder %s9, 0
    %p71 = por %p69, %p70
    %p72 = scmp.ne.s32.totalorder %s64, %s66
    %p73 = scmp.eq.s32.totalorder %s14, 1
    %p74 = por %p72, %p73
    %p75 = scmp.ne.s32.totalorder %s66, %s67
    %p76 = scmp.eq.s32.totalorder %s14, 0
    %p77 = por %p75, %p76
    %p78 = scmp.ne.s32.totalorder %s66, %s67
    %p79 = scmp.eq.s32.totalorder %s15, 1
    %p80 = por %p78, %p79
    %p82 = scmp.ne.s32.totalorder %s67, %s81
    %p83 = scmp.eq.s32.totalorder %s15, 0
    %p84 = por %p82, %p83
    %s85 = ssub.s32 %s9, %s16
    %p86 = scmp.eq.s32.totalorder %s85, 0
    %s88 = sadd.s32 %s87, 1
    %s89 = scalar_select %p86, %s87, %s88
    %p92 = pneg %p86
    %p93 = scmp.eq.s32.totalorder %s9, 1
    %p94 = por %p92, %p93
    %p95 = scmp.ne.s32.totalorder %s87, %s90
    %p96 = scmp.eq.s32.totalorder %s9, 0
    %p97 = por %p95, %p96
    %p98 = scmp.ne.s32.totalorder %s87, %s90
    %p99 = scmp.eq.s32.totalorder %s14, 1
    %p100 = por %p98, %p99
    %p101 = scmp.ne.s32.totalorder %s90, %s91
    %p102 = scmp.eq.s32.totalorder %s14, 0
    %p103 = por %p101, %p102
    %p104 = scmp.ne.s32.totalorder %s90, %s91
    %p105 = scmp.eq.s32.totalorder %s15, 1
    %p106 = por %p104, %p105
    %p108 = scmp.ne.s32.totalorder %s91, %s107
    %p109 = scmp.eq.s32.totalorder %s15, 0
    %p110 = por %p108, %p109
    %p111 = scmp.le.s32.totalorder 1, %s9
    %p112 = scmp.lt.s32.totalorder %s9, 3
    %p113 = pnand %p111, %p112
    %p114 = pneg %p113
    // Predicated region
    $region9: #{_lambda_.15} parent=5 // pred_check
      _
    $region10: #{_lambda_.15} parent=5 // pred_check_branch
      %116 = sbr.rel (%p113) target = $region12
    $region11: #{_lambda_.15} parent=5 // pred_region
      %s117 = ssub.s32 %s9, 1
      // Predicated region
      $region13: #{_lambda_.15} parent=11 // pred_check
        %p118 = pneg %p56
      $region14: #{_lambda_.15} parent=11 // pred_check_branch
        %120 = sbr.rel (%p118) target = $region16
      $region15: #{_lambda_.15} parent=11 // pred_region
        _
      $region16: #{_lambda_.15} parent=11 // pred_fallthru
        _
      // Predicated region
      $region17: #{_lambda_.15} parent=11 // pred_check
        %p121 = pneg %p77
      $region18: #{_lambda_.15} parent=11 // pred_check_branch
        %123 = sbr.rel (%p121) target = $region20
      $region19: #{_lambda_.15} parent=11 // pred_region
        _
      $region20: #{_lambda_.15} parent=11 // pred_fallthru
        _
    $region12: #{_lambda_.15} parent=5 // pred_fallthru
      _
    %p124 = scmp.lt.s32.totalorder %s9, 2
    // Predicated region
    $region21: #{_lambda_.15} parent=5 // pred_check
      %p125 = pneg %p124
    $region22: #{_lambda_.15} parent=5 // pred_check_branch
      %127 = sbr.rel (%p125) target = $region24
    $region23: #{_lambda_.15} parent=5 // pred_region
      // Predicated region
      $region25: #{_lambda_.15} parent=23 // pred_check
        %p128 = pneg %p29
      $region26: #{_lambda_.15} parent=23 // pred_check_branch
        %130 = sbr.rel (%p128) target = $region28
      $region27: #{_lambda_.15} parent=23 // pred_region
        %s131 = smul.u32 2, %s9
        %p132 = scmp.lt.s32.totalorder %s131, 3
        %s133 = scalar_select %p132, %s131, 3
        %s134 = smul.addr %s133, 4
        %s135 = scalar_lea.vmem %s0, %s134
        %s136 = smul.u32 2, %s9
      $region28: #{_lambda_.15} parent=23 // pred_fallthru
        _
    $region24: #{_lambda_.15} parent=5 // pred_fallthru
      _
    %p137 = scmp.le.s32.totalorder 1, %s9
    %p138 = scmp.lt.s32.totalorder %s9, 3
    %p139 = pnand %p137, %p138
    %p140 = pneg %p139
    // Predicated region
    $region29: #{_lambda_.15} parent=5 // pred_check
      _
    $region30: #{_lambda_.15} parent=5 // pred_check_branch
      %142 = sbr.rel (%p139) target = $region32
    $region31: #{_lambda_.15} parent=5 // pred_region
      %s143 = ssub.s32 %s9, 1
      %s144 = smul.u32 2, %s14
      %p145 = scmp.lt.s32.totalorder %s144, 3
      %s146 = scalar_select %p145, %s144, 3
      %s147 = smul.addr %s146, 4
      %s148 = scalar_lea.vmem %s0, %s147
      %p149 = pneg %p35
      %p150 = pneg %p32
      %p151 = pneg %p56
      %p152 = pneg %p53
      %p153 = pneg %p77
      %p154 = pneg %p74
      %p155 = pneg %p103
      %p156 = pneg %p100
      %s157 = smul.u32 2, %s14
      %p158 = scmp.lt.s32.totalorder %s157, 3
      %s159 = scalar_select %p158, %s157, 3
      %s160 = smul.addr %s159, 8
      %s161 = scalar_lea.vmem %s3, %s160
      %s162 = smul.u32 2, %s14
      %p163 = scmp.lt.s32.totalorder %s162, 3
      %s164 = scalar_select %p163, %s162, 3
      %s165 = smul.addr %s164, 4
      %s166 = scalar_lea.vmem %s0, %s165
      %s167 = smul.u32 2, %s14
      %s168 = smul.u32 2, %s14
      %p169 = scmp.lt.s32.totalorder %s168, 3
      %s170 = scalar_select %p169, %s168, 3
      %s171 = smul.addr %s170, 8
      %s172 = scalar_lea.vmem %s3, %s171
      %s173 = smul.u32 2, %s14
      %v175 = vld [vmem:[%s166] sm:$0xf]
      %v176 = vld [vmem:[%s166 + $0x4] sm:$0xf]
      %v177 = vld [vmem:[%s1] sm:$0xf]
      %v178 = vld [vmem:[%s1 + $0x4] sm:$0xf]
      %v179 = vld [vmem:[%s1 + $0x8] sm:$0xf]
      %v180 = vld [vmem:[%s1 + $0xc] sm:$0xf]
      %v181 = vld [vmem:[%s1 + $0x10] sm:$0xf]
      %v182 = vld [vmem:[%s1 + $0x14] sm:$0xf]
      %v183 = vld [vmem:[%s1 + $0x18] sm:$0xf]
      %v184 = vld [vmem:[%s1 + $0x1c] sm:$0xf]
      %v185 = vld [vmem:[%s1 + $0x20] sm:$0xf]
      %v186 = vld [vmem:[%s1 + $0x24] sm:$0xf]
      %v187 = vld [vmem:[%s1 + $0x28] sm:$0xf]
      %v188 = vld [vmem:[%s1 + $0x2c] sm:$0xf]
      %v189 = vld [vmem:[%s1 + $0x30] sm:$0xf]
      %v190 = vld [vmem:[%s1 + $0x34] sm:$0xf]
      %v191 = vld [vmem:[%s1 + $0x38] sm:$0xf]
      %v192 = vld [vmem:[%s1 + $0x3c] sm:$0xf]
      %v193 = vld [vmem:[%s2] sm:$0x1]
      %v195 = vlaneseq
      %v196 = vshrl.u32 %v195, 7
      %v197 = vsub.s32 0, %v196
      %v198 = vrot.slane %v193, %v197
      %v202 = vunpack.c.l.b16 %v175
      %v203 = vunpack.c.l.b16 %v176
      %v204 = vpack.c.b16 %v203, %v202
      %v222 = vunpack.c.l.b16 %v177
      %v223 = vunpack.c.l.b16 %v178
      %v224 = vunpack.c.l.b16 %v179
      %v225 = vunpack.c.l.b16 %v180
      %v226 = vunpack.c.l.b16 %v181
      %v227 = vunpack.c.l.b16 %v182
      %v228 = vunpack.c.l.b16 %v183
      %v229 = vunpack.c.l.b16 %v184
      %v230 = vunpack.c.l.b16 %v185
      %v231 = vunpack.c.l.b16 %v186
      %v232 = vunpack.c.l.b16 %v187
      %v233 = vunpack.c.l.b16 %v188
      %v234 = vunpack.c.l.b16 %v189
      %v235 = vunpack.c.l.b16 %v190
      %v236 = vunpack.c.l.b16 %v191
      %v237 = vunpack.c.l.b16 %v192
      %v238 = vpack.c.b16 %v223, %v222
      %v239 = vpack.c.b16 %v225, %v224
      %v240 = vpack.c.b16 %v227, %v226
      %v241 = vpack.c.b16 %v229, %v228
      %v242 = vpack.c.b16 %v231, %v230
      %v243 = vpack.c.b16 %v233, %v232
      %v244 = vpack.c.b16 %v235, %v234
      %v245 = vpack.c.b16 %v237, %v236
      %254 = vmatprep.subr.bf16.mxu0 0
      %255 = vmatpush1.bf16.msra.mxu0 %v238
      %256 = vmatprep.subr.bf16.mxu0 0
      %257 = vmatpush1.bf16.msra.mxu0 %v239
      %258 = vmatprep.subr.bf16.mxu0 0
      %259 = vmatpush1.bf16.msra.mxu0 %v240
      %260 = vmatprep.subr.bf16.mxu0 0
      %261 = vmatpush1.bf16.msra.mxu0 %v241
      %262 = vmatprep.subr.bf16.mxu0 0
      %263 = vmatpush1.bf16.msra.mxu0 %v242
      %264 = vmatprep.subr.bf16.mxu0 0
      %265 = vmatpush1.bf16.msra.mxu0 %v243
      %266 = vmatprep.subr.bf16.mxu0 0
      %267 = vmatpush1.bf16.msra.mxu0 %v244
      %268 = vmatprep.subr.bf16.mxu0 0
      %269 = vmatpush1.bf16.msra.mxu0 %v245
      %270 = vmatprep.subr.bf16.mxu0 0
      %271 = vmatpush1.bf16.msra.mxu0 0
      %272 = vmatprep.subr.bf16.mxu0 0
      %273 = vmatpush1.bf16.msra.mxu0 0
      %274 = vmatprep.subr.bf16.mxu0 0
      %275 = vmatpush1.bf16.msra.mxu0 0
      %276 = vmatprep.subr.bf16.mxu0 0
      %277 = vmatpush1.bf16.msra.mxu0 0
      %278 = vmatprep.subr.bf16.mxu0 0
      %279 = vmatpush1.bf16.msra.mxu0 0
      %280 = vmatprep.subr.bf16.mxu0 0
      %281 = vmatpush1.bf16.msra.mxu0 0
      %282 = vmatprep.subr.bf16.mxu0 0
      %283 = vmatpush1.bf16.msra.mxu0 0
      %284 = vmatprep.subr.bf16.mxu0 0
      %285 = vmatpush1.bf16.msra.mxu0 0
      %286 = vmatprep.mubr.bf16.mxu0 0
      %287 = vmatmul.mubr.bf16.gmra.mrb[0].mxu0 %v204
      %v288 = vpop.f32.mrb[0].mxu0
      %v289 = vadd.f32 %v198, %v288
      %v290 = vpop.f32.mrb[0].mxu0
      %v291 = vpop.f32.mrb[0].mxu0
      %v292 = vadd.f32 %v198, %v291
      %v293 = vpop.f32.mrb[0].mxu0
      %294 = vdwg.mxu0
      %295 = vst [vmem:[%s172] sm:$0xff] %v289
      %296 = vst [vmem:[%s172 + $0x8] sm:$0xff] %v292
      %s297 = smul.u32 2, %s14
      %p298 = scmp.lt.s32.totalorder %s297, 3
      %s299 = scalar_select %p298, %s297, 3
      %s300 = smul.addr %s299, 8
      %s301 = scalar_lea.vmem %s3, %s300
      // Predicated region
      $region33: #{_lambda_.15} parent=31 // pred_check
        %p302 = pneg %p100
      $region34: #{_lambda_.15} parent=31 // pred_check_branch
        %304 = sbr.rel (%p302) target = $region36
      $region35: #{_lambda_.15} parent=31 // pred_region
        %s305 = smul.u32 2, %s14
      $region36: #{_lambda_.15} parent=31 // pred_fallthru
        _
    $region32: #{_lambda_.15} parent=5 // pred_fallthru
      _
    %p306 = scmp.le.s32.totalorder 2, %s9
    // Predicated region
    $region37: #{_lambda_.15} parent=5 // pred_check
      %p307 = pneg %p306
    $region38: #{_lambda_.15} parent=5 // pred_check_branch
      %309 = sbr.rel (%p307) target = $region40
    $region39: #{_lambda_.15} parent=5 // pred_region
      %s310 = ssub.s32 %s9, 2
      // Predicated region
      $region41: #{_lambda_.15} parent=39 // pred_check
        %p311 = pneg %p106
      $region42: #{_lambda_.15} parent=39 // pred_check_branch
        %313 = sbr.rel (%p311) target = $region44
      $region43: #{_lambda_.15} parent=39 // pred_region
        %s314 = smul.u32 2, %s15
        %p315 = scmp.lt.s32.totalorder %s314, 3
        %s316 = scalar_select %p315, %s314, 3
        %s317 = smul.addr %s316, 8
        %s318 = scalar_lea.vmem %s3, %s317
      $region44: #{_lambda_.15} parent=39 // pred_fallthru
        _
    $region40: #{_lambda_.15} parent=5 // pred_fallthru
      _
  $region6: #{_lambda_.15} parent=0 // loop_footer
    %s13 = sadd.s32 1, %s9
  $region7: #{_lambda_.15} parent=0 // loop_footer_branch
    %8 = sbr.rel target = $region3
  $region8: #{_lambda_.15} parent=0 // loop_exit
    _

</llo_original>
